<compile_context>
chip_gen: v7x
topology: tpu7x:2x2x1
jax: 0.10.0
libtpu: 0.0.40
codegen_flags: <defaults>
</compile_context>

<pallas_src>
import math
import functools

import jax
import jax.numpy as jnp
from jax.experimental import pallas as pl
from jax.experimental.pallas import tpu as pltpu


# ----------------------------------------------------------------------------
# Kernel: one (batch_block, layer) grid step.
# ----------------------------------------------------------------------------
def _encoder_layer_kernel(TB, S, D, H,
                          x_ref, bias_ref,
                          win_ref, bin_ref, wout_ref, bout_ref,
                          w1_ref, b1_ref, w2_ref, b2_ref,
                          g1_ref, be1_ref, g2_ref, be2_ref,
                          out_ref,
                          h_ref, attn_ref):
    l = pl.program_id(1)
    last = pl.num_programs(1) - 1
    hd = D // H
    scale = jnp.float32(1.0 / math.sqrt(hd))

    # Layer 0: initialize the resident hidden-state slab from the wrapper's
    # (emb * sqrt(D) + PE) input.  x block index is constant along the layer
    # axis, so it is DMA'd only once per batch block.
    @pl.when(l == 0)
    def _():
        h_ref[...] = x_ref[...]

    x = h_ref[...]                                   # [TB*S, D] f32

    # ---------------- fused QKV projection (bf16 MXU, f32 accumulate) -------
    qkv = jnp.dot(x.astype(jnp.bfloat16), win_ref[0],
                  preferred_element_type=jnp.float32) + bin_ref[0]   # [TB*S, 3D]

    kb = bias_ref[...].reshape(TB, 1, S)             # additive key-pad bias, f32

    # ---------------- self-attention -----------------------------------------
    # Static loop over heads only (H is small).  Each head is one batched
    # einsum over the TB batch rows; per-head score/PV temporaries are freed
    # by the store into the bf16 attention slab.  Head slices come out of the
    # f32 qkv value at head_dim-aligned lane offsets and are cast to bf16 just
    # before the dot (no packed-sublane bf16 slicing).
    # TODO(synk): for long sequences (S >= ~1024) replace the full [S, S]
    # score matrix with a flash-style online-softmax K/V tiling.
    for h in range(H):
        c0 = h * hd
        qh = qkv[:, c0:c0 + hd].reshape(TB, S, hd).astype(jnp.bfloat16)
        kh = qkv[:, D + c0:D + c0 + hd].reshape(TB, S, hd).astype(jnp.bfloat16)
        vh = qkv[:, 2 * D + c0:2 * D + c0 + hd].reshape(TB, S, hd).astype(jnp.bfloat16)

        s = jnp.einsum('bqd,bkd->bqk', qh, kh,
                       preferred_element_type=jnp.float32)            # [TB, S, S]
        s = s * scale + kb
        s = s - jnp.max(s, axis=-1, keepdims=True)
        e = jnp.exp(s)
        p = e * pl.reciprocal(jnp.sum(e, axis=-1, keepdims=True), approx=True)

        oh = jnp.einsum('bqk,bkd->bqd', p.astype(jnp.bfloat16), vh,
                        preferred_element_type=jnp.float32)           # [TB, S, hd]
        attn_ref[:, c0:c0 + hd] = oh.reshape(TB * S, hd).astype(jnp.bfloat16)

    attn = jnp.dot(attn_ref[...], wout_ref[0],
                   preferred_element_type=jnp.float32) + bout_ref[0]

    def _ln(z, g, be):                               # f32 layernorm (eps=1e-5)
        mu = jnp.mean(z, axis=-1, keepdims=True)
        var = jnp.mean((z - mu) ** 2, axis=-1, keepdims=True)
        return (z - mu) * jax.lax.rsqrt(var + 1e-5) * g + be

    # post-LN residual 1 (dropout is identity in eval mode)
    x1 = _ln(x + attn, g1_ref[0], be1_ref[0])

    # ---------------- feed-forward --------------------------------------------
    # TODO(synk): for very large F on v7x (64 MiB VMEM), tile W1/W2 along F
    # with pltpu.emit_pipeline instead of holding the full [D,F]/[F,D] blocks.
    ff = jnp.maximum(
        jnp.dot(x1.astype(jnp.bfloat16), w1_ref[0],
                preferred_element_type=jnp.float32) + b1_ref[0], 0.0)
    ff = jnp.dot(ff.astype(jnp.bfloat16), w2_ref[0],
                 preferred_element_type=jnp.float32) + b2_ref[0]
    x2 = _ln(x1 + ff, g2_ref[0], be2_ref[0])

    # Carry to next layer; skip the redundant store on the final layer.
    @pl.when(l != last)
    def _():
        h_ref[...] = x2

    @pl.when(l == last)
    def _():
        out_ref[...] = x2


# ----------------------------------------------------------------------------
# VMEM sizing / batch-block selection.
# ----------------------------------------------------------------------------
def _vmem_estimate(TB, S, D, F):
    n = TB * S
    w = (D * 3 * D + D * D + D * F + F * D) * 2        # bf16 weight blocks
    b = (3 * D + D + F + D + 4 * D) * 4                # f32 bias / LN blocks
    io = 2 * n * D * 4 + TB * S * 4                    # x0 + out blocks + key bias
    scratch = n * D * 4 + n * D * 2                    # f32 carry + bf16 attn slab
    temps = n * 3 * D * 4 + TB * S * S * 4 + n * F * 4  # qkv, scores, FFN hidden
    # 2x covers the input/output double-buffering (applied once, not twice).
    return 2 * (w + b + io) + scratch + temps


def _pick_batch_block(B, S, D, F, budget_bytes):
    """Largest batch block that fits the VMEM budget.

    TB*S is the row dimension of every big MXU matmul, so bigger is better;
    weight HBM traffic is (B/TB)*L, so bigger TB also amortizes weight DMA.
    """
    for tb in range(B, 0, -1):
        if B % tb:
            continue
        # Keep the (TB*S, D) activation / (TB, S) bias blocks sublane-legal:
        # second-minor block dims must be 8-aligned or equal the full extent.
        if not (tb == B or (tb % 8 == 0 and (tb * S) % 8 == 0)):
            continue
        if _vmem_estimate(tb, S, D, F) <= budget_bytes:
            return tb
    return B


# ----------------------------------------------------------------------------
# One-time parameter preparation (hoisted out of the per-call wrapper).
# ----------------------------------------------------------------------------
def prepare_params(params):
    """Transpose PyTorch-layout [out, in] weights to [in, out] and cast to bf16
    once, so the forward wrapper does no per-call weight HBM round trips."""
    prepared = dict(params)
    prepared["w_in_t"] = jnp.transpose(params["w_in"], (0, 2, 1)).astype(jnp.bfloat16)
    prepared["w_out_t"] = jnp.transpose(params["w_out"], (0, 2, 1)).astype(jnp.bfloat16)
    prepared["w1_t"] = jnp.transpose(params["w1"], (0, 2, 1)).astype(jnp.bfloat16)
    prepared["w2_t"] = jnp.transpose(params["w2"], (0, 2, 1)).astype(jnp.bfloat16)
    return prepared


# ----------------------------------------------------------------------------
# Forward wrapper.
# ----------------------------------------------------------------------------
def transformer_encoder_forward(src_ids, src_mask, params, *, batch_block=None):
    emb = params["emb"]                  # [V, D] f32
    B, S = src_ids.shape
    D = emb.shape[1]
    H = int(params["nhead"])
    L = params["w_in_t"].shape[0]
    F = params["w1_t"].shape[2]
    assert D % H == 0

    try:
        vmem_cap = int(pltpu.get_tpu_info().vmem_capacity_bytes)
    except Exception:
        vmem_cap = 64 * 1024 * 1024      # conservative (v7x per-TC) fallback

    TB = batch_block if batch_block is not None else _pick_batch_block(
        B, S, D, F, int(vmem_cap * 0.7))
    assert B % TB == 0, "batch must be divisible by the batch block"

    # Glue in XLA: embedding gather (data-dependent), sqrt(D) scale and PE add
    # are hoisted out of the kernel; kernel sees one [B*S, D] activation slab.
    x_emb = jnp.take(emb, src_ids, axis=0).astype(jnp.float32)        # [B, S, D]
    pe = params["pe"][:S].astype(jnp.float32)                         # [S, D]
    x0 = (x_emb * jnp.float32(math.sqrt(D)) + pe[None]).reshape(B * S, D)

    # PyTorch: src_key_padding_mask = ~src_mask.bool(); True => masked (-inf).
    kpm = ~(src_mask.astype(bool))
    bias = jnp.where(kpm, jnp.float32(-1e30), jnp.float32(0.0))       # [B, S]

    kernel = functools.partial(_encoder_layer_kernel, TB, S, D, H)

    est = _vmem_estimate(TB, S, D, F)
    vmem_limit = int(min(vmem_cap, max(est + (16 << 20), 32 << 20)))

    grid_spec = pltpu.PrefetchScalarGridSpec(
        num_scalar_prefetch=0,
        grid=(B // TB, L),
        in_specs=[
            pl.BlockSpec((TB * S, D), lambda b, l: (b, 0)),           # x0 slab
            pl.BlockSpec((TB, S), lambda b, l: (b, 0)),               # key-pad bias
            pl.BlockSpec((1, D, 3 * D), lambda b, l: (l, 0, 0)),      # W_in^T (bf16)
            pl.BlockSpec((1, 1, 3 * D), lambda b, l: (l, 0, 0)),      # b_in
            pl.BlockSpec((1, D, D), lambda b, l: (l, 0, 0)),          # W_out^T (bf16)
            pl.BlockSpec((1, 1, D), lambda b, l: (l, 0, 0)),          # b_out
            pl.BlockSpec((1, D, F), lambda b, l: (l, 0, 0)),          # W1^T (bf16)
            pl.BlockSpec((1, 1, F), lambda b, l: (l, 0, 0)),          # b1
            pl.BlockSpec((1, F, D), lambda b, l: (l, 0, 0)),          # W2^T (bf16)
            pl.BlockSpec((1, 1, D), lambda b, l: (l, 0, 0)),          # b2
            pl.BlockSpec((1, 1, D), lambda b, l: (l, 0, 0)),          # ln1 gamma
            pl.BlockSpec((1, 1, D), lambda b, l: (l, 0, 0)),          # ln1 beta
            pl.BlockSpec((1, 1, D), lambda b, l: (l, 0, 0)),          # ln2 gamma
            pl.BlockSpec((1, 1, D), lambda b, l: (l, 0, 0)),          # ln2 beta
        ],
        out_specs=pl.BlockSpec((TB * S, D), lambda b, l: (b, 0)),
        scratch_shapes=[
            pltpu.VMEM((TB * S, D), jnp.float32),    # hidden-state carry
            pltpu.VMEM((TB * S, D), jnp.bfloat16),   # attention output slab
        ],
    )

    out2d = pl.pallas_call(
        kernel,
        out_shape=jax.ShapeDtypeStruct((B * S, D), jnp.float32),
        grid_spec=grid_spec,
        compiler_params=pltpu.CompilerParams(
            dimension_semantics=("parallel", "arbitrary"),
            vmem_limit_bytes=vmem_limit),
    )(x0, bias,
      params["w_in_t"], params["b_in"], params["w_out_t"], params["b_out"],
      params["w1_t"], params["b1"], params["w2_t"], params["b2"],
      params["g1"], params["be1"], params["g2"], params["be2"])

    return out2d.reshape(B, S, D)


# ----------------------------------------------------------------------------
# Pure-JAX f32 reference (PyTorch semantics) for a tolerance check.
# ----------------------------------------------------------------------------
def _reference_forward(src_ids, src_mask, params):
    B, S = src_ids.shape
    D = params["emb"].shape[1]
    H = int(params["nhead"])
    L = params["w_in"].shape[0]
    hd = D // H

    x = jnp.take(params["emb"], src_ids, axis=0) * math.sqrt(D) + params["pe"][:S][None]
    kpm = ~(src_mask.astype(bool))
    bias = jnp.where(kpm, jnp.float32(-1e30), jnp.float32(0.0))[:, None, None, :]

    def ln(z, g, be):
        mu = jnp.mean(z, -1, keepdims=True)
        var = jnp.mean((z - mu) ** 2, -1, keepdims=True)
        return (z - mu) * jax.lax.rsqrt(var + 1e-5) * g + be

    for l in range(L):
        qkv = x @ params["w_in"][l].T + params["b_in"][l]
        q, k, v = jnp.split(qkv, 3, axis=-1)
        q = q.reshape(B, S, H, hd).transpose(0, 2, 1, 3)
        k = k.reshape(B, S, H, hd).transpose(0, 2, 1, 3)
        v = v.reshape(B, S, H, hd).transpose(0, 2, 1, 3)
        s = jnp.einsum('bhqd,bhkd->bhqk', q, k) / math.sqrt(hd) + bias
        p = jax.nn.softmax(s, axis=-1)
        o = jnp.einsum('bhqk,bhkd->bhqd', p, v).transpose(0, 2, 1, 3).reshape(B, S, D)
        o = o @ params["w_out"][l].T + params["b_out"][l]
        x = ln(x + o, params["g1"][l], params["be1"][l])
        f = jax.nn.relu(x @ params["w1"][l].T + params["b1"][l])
        f = f @ params["w2"][l].T + params["b2"][l]
        x = ln(x + f, params["g2"][l], params["be2"][l])
    return x


# ----------------------------------------------------------------------------
# Parameter construction (matches the PyTorch module's shapes / buffers).
# ----------------------------------------------------------------------------
def init_params(key, vocab_size, D, H, F, L, max_len=64, pad_id=0):
    ks = jax.random.split(key, 10)

    emb = jax.random.normal(ks[0], (vocab_size, D), jnp.float32) * 0.02
    emb = emb.at[pad_id].set(0.0)   # nn.Embedding padding_idx row is zero

    pos = jnp.arange(max_len, dtype=jnp.float32)[:, None]
    div = jnp.exp(jnp.arange(0, D, 2, dtype=jnp.float32) * (-math.log(10000.0) / D))
    pe = jnp.zeros((max_len, D), jnp.float32)
    pe = pe.at[:, 0::2].set(jnp.sin(pos * div))
    pe = pe.at[:, 1::2].set(jnp.cos(pos * div))

    def w(k, shape, scale=0.05):
        return jax.random.normal(k, shape, jnp.float32) * scale

    return {
        "emb": emb,
        "pe": pe,
        "nhead": H,
        "w_in": w(ks[1], (L, 3 * D, D)),    # self_attn.in_proj_weight
        "b_in": w(ks[2], (L, 1, 3 * D)),    # self_attn.in_proj_bias
        "w_out": w(ks[3], (L, D, D)),       # self_attn.out_proj.weight
        "b_out": w(ks[4], (L, 1, D)),       # self_attn.out_proj.bias
        "w1": w(ks[5], (L, F, D)),          # linear1.weight
        "b1": w(ks[6], (L, 1, F)),          # linear1.bias
        "w2": w(ks[7], (L, D, F)),          # linear2.weight
        "b2": w(ks[8], (L, 1, D)),          # linear2.bias
        "g1": jnp.ones((L, 1, D), jnp.float32),
        "be1": jnp.zeros((L, 1, D), jnp.float32),
        "g2": jnp.ones((L, 1, D), jnp.float32),
        "be2": jnp.zeros((L, 1, D), jnp.float32),
    }


if __name__ == "__main__":
    # Small, module-consistent, lane-friendly shapes: D and F multiples of 128,
    # head_dim = D // H = 128 so head slices / stores are lane-aligned.
    VOCAB, D, H, F, L = 50, 256, 2, 512, 2
    B, S = 4, 8

    key = jax.random.PRNGKey(0)
    k_param, k_ids = jax.random.split(key)

    params = init_params(k_param, VOCAB, D, H, F, L, max_len=64, pad_id=0)
    prepared = prepare_params(params)       # one-time transpose + bf16 cast

    src_ids = jax.random.randint(k_ids, (B, S), 1, VOCAB).astype(jnp.int32)
    # 1 = valid token, 0 = pad (last two batch elements have padded positions)
    src_mask = jnp.array([[1] * S,
                          [1] * S,
                          [1] * (S - 2) + [0] * 2,
                          [1] * (S - 3) + [0] * 3], dtype=jnp.float32)
    src_ids = jnp.where(src_mask > 0, src_ids, 0)   # padded positions -> [PAD] id 0

    out = transformer_encoder_forward(src_ids, src_mask, prepared)
    out = jax.block_until_ready(out)

    ref = _reference_forward(src_ids, src_mask, params)
    max_err = float(jnp.max(jnp.abs(out - ref)))

    assert out.shape == (B, S, D)
    assert bool(jnp.all(jnp.isfinite(out)))
    assert max_err < 0.15, f"max |pallas - ref| too large: {max_err}"
    print("KERNEL_OK")
</pallas_src>

<mosaic_0001>
module attributes {stable_mosaic.version = 11 : i64} {
  func.func @_encoder_layer_kernel(%arg0: i32, %arg1: i32, %arg2: memref<32x256xf32, #tpu.memory_space<vmem>>, %arg3: memref<4x8xf32, #tpu.memory_space<vmem>>, %arg4: memref<1x256x768xbf16, #tpu.memory_space<vmem>>, %arg5: memref<1x1x768xf32, #tpu.memory_space<vmem>>, %arg6: memref<1x256x256xbf16, #tpu.memory_space<vmem>>, %arg7: memref<1x1x256xf32, #tpu.memory_space<vmem>>, %arg8: memref<1x256x512xbf16, #tpu.memory_space<vmem>>, %arg9: memref<1x1x512xf32, #tpu.memory_space<vmem>>, %arg10: memref<1x512x256xbf16, #tpu.memory_space<vmem>>, %arg11: memref<1x1x256xf32, #tpu.memory_space<vmem>>, %arg12: memref<1x1x256xf32, #tpu.memory_space<vmem>>, %arg13: memref<1x1x256xf32, #tpu.memory_space<vmem>>, %arg14: memref<1x1x256xf32, #tpu.memory_space<vmem>>, %arg15: memref<1x1x256xf32, #tpu.memory_space<vmem>>, %arg16: memref<32x256xf32, #tpu.memory_space<vmem>>, %arg17: memref<32x256xf32, #tpu.memory_space<vmem>>, %arg18: memref<32x256xbf16, #tpu.memory_space<vmem>>) attributes {dimension_semantics = [#tpu.dimension_semantics<parallel>, #tpu.dimension_semantics<arbitrary>], iteration_bounds = array<i64: 1, 2>, scalar_prefetch = 0 : i64, scratch_operands = 2 : i64, tpu.core_type = #tpu.core_type<tc>, window_params = [{transform_indices = @transform_0, window_bounds = array<i64: 32, 256>}, {transform_indices = @transform_1, window_bounds = array<i64: 4, 8>}, {transform_indices = @transform_2, window_bounds = array<i64: 1, 256, 768>}, {transform_indices = @transform_3, window_bounds = array<i64: 1, 1, 768>}, {transform_indices = @transform_4, window_bounds = array<i64: 1, 256, 256>}, {transform_indices = @transform_5, window_bounds = array<i64: 1, 1, 256>}, {transform_indices = @transform_6, window_bounds = array<i64: 1, 256, 512>}, {transform_indices = @transform_7, window_bounds = array<i64: 1, 1, 512>}, {transform_indices = @transform_8, window_bounds = array<i64: 1, 512, 256>}, {transform_indices = @transform_9, window_bounds = array<i64: 1, 1, 256>}, {transform_indices = @transform_10, window_bounds = array<i64: 1, 1, 256>}, {transform_indices = @transform_11, window_bounds = array<i64: 1, 1, 256>}, {transform_indices = @transform_12, window_bounds = array<i64: 1, 1, 256>}, {transform_indices = @transform_13, window_bounds = array<i64: 1, 1, 256>}, {transform_indices = @transform_14, window_bounds = array<i64: 32, 256>}]} {
    %c0_i32 = arith.constant 0 : i32
    %0 = arith.cmpi eq, %arg1, %c0_i32 : i32
    %1 = arith.extui %0 : i1 to i32
    %c0_i32_0 = arith.constant 0 : i32
    %2 = arith.cmpi ne, %1, %c0_i32_0 : i32
    scf.if %2 {
      %c0_72 = arith.constant 0 : index
      %c0_73 = arith.constant 0 : index
      %158 = vector.load %arg2[%c0_72, %c0_73] : memref<32x256xf32, #tpu.memory_space<vmem>>, vector<32x256xf32>
      %c0_74 = arith.constant 0 : index
      %c0_75 = arith.constant 0 : index
      %159 = vector.load %arg17[%c0_74, %c0_75] : memref<32x256xf32, #tpu.memory_space<vmem>>, vector<32x256xf32>
      tpu.vector_store %arg17[%c0_74, %c0_75], %158 {strides = array<i32>} : memref<32x256xf32, #tpu.memory_space<vmem>>, vector<32x256xf32>,
    } else {
    }
    %c0 = arith.constant 0 : index
    %c0_1 = arith.constant 0 : index
    %3 = vector.load %arg17[%c0, %c0_1] : memref<32x256xf32, #tpu.memory_space<vmem>>, vector<32x256xf32>
    %4 = arith.truncf %3 : vector<32x256xf32> to vector<32x256xbf16>
    %c0_2 = arith.constant 0 : index
    %c0_3 = arith.constant 0 : index
    %c0_4 = arith.constant 0 : index
    %5 = vector.load %arg4[%c0_2, %c0_3, %c0_4] : memref<1x256x768xbf16, #tpu.memory_space<vmem>>, vector<1x256x768xbf16>
    %6 = vector.shape_cast %5 : vector<1x256x768xbf16> to vector<256x768xbf16>
    %cst = arith.constant dense<0.000000e+00> : vector<32x768xf32>
    %7 = tpu.matmul %4, %6, %cst {dimension_numbers = #tpu.dot_dimension_numbers<[1], [0], [0], [1], [0, 0, 1, 1], [], []>} : vector<32x256xbf16>, vector<256x768xbf16>, vector<32x768xf32> -> vector<32x768xf32>
    %c0_5 = arith.constant 0 : index
    %c0_6 = arith.constant 0 : index
    %c0_7 = arith.constant 0 : index
    %8 = vector.load %arg5[%c0_5, %c0_6, %c0_7] : memref<1x1x768xf32, #tpu.memory_space<vmem>>, vector<1x1x768xf32>
    %9 = vector.shape_cast %8 : vector<1x1x768xf32> to vector<1x768xf32>
    %10 = vector.broadcast %9 : vector<1x768xf32> to vector<32x768xf32>
    %11 = arith.addf %7, %10 : vector<32x768xf32>
    %c0_8 = arith.constant 0 : index
    %c0_9 = arith.constant 0 : index
    %12 = vector.load %arg3[%c0_8, %c0_9] : memref<4x8xf32, #tpu.memory_space<vmem>>, vector<4x8xf32>
    %13 = vector.shape_cast %12 : vector<4x8xf32> to vector<4x1x8xf32>
    %14 = vector.extract_strided_slice %11 {offsets = [0, 0], sizes = [32, 128], strides = [1, 1]} : vector<32x768xf32> to vector<32x128xf32>
    %15 = vector.shape_cast %14 : vector<32x128xf32> to vector<4x8x128xf32>
    %16 = arith.truncf %15 : vector<4x8x128xf32> to vector<4x8x128xbf16>
    %17 = vector.extract_strided_slice %11 {offsets = [0, 256], sizes = [32, 128], strides = [1, 1]} : vector<32x768xf32> to vector<32x128xf32>
    %18 = vector.shape_cast %17 : vector<32x128xf32> to vector<4x8x128xf32>
    %19 = arith.truncf %18 : vector<4x8x128xf32> to vector<4x8x128xbf16>
    %20 = vector.extract_strided_slice %11 {offsets = [0, 512], sizes = [32, 128], strides = [1, 1]} : vector<32x768xf32> to vector<32x128xf32>
    %21 = vector.shape_cast %20 : vector<32x128xf32> to vector<4x8x128xf32>
    %22 = arith.truncf %21 : vector<4x8x128xf32> to vector<4x8x128xbf16>
    "tpu.trace_start"() <{level = 10 : i32, message = "bqd,bkd->bqk"}> : () -> ()
    %cst_10 = arith.constant dense<0.000000e+00> : vector<4x8x8xf32>
    %23 = tpu.matmul %16, %19, %cst_10 {dimension_numbers = #tpu.dot_dimension_numbers<[2], [2], [1], [1], [0, 0, 0, 1, 1, 1], [0], [0]>} : vector<4x8x128xbf16>, vector<4x8x128xbf16>, vector<4x8x8xf32> -> vector<4x8x8xf32>
    "tpu.trace_stop"() : () -> ()
    %cst_11 = arith.constant 0.0883883461 : f32
    %24 = vector.broadcast %cst_11 : f32 to vector<4x8x8xf32>
    %25 = arith.mulf %23, %24 : vector<4x8x8xf32>
    %26 = vector.broadcast %13 : vector<4x1x8xf32> to vector<4x8x8xf32>
    %27 = arith.addf %25, %26 : vector<4x8x8xf32>
    %cst_12 = arith.constant dense<0xFF800000> : vector<4x8xf32>
    %28 = vector.multi_reduction <maximumf>, %27, %cst_12 [2] : vector<4x8x8xf32> to vector<4x8xf32>
    %29 = vector.shape_cast %28 : vector<4x8xf32> to vector<4x8x1xf32>
    %30 = vector.broadcast %29 : vector<4x8x1xf32> to vector<4x8x8xf32>
    %31 = arith.subf %27, %30 : vector<4x8x8xf32>
    %32 = math.exp %31 : vector<4x8x8xf32>
    %cst_13 = arith.constant dense<0.000000e+00> : vector<4x8xf32>
    %33 = vector.multi_reduction <add>, %32, %cst_13 [2] : vector<4x8x8xf32> to vector<4x8xf32>
    %34 = vector.shape_cast %33 : vector<4x8xf32> to vector<4x8x1xf32>
    %35 = tpu.reciprocal %34 {approx = true} : vector<4x8x1xf32> -> vector<4x8x1xf32>
    %36 = vector.broadcast %35 : vector<4x8x1xf32> to vector<4x8x8xf32>
    %37 = arith.mulf %32, %36 : vector<4x8x8xf32>
    %38 = arith.truncf %37 : vector<4x8x8xf32> to vector<4x8x8xbf16>
    "tpu.trace_start"() <{level = 10 : i32, message = "bqk,bkd->bqd"}> : () -> ()
    %cst_14 = arith.constant dense<0.000000e+00> : vector<4x8x128xf32>
    %39 = tpu.matmul %38, %22, %cst_14 {dimension_numbers = #tpu.dot_dimension_numbers<[2], [1], [1], [2], [0, 0, 0, 1, 1, 2], [0], [0]>} : vector<4x8x8xbf16>, vector<4x8x128xbf16>, vector<4x8x128xf32> -> vector<4x8x128xf32>
    "tpu.trace_stop"() : () -> ()
    %40 = vector.shape_cast %39 : vector<4x8x128xf32> to vector<32x128xf32>
    %41 = arith.truncf %40 : vector<32x128xf32> to vector<32x128xbf16>
    %c0_15 = arith.constant 0 : index
    %c0_16 = arith.constant 0 : index
    %42 = vector.load %arg18[%c0_15, %c0_16] : memref<32x256xbf16, #tpu.memory_space<vmem>>, vector<32x128xbf16>
    tpu.vector_store %arg18[%c0_15, %c0_16], %41 {strides = array<i32>} : memref<32x256xbf16, #tpu.memory_space<vmem>>, vector<32x128xbf16>,
    %43 = vector.extract_strided_slice %11 {offsets = [0, 128], sizes = [32, 128], strides = [1, 1]} : vector<32x768xf32> to vector<32x128xf32>
    %44 = vector.shape_cast %43 : vector<32x128xf32> to vector<4x8x128xf32>
    %45 = arith.truncf %44 : vector<4x8x128xf32> to vector<4x8x128xbf16>
    %46 = vector.extract_strided_slice %11 {offsets = [0, 384], sizes = [32, 128], strides = [1, 1]} : vector<32x768xf32> to vector<32x128xf32>
    %47 = vector.shape_cast %46 : vector<32x128xf32> to vector<4x8x128xf32>
    %48 = arith.truncf %47 : vector<4x8x128xf32> to vector<4x8x128xbf16>
    %49 = vector.extract_strided_slice %11 {offsets = [0, 640], sizes = [32, 128], strides = [1, 1]} : vector<32x768xf32> to vector<32x128xf32>
    %50 = vector.shape_cast %49 : vector<32x128xf32> to vector<4x8x128xf32>
    %51 = arith.truncf %50 : vector<4x8x128xf32> to vector<4x8x128xbf16>
    "tpu.trace_start"() <{level = 10 : i32, message = "bqd,bkd->bqk"}> : () -> ()
    %cst_17 = arith.constant dense<0.000000e+00> : vector<4x8x8xf32>
    %52 = tpu.matmul %45, %48, %cst_17 {dimension_numbers = #tpu.dot_dimension_numbers<[2], [2], [1], [1], [0, 0, 0, 1, 1, 1], [0], [0]>} : vector<4x8x128xbf16>, vector<4x8x128xbf16>, vector<4x8x8xf32> -> vector<4x8x8xf32>
    "tpu.trace_stop"() : () -> ()
    %cst_18 = arith.constant 0.0883883461 : f32
    %53 = vector.broadcast %cst_18 : f32 to vector<4x8x8xf32>
    %54 = arith.mulf %52, %53 : vector<4x8x8xf32>
    %55 = vector.broadcast %13 : vector<4x1x8xf32> to vector<4x8x8xf32>
    %56 = arith.addf %54, %55 : vector<4x8x8xf32>
    %cst_19 = arith.constant dense<0xFF800000> : vector<4x8xf32>
    %57 = vector.multi_reduction <maximumf>, %56, %cst_19 [2] : vector<4x8x8xf32> to vector<4x8xf32>
    %58 = vector.shape_cast %57 : vector<4x8xf32> to vector<4x8x1xf32>
    %59 = vector.broadcast %58 : vector<4x8x1xf32> to vector<4x8x8xf32>
    %60 = arith.subf %56, %59 : vector<4x8x8xf32>
    %61 = math.exp %60 : vector<4x8x8xf32>
    %cst_20 = arith.constant dense<0.000000e+00> : vector<4x8xf32>
    %62 = vector.multi_reduction <add>, %61, %cst_20 [2] : vector<4x8x8xf32> to vector<4x8xf32>
    %63 = vector.shape_cast %62 : vector<4x8xf32> to vector<4x8x1xf32>
    %64 = tpu.reciprocal %63 {approx = true} : vector<4x8x1xf32> -> vector<4x8x1xf32>
    %65 = vector.broadcast %64 : vector<4x8x1xf32> to vector<4x8x8xf32>
    %66 = arith.mulf %61, %65 : vector<4x8x8xf32>
    %67 = arith.truncf %66 : vector<4x8x8xf32> to vector<4x8x8xbf16>
    "tpu.trace_start"() <{level = 10 : i32, message = "bqk,bkd->bqd"}> : () -> ()
    %cst_21 = arith.constant dense<0.000000e+00> : vector<4x8x128xf32>
    %68 = tpu.matmul %67, %51, %cst_21 {dimension_numbers = #tpu.dot_dimension_numbers<[2], [1], [1], [2], [0, 0, 0, 1, 1, 2], [0], [0]>} : vector<4x8x8xbf16>, vector<4x8x128xbf16>, vector<4x8x128xf32> -> vector<4x8x128xf32>
    "tpu.trace_stop"() : () -> ()
    %69 = vector.shape_cast %68 : vector<4x8x128xf32> to vector<32x128xf32>
    %70 = arith.truncf %69 : vector<32x128xf32> to vector<32x128xbf16>
    %c0_22 = arith.constant 0 : index
    %c128 = arith.constant 128 : index
    %71 = vector.load %arg18[%c0_22, %c128] : memref<32x256xbf16, #tpu.memory_space<vmem>>, vector<32x128xbf16>
    tpu.vector_store %arg18[%c0_22, %c128], %70 {strides = array<i32>} : memref<32x256xbf16, #tpu.memory_space<vmem>>, vector<32x128xbf16>,
    %c0_23 = arith.constant 0 : index
    %c0_24 = arith.constant 0 : index
    %72 = vector.load %arg18[%c0_23, %c0_24] : memref<32x256xbf16, #tpu.memory_space<vmem>>, vector<32x256xbf16>
    %c0_25 = arith.constant 0 : index
    %c0_26 = arith.constant 0 : index
    %c0_27 = arith.constant 0 : index
    %73 = vector.load %arg6[%c0_25, %c0_26, %c0_27] : memref<1x256x256xbf16, #tpu.memory_space<vmem>>, vector<1x256x256xbf16>
    %74 = vector.shape_cast %73 : vector<1x256x256xbf16> to vector<256x256xbf16>
    %cst_28 = arith.constant dense<0.000000e+00> : vector<32x256xf32>
    %75 = tpu.matmul %72, %74, %cst_28 {dimension_numbers = #tpu.dot_dimension_numbers<[1], [0], [0], [1], [0, 0, 1, 1], [], []>} : vector<32x256xbf16>, vector<256x256xbf16>, vector<32x256xf32> -> vector<32x256xf32>
    %c0_29 = arith.constant 0 : index
    %c0_30 = arith.constant 0 : index
    %c0_31 = arith.constant 0 : index
    %76 = vector.load %arg7[%c0_29, %c0_30, %c0_31] : memref<1x1x256xf32, #tpu.memory_space<vmem>>, vector<1x1x256xf32>
    %77 = vector.shape_cast %76 : vector<1x1x256xf32> to vector<1x256xf32>
    %78 = vector.broadcast %77 : vector<1x256xf32> to vector<32x256xf32>
    %79 = arith.addf %75, %78 : vector<32x256xf32>
    %80 = arith.addf %3, %79 : vector<32x256xf32>
    %c0_32 = arith.constant 0 : index
    %c0_33 = arith.constant 0 : index
    %c0_34 = arith.constant 0 : index
    %81 = vector.load %arg12[%c0_32, %c0_33, %c0_34] : memref<1x1x256xf32, #tpu.memory_space<vmem>>, vector<1x1x256xf32>
    %82 = vector.shape_cast %81 : vector<1x1x256xf32> to vector<1x256xf32>
    %c0_35 = arith.constant 0 : index
    %c0_36 = arith.constant 0 : index
    %c0_37 = arith.constant 0 : index
    %83 = vector.load %arg13[%c0_35, %c0_36, %c0_37] : memref<1x1x256xf32, #tpu.memory_space<vmem>>, vector<1x1x256xf32>
    %84 = vector.shape_cast %83 : vector<1x1x256xf32> to vector<1x256xf32>
    %cst_38 = arith.constant dense<0.000000e+00> : vector<32xf32>
    %85 = vector.multi_reduction <add>, %80, %cst_38 [1] : vector<32x256xf32> to vector<32xf32>
    %86 = vector.shape_cast %85 : vector<32xf32> to vector<32x1xf32>
    %cst_39 = arith.constant 2.560000e+02 : f32
    %87 = vector.broadcast %cst_39 : f32 to vector<32x1xf32>
    %88 = arith.divf %86, %87 : vector<32x1xf32>
    %89 = vector.broadcast %88 : vector<32x1xf32> to vector<32x256xf32>
    %90 = arith.subf %80, %89 : vector<32x256xf32>
    %91 = arith.mulf %90, %90 : vector<32x256xf32>
    %cst_40 = arith.constant dense<0.000000e+00> : vector<32xf32>
    %92 = vector.multi_reduction <add>, %91, %cst_40 [1] : vector<32x256xf32> to vector<32xf32>
    %93 = vector.shape_cast %92 : vector<32xf32> to vector<32x1xf32>
    %cst_41 = arith.constant 2.560000e+02 : f32
    %94 = vector.broadcast %cst_41 : f32 to vector<32x1xf32>
    %95 = arith.divf %93, %94 : vector<32x1xf32>
    %96 = vector.broadcast %88 : vector<32x1xf32> to vector<32x256xf32>
    %97 = arith.subf %80, %96 : vector<32x256xf32>
    %cst_42 = arith.constant 9.99999974E-6 : f32
    %98 = vector.broadcast %cst_42 : f32 to vector<32x1xf32>
    %99 = arith.addf %95, %98 : vector<32x1xf32>
    %100 = math.rsqrt %99 : vector<32x1xf32>
    %101 = vector.broadcast %100 : vector<32x1xf32> to vector<32x256xf32>
    %102 = arith.mulf %97, %101 : vector<32x256xf32>
    %103 = vector.broadcast %82 : vector<1x256xf32> to vector<32x256xf32>
    %104 = arith.mulf %102, %103 : vector<32x256xf32>
    %105 = vector.broadcast %84 : vector<1x256xf32> to vector<32x256xf32>
    %106 = arith.addf %104, %105 : vector<32x256xf32>
    %107 = arith.truncf %106 : vector<32x256xf32> to vector<32x256xbf16>
    %c0_43 = arith.constant 0 : index
    %c0_44 = arith.constant 0 : index
    %c0_45 = arith.constant 0 : index
    %108 = vector.load %arg8[%c0_43, %c0_44, %c0_45] : memref<1x256x512xbf16, #tpu.memory_space<vmem>>, vector<1x256x512xbf16>
    %109 = vector.shape_cast %108 : vector<1x256x512xbf16> to vector<256x512xbf16>
    %cst_46 = arith.constant dense<0.000000e+00> : vector<32x512xf32>
    %110 = tpu.matmul %107, %109, %cst_46 {dimension_numbers = #tpu.dot_dimension_numbers<[1], [0], [0], [1], [0, 0, 1, 1], [], []>} : vector<32x256xbf16>, vector<256x512xbf16>, vector<32x512xf32> -> vector<32x512xf32>
    %c0_47 = arith.constant 0 : index
    %c0_48 = arith.constant 0 : index
    %c0_49 = arith.constant 0 : index
    %111 = vector.load %arg9[%c0_47, %c0_48, %c0_49] : memref<1x1x512xf32, #tpu.memory_space<vmem>>, vector<1x1x512xf32>
    %112 = vector.shape_cast %111 : vector<1x1x512xf32> to vector<1x512xf32>
    %113 = vector.broadcast %112 : vector<1x512xf32> to vector<32x512xf32>
    %114 = arith.addf %110, %113 : vector<32x512xf32>
    %cst_50 = arith.constant 0.000000e+00 : f32
    %115 = vector.broadcast %cst_50 : f32 to vector<32x512xf32>
    %116 = arith.maximumf %114, %115 : vector<32x512xf32>
    %117 = arith.truncf %116 : vector<32x512xf32> to vector<32x512xbf16>
    %c0_51 = arith.constant 0 : index
    %c0_52 = arith.constant 0 : index
    %c0_53 = arith.constant 0 : index
    %118 = vector.load %arg10[%c0_51, %c0_52, %c0_53] : memref<1x512x256xbf16, #tpu.memory_space<vmem>>, vector<1x512x256xbf16>
    %119 = vector.shape_cast %118 : vector<1x512x256xbf16> to vector<512x256xbf16>
    %cst_54 = arith.constant dense<0.000000e+00> : vector<32x256xf32>
    %120 = tpu.matmul %117, %119, %cst_54 {dimension_numbers = #tpu.dot_dimension_numbers<[1], [0], [0], [1], [0, 0, 1, 1], [], []>} : vector<32x512xbf16>, vector<512x256xbf16>, vector<32x256xf32> -> vector<32x256xf32>
    %c0_55 = arith.constant 0 : index
    %c0_56 = arith.constant 0 : index
    %c0_57 = arith.constant 0 : index
    %121 = vector.load %arg11[%c0_55, %c0_56, %c0_57] : memref<1x1x256xf32, #tpu.memory_space<vmem>>, vector<1x1x256xf32>
    %122 = vector.shape_cast %121 : vector<1x1x256xf32> to vector<1x256xf32>
    %123 = vector.broadcast %122 : vector<1x256xf32> to vector<32x256xf32>
    %124 = arith.addf %120, %123 : vector<32x256xf32>
    %125 = arith.addf %106, %124 : vector<32x256xf32>
    %c0_58 = arith.constant 0 : index
    %c0_59 = arith.constant 0 : index
    %c0_60 = arith.constant 0 : index
    %126 = vector.load %arg14[%c0_58, %c0_59, %c0_60] : memref<1x1x256xf32, #tpu.memory_space<vmem>>, vector<1x1x256xf32>
    %127 = vector.shape_cast %126 : vector<1x1x256xf32> to vector<1x256xf32>
    %c0_61 = arith.constant 0 : index
    %c0_62 = arith.constant 0 : index
    %c0_63 = arith.constant 0 : index
    %128 = vector.load %arg15[%c0_61, %c0_62, %c0_63] : memref<1x1x256xf32, #tpu.memory_space<vmem>>, vector<1x1x256xf32>
    %129 = vector.shape_cast %128 : vector<1x1x256xf32> to vector<1x256xf32>
    %cst_64 = arith.constant dense<0.000000e+00> : vector<32xf32>
    %130 = vector.multi_reduction <add>, %125, %cst_64 [1] : vector<32x256xf32> to vector<32xf32>
    %131 = vector.shape_cast %130 : vector<32xf32> to vector<32x1xf32>
    %cst_65 = arith.constant 2.560000e+02 : f32
    %132 = vector.broadcast %cst_65 : f32 to vector<32x1xf32>
    %133 = arith.divf %131, %132 : vector<32x1xf32>
    %134 = vector.broadcast %133 : vector<32x1xf32> to vector<32x256xf32>
    %135 = arith.subf %125, %134 : vector<32x256xf32>
    %136 = arith.mulf %135, %135 : vector<32x256xf32>
    %cst_66 = arith.constant dense<0.000000e+00> : vector<32xf32>
    %137 = vector.multi_reduction <add>, %136, %cst_66 [1] : vector<32x256xf32> to vector<32xf32>
    %138 = vector.shape_cast %137 : vector<32xf32> to vector<32x1xf32>
    %cst_67 = arith.constant 2.560000e+02 : f32
    %139 = vector.broadcast %cst_67 : f32 to vector<32x1xf32>
    %140 = arith.divf %138, %139 : vector<32x1xf32>
    %141 = vector.broadcast %133 : vector<32x1xf32> to vector<32x256xf32>
    %142 = arith.subf %125, %141 : vector<32x256xf32>
    %cst_68 = arith.constant 9.99999974E-6 : f32
    %143 = vector.broadcast %cst_68 : f32 to vector<32x1xf32>
    %144 = arith.addf %140, %143 : vector<32x1xf32>
    %145 = math.rsqrt %144 : vector<32x1xf32>
    %146 = vector.broadcast %145 : vector<32x1xf32> to vector<32x256xf32>
    %147 = arith.mulf %142, %146 : vector<32x256xf32>
    %148 = vector.broadcast %127 : vector<1x256xf32> to vector<32x256xf32>
    %149 = arith.mulf %147, %148 : vector<32x256xf32>
    %150 = vector.broadcast %129 : vector<1x256xf32> to vector<32x256xf32>
    %151 = arith.addf %149, %150 : vector<32x256xf32>
    %c1_i32 = arith.constant 1 : i32
    %152 = arith.cmpi ne, %arg1, %c1_i32 : i32
    %153 = arith.extui %152 : i1 to i32
    %c0_i32_69 = arith.constant 0 : i32
    %154 = arith.cmpi ne, %153, %c0_i32_69 : i32
    scf.if %154 {
      %c0_72 = arith.constant 0 : index
      %c0_73 = arith.constant 0 : index
      %158 = vector.load %arg17[%c0_72, %c0_73] : memref<32x256xf32, #tpu.memory_space<vmem>>, vector<32x256xf32>
      tpu.vector_store %arg17[%c0_72, %c0_73], %151 {strides = array<i32>} : memref<32x256xf32, #tpu.memory_space<vmem>>, vector<32x256xf32>,
    } else {
    }
    %c1_i32_70 = arith.constant 1 : i32
    %155 = arith.cmpi eq, %arg1, %c1_i32_70 : i32
    %156 = arith.extui %155 : i1 to i32
    %c0_i32_71 = arith.constant 0 : i32
    %157 = arith.cmpi ne, %156, %c0_i32_71 : i32
    scf.if %157 {
      %c0_72 = arith.constant 0 : index
      %c0_73 = arith.constant 0 : index
      %158 = vector.load %arg16[%c0_72, %c0_73] : memref<32x256xf32, #tpu.memory_space<vmem>>, vector<32x256xf32>
      tpu.vector_store %arg16[%c0_72, %c0_73], %151 {strides = array<i32>} : memref<32x256xf32, #tpu.memory_space<vmem>>, vector<32x256xf32>,
    } else {
    }
    return
  }
  func.func @transform_0(%arg0: i32, %arg1: i32) -> (i32, i32) {
    %c0_i32 = arith.constant 0 : i32
    %c0_i32_0 = arith.constant 0 : i32
    return %arg0, %c0_i32 : i32, i32
  }
  func.func @transform_1(%arg0: i32, %arg1: i32) -> (i32, i32) {
    %c0_i32 = arith.constant 0 : i32
    %c0_i32_0 = arith.constant 0 : i32
    return %arg0, %c0_i32 : i32, i32
  }
  func.func @transform_2(%arg0: i32, %arg1: i32) -> (i32, i32, i32) {
    %c0_i32 = arith.constant 0 : i32
    %c0_i32_0 = arith.constant 0 : i32
    %c0_i32_1 = arith.constant 0 : i32
    return %arg1, %c0_i32, %c0_i32_0 : i32, i32, i32
  }
  func.func @transform_3(%arg0: i32, %arg1: i32) -> (i32, i32, i32) {
    %c0_i32 = arith.constant 0 : i32
    %c0_i32_0 = arith.constant 0 : i32
    %c0_i32_1 = arith.constant 0 : i32
    return %arg1, %c0_i32, %c0_i32_0 : i32, i32, i32
  }
  func.func @transform_4(%arg0: i32, %arg1: i32) -> (i32, i32, i32) {
    %c0_i32 = arith.constant 0 : i32
    %c0_i32_0 = arith.constant 0 : i32
    %c0_i32_1 = arith.constant 0 : i32
    return %arg1, %c0_i32, %c0_i32_0 : i32, i32, i32
  }
  func.func @transform_5(%arg0: i32, %arg1: i32) -> (i32, i32, i32) {
    %c0_i32 = arith.constant 0 : i32
    %c0_i32_0 = arith.constant 0 : i32
    %c0_i32_1 = arith.constant 0 : i32
    return %arg1, %c0_i32, %c0_i32_0 : i32, i32, i32
  }
  func.func @transform_6(%arg0: i32, %arg1: i32) -> (i32, i32, i32) {
    %c0_i32 = arith.constant 0 : i32
    %c0_i32_0 = arith.constant 0 : i32
    %c0_i32_1 = arith.constant 0 : i32
    return %arg1, %c0_i32, %c0_i32_0 : i32, i32, i32
  }
  func.func @transform_7(%arg0: i32, %arg1: i32) -> (i32, i32, i32) {
    %c0_i32 = arith.constant 0 : i32
    %c0_i32_0 = arith.constant 0 : i32
    %c0_i32_1 = arith.constant 0 : i32
    return %arg1, %c0_i32, %c0_i32_0 : i32, i32, i32
  }
  func.func @transform_8(%arg0: i32, %arg1: i32) -> (i32, i32, i32) {
    %c0_i32 = arith.constant 0 : i32
    %c0_i32_0 = arith.constant 0 : i32
    %c0_i32_1 = arith.constant 0 : i32
    return %arg1, %c0_i32, %c0_i32_0 : i32, i32, i32
  }
  func.func @transform_9(%arg0: i32, %arg1: i32) -> (i32, i32, i32) {
    %c0_i32 = arith.constant 0 : i32
    %c0_i32_0 = arith.constant 0 : i32
    %c0_i32_1 = arith.constant 0 : i32
    return %arg1, %c0_i32, %c0_i32_0 : i32, i32, i32
  }
  func.func @transform_10(%arg0: i32, %arg1: i32) -> (i32, i32, i32) {
    %c0_i32 = arith.constant 0 : i32
    %c0_i32_0 = arith.constant 0 : i32
    %c0_i32_1 = arith.constant 0 : i32
    return %arg1, %c0_i32, %c0_i32_0 : i32, i32, i32
  }
  func.func @transform_11(%arg0: i32, %arg1: i32) -> (i32, i32, i32) {
    %c0_i32 = arith.constant 0 : i32
    %c0_i32_0 = arith.constant 0 : i32
    %c0_i32_1 = arith.constant 0 : i32
    return %arg1, %c0_i32, %c0_i32_0 : i32, i32, i32
  }
  func.func @transform_12(%arg0: i32, %arg1: i32) -> (i32, i32, i32) {
    %c0_i32 = arith.constant 0 : i32
    %c0_i32_0 = arith.constant 0 : i32
    %c0_i32_1 = arith.constant 0 : i32
    return %arg1, %c0_i32, %c0_i32_0 : i32, i32, i32
  }
  func.func @transform_13(%arg0: i32, %arg1: i32) -> (i32, i32, i32) {
    %c0_i32 = arith.constant 0 : i32
    %c0_i32_0 = arith.constant 0 : i32
    %c0_i32_1 = arith.constant 0 : i32
    return %arg1, %c0_i32, %c0_i32_0 : i32, i32, i32
  }
  func.func @transform_14(%arg0: i32, %arg1: i32) -> (i32, i32) {
    %c0_i32 = arith.constant 0 : i32
    %c0_i32_0 = arith.constant 0 : i32
    return %arg0, %c0_i32 : i32, i32
  }
}

</mosaic_0001>

<llo_original>
// kernel: tpu_custom_call.1
$region0: #{tpu_custom_call.1}
  #allocation0 [shape = 'u32[]', space=smem, size = 0x4, offset = 0x4, fixed_abs, tag = 'smem constant byte address 0x4 - core index']
  #allocation1 [shape = 'u32[144,128]{1,0:T(1,128)}', space=vmem, size = 0x12000, scoped, tag = 'internal scratch']
  #allocation2 [shape = 'f32[32,256]{1,0:T(8,128)}', space=vmem, size = 0x8000, scoped, tag = 'scratch operand']
  #allocation3 [shape = 'bf16[32,256]{1,0:T(16,128)(2,1)}', space=vmem, size = 0x4000, scoped, tag = 'scratch operand']
  %s0 = inlined_call_operand.hbm [shape: f32[32,256], index: 0, kind: input, shape index: {}]
  %s1 = inlined_call_operand.hbm [shape: f32[4,8], index: 1, kind: input, shape index: {}]
  %s2 = inlined_call_operand.hbm [shape: bf16[2,256,768], index: 2, kind: input, shape index: {}]
  %s3 = inlined_call_operand.hbm [shape: f32[2,1,768], index: 3, kind: input, shape index: {}]
  %s4 = inlined_call_operand.hbm [shape: bf16[2,256,256], index: 4, kind: input, shape index: {}]
  %s5 = inlined_call_operand.vmem [shape: f32[2,1,256], index: 5, kind: input, shape index: {}]
  %s6 = inlined_call_operand.hbm [shape: bf16[2,256,512], index: 6, kind: input, shape index: {}]
  %s7 = inlined_call_operand.vmem [shape: f32[2,1,512], index: 7, kind: input, shape index: {}]
  %s8 = inlined_call_operand.hbm [shape: bf16[2,512,256], index: 8, kind: input, shape index: {}]
  %s9 = inlined_call_operand.vmem [shape: f32[2,1,256], index: 9, kind: input, shape index: {}]
  %s10 = inlined_call_operand.vmem [shape: f32[2,1,256], index: 10, kind: input, shape index: {}]
  %s11 = inlined_call_operand.vmem [shape: f32[2,1,256], index: 11, kind: input, shape index: {}]
  %s12 = inlined_call_operand.vmem [shape: f32[2,1,256], index: 12, kind: input, shape index: {}]
  %s13 = inlined_call_operand.vmem [shape: f32[2,1,256], index: 13, kind: input, shape index: {}]
  %s14 = inlined_call_operand.hbm [shape: f32[32,256], index: 14, kind: output, shape index: {}]
  %s15 = sld [smem:[#allocation0]]
  $region129: #{tpu_custom_call.1} parent=0
    _
  %s17 = ssub.s32 1, %s15
  %s18 = scalar_select 0, %s17, %s15
  $region1: #{tpu_custom_call.1} parent=0
    #allocation4 [shape = 'u8[32768]{0}', space=vmem, size = 0x8000, scoped, tag = 'input window, operand 0, single buffered']
    #allocation5 [shape = 's32[2]{0}', space=sflag, size = 0x8, scoped, tag = 'scoped memory for tpu_custom_call.1']
    #allocation6 [shape = 's32[2]{0}', space=sflag, size = 0x8, scoped, tag = 'scoped memory for tpu_custom_call.1']
    #allocation7 [shape = 'u8[2048]{0}', space=vmem, size = 0x800, scoped, tag = 'input window, operand 1, single buffered']
    #allocation8 [shape = 's32[1]{0}', space=sflag, size = 0x4, scoped, tag = 'scoped memory for tpu_custom_call.1']
    #allocation9 [shape = 'u8[786432]{0}', space=vmem, size = 0xc0000, scoped, tag = 'input window, operand 2']
    #allocation10 [shape = 'u8[6144]{0}', space=vmem, size = 0x1800, scoped, tag = 'input window, operand 3']
    #allocation11 [shape = 'u8[262144]{0}', space=vmem, size = 0x40000, scoped, tag = 'input window, operand 4']
    #allocation12 [shape = 'u8[524288]{0}', space=vmem, size = 0x80000, scoped, tag = 'input window, operand 6']
    #allocation13 [shape = 'u8[524288]{0}', space=vmem, size = 0x80000, scoped, tag = 'input window, operand 8']
    #allocation14 [shape = 'u8[32768]{0}', space=vmem, size = 0x8000, scoped, tag = 'output window, operand 0, single buffered']
    %19 = vsyncpa [#allocation5], 0
    %20 = vsyncpa [#allocation8], 0
    %21 = vsyncpa [#allocation6], 0
    loop: start=0, step=1, limit=4
    $region2: #{tpu_custom_call.1} parent=1 // loop_pre_header
      _
    $region3: #{tpu_custom_call.1} parent=1 // loop_header
      %s23 = sphi 0, %s27
      %p24 = scmp.ge.s32.totalorder %s23, 4
      %s30 = sphi 0, %s42
      %s31 = sphi 0, %s38
      %s32 = sphi 0, %s30
      %s33 = sphi 0, %s31
      %s34 = sphi 0, %s32
      %s35 = sphi 0, %s33
      %s45 = sphi 0, %s47
      %s48 = sphi 0, %s45
      %s49 = sphi 0, %s48
      %s65 = sphi 0, %s49
      %s71 = sphi 0, %s73
      %s74 = sphi 0, %s71
      %s75 = sphi 0, %s74
      %s91 = sphi 0, %s75
      %s97 = sphi 0, %s99
      %s100 = sphi 0, %s97
      %s101 = sphi 0, %s100
      %s117 = sphi 0, %s101
      %s123 = sphi 0, %s125
      %s126 = sphi 0, %s123
      %s127 = sphi 0, %s126
      %s143 = sphi 0, %s127
      %s149 = sphi 0, %s151
      %s152 = sphi 0, %s149
      %s153 = sphi 0, %s152
      %s169 = sphi 0, %s153
      %s175 = sphi 0, %s177
      %s178 = sphi 0, %s175
      %s179 = sphi 0, %s178
      %s195 = sphi 0, %s179
      %s201 = sphi 0, %s203
      %s204 = sphi 0, %s201
      %s205 = sphi 0, %s204
      %s221 = sphi 0, %s205
      %s227 = sphi 0, %s229
      %s230 = sphi 0, %s227
      %s231 = sphi 0, %s230
      %s247 = sphi 0, %s231
      %s253 = sphi 0, %s255
      %s256 = sphi 0, %s253
      %s257 = sphi 0, %s256
      %s273 = sphi 0, %s257
      %s279 = sphi 0, %s281
      %s282 = sphi 0, %s279
      %s283 = sphi 0, %s282
      %s299 = sphi 0, %s283
      %s305 = sphi 0, %s307
      %s308 = sphi 0, %s305
      %s309 = sphi 0, %s308
      %s325 = sphi 0, %s309
      %s331 = sphi 0, %s333
      %s334 = sphi 0, %s331
      %s335 = sphi 0, %s334
      %s351 = sphi 0, %s335
      %s357 = sphi 0, %s359
      %s360 = sphi 0, %s357
      %s361 = sphi 0, %s360
      %s377 = sphi 0, %s361
      %s383 = sphi 0, %s385
      %s386 = sphi 0, %s383
      %s387 = sphi 0, %s386
      %s403 = sphi 0, %s387
      %s409 = sphi 0, %s411
      %s412 = sphi 0, %s409
      %s413 = sphi 0, %s412
      %s429 = sphi 0, %s413
    $region4: #{tpu_custom_call.1} parent=1 // loop_header_branch
      %26 = sbr.rel (%p24) target = $region8
    $region5: #{tpu_custom_call.1} parent=1 // loop_body
      %s28 = ssub.s32 %s23, 1
      %s29 = ssub.s32 %s23, 2
      %s36 = sadd.s32 1, %s31
      %p37 = scmp.ge.s32.totalorder %s36, 2
      %s38 = scalar_select %p37, 0, %s36
      %s39 = sadd.s32 1, %s30
      %s40 = scalar_select %p37, %s39, %s30
      %p41 = scmp.ge.s32.totalorder %s40, 1
      %s42 = scalar_select %p41, 0, %s40
      %s43 = ssub.s32 %s30, %s42
      %p44 = scmp.eq.s32.totalorder %s43, 0
      %s46 = sadd.s32 %s45, 1
      %s47 = scalar_select %p44, %s45, %s46
      %p50 = pneg %p44
      %p51 = scmp.eq.s32.totalorder %s23, 1
      %p52 = por %p50, %p51
      %p53 = scmp.ne.s32.totalorder %s45, %s48
      %p54 = scmp.eq.s32.totalorder %s23, 0
      %p55 = por %p53, %p54
      %p56 = scmp.ne.s32.totalorder %s45, %s48
      %p57 = scmp.eq.s32.totalorder %s28, 1
      %p58 = por %p56, %p57
      %p59 = scmp.ne.s32.totalorder %s48, %s49
      %p60 = scmp.eq.s32.totalorder %s28, 0
      %p61 = por %p59, %p60
      %p62 = scmp.ne.s32.totalorder %s48, %s49
      %p63 = scmp.eq.s32.totalorder %s29, 1
      %p64 = por %p62, %p63
      %p66 = scmp.ne.s32.totalorder %s49, %s65
      %p67 = scmp.eq.s32.totalorder %s29, 0
      %p68 = por %p66, %p67
      %s69 = ssub.s32 %s30, %s42
      %p70 = scmp.eq.s32.totalorder %s69, 0
      %s72 = sadd.s32 %s71, 1
      %s73 = scalar_select %p70, %s71, %s72
      %p76 = pneg %p70
      %p77 = scmp.eq.s32.totalorder %s23, 1
      %p78 = por %p76, %p77
      %p79 = scmp.ne.s32.totalorder %s71, %s74
      %p80 = scmp.eq.s32.totalorder %s23, 0
      %p81 = por %p79, %p80
      %p82 = scmp.ne.s32.totalorder %s71, %s74
      %p83 = scmp.eq.s32.totalorder %s28, 1
      %p84 = por %p82, %p83
      %p85 = scmp.ne.s32.totalorder %s74, %s75
      %p86 = scmp.eq.s32.totalorder %s28, 0
      %p87 = por %p85, %p86
      %p88 = scmp.ne.s32.totalorder %s74, %s75
      %p89 = scmp.eq.s32.totalorder %s29, 1
      %p90 = por %p88, %p89
      %p92 = scmp.ne.s32.totalorder %s75, %s91
      %p93 = scmp.eq.s32.totalorder %s29, 0
      %p94 = por %p92, %p93
      %s95 = ssub.s32 %s31, %s38
      %p96 = scmp.eq.s32.totalorder %s95, 0
      %s98 = sadd.s32 %s97, 1
      %s99 = scalar_select %p96, %s97, %s98
      %p102 = pneg %p96
      %p103 = scmp.eq.s32.totalorder %s23, 1
      %p104 = por %p102, %p103
      %p105 = scmp.ne.s32.totalorder %s97, %s100
      %p106 = scmp.eq.s32.totalorder %s23, 0
      %p107 = por %p105, %p106
      %p108 = scmp.ne.s32.totalorder %s97, %s100
      %p109 = scmp.eq.s32.totalorder %s28, 1
      %p110 = por %p108, %p109
      %p111 = scmp.ne.s32.totalorder %s100, %s101
      %p112 = scmp.eq.s32.totalorder %s28, 0
      %p113 = por %p111, %p112
      %p114 = scmp.ne.s32.totalorder %s100, %s101
      %p115 = scmp.eq.s32.totalorder %s29, 1
      %p116 = por %p114, %p115
      %p118 = scmp.ne.s32.totalorder %s101, %s117
      %p119 = scmp.eq.s32.totalorder %s29, 0
      %p120 = por %p118, %p119
      %s121 = ssub.s32 %s31, %s38
      %p122 = scmp.eq.s32.totalorder %s121, 0
      %s124 = sadd.s32 %s123, 1
      %s125 = scalar_select %p122, %s123, %s124
      %p128 = pneg %p122
      %p129 = scmp.eq.s32.totalorder %s23, 1
      %p130 = por %p128, %p129
      %p131 = scmp.ne.s32.totalorder %s123, %s126
      %p132 = scmp.eq.s32.totalorder %s23, 0
      %p133 = por %p131, %p132
      %p134 = scmp.ne.s32.totalorder %s123, %s126
      %p135 = scmp.eq.s32.totalorder %s28, 1
      %p136 = por %p134, %p135
      %p137 = scmp.ne.s32.totalorder %s126, %s127
      %p138 = scmp.eq.s32.totalorder %s28, 0
      %p139 = por %p137, %p138
      %p140 = scmp.ne.s32.totalorder %s126, %s127
      %p141 = scmp.eq.s32.totalorder %s29, 1
      %p142 = por %p140, %p141
      %p144 = scmp.ne.s32.totalorder %s127, %s143
      %p145 = scmp.eq.s32.totalorder %s29, 0
      %p146 = por %p144, %p145
      %s147 = ssub.s32 %s31, %s38
      %p148 = scmp.eq.s32.totalorder %s147, 0
      %s150 = sadd.s32 %s149, 1
      %s151 = scalar_select %p148, %s149, %s150
      %p154 = pneg %p148
      %p155 = scmp.eq.s32.totalorder %s23, 1
      %p156 = por %p154, %p155
      %p157 = scmp.ne.s32.totalorder %s149, %s152
      %p158 = scmp.eq.s32.totalorder %s23, 0
      %p159 = por %p157, %p158
      %p160 = scmp.ne.s32.totalorder %s149, %s152
      %p161 = scmp.eq.s32.totalorder %s28, 1
      %p162 = por %p160, %p161
      %p163 = scmp.ne.s32.totalorder %s152, %s153
      %p164 = scmp.eq.s32.totalorder %s28, 0
      %p165 = por %p163, %p164
      %p166 = scmp.ne.s32.totalorder %s152, %s153
      %p167 = scmp.eq.s32.totalorder %s29, 1
      %p168 = por %p166, %p167
      %p170 = scmp.ne.s32.totalorder %s153, %s169
      %p171 = scmp.eq.s32.totalorder %s29, 0
      %p172 = por %p170, %p171
      %s173 = ssub.s32 %s31, %s38
      %p174 = scmp.eq.s32.totalorder %s173, 0
      %s176 = sadd.s32 %s175, 1
      %s177 = scalar_select %p174, %s175, %s176
      %p180 = pneg %p174
      %p181 = scmp.eq.s32.totalorder %s23, 1
      %p182 = por %p180, %p181
      %p183 = scmp.ne.s32.totalorder %s175, %s178
      %p184 = scmp.eq.s32.totalorder %s23, 0
      %p185 = por %p183, %p184
      %p186 = scmp.ne.s32.totalorder %s175, %s178
      %p187 = scmp.eq.s32.totalorder %s28, 1
      %p188 = por %p186, %p187
      %p189 = scmp.ne.s32.totalorder %s178, %s179
      %p190 = scmp.eq.s32.totalorder %s28, 0
      %p191 = por %p189, %p190
      %p192 = scmp.ne.s32.totalorder %s178, %s179
      %p193 = scmp.eq.s32.totalorder %s29, 1
      %p194 = por %p192, %p193
      %p196 = scmp.ne.s32.totalorder %s179, %s195
      %p197 = scmp.eq.s32.totalorder %s29, 0
      %p198 = por %p196, %p197
      %s199 = ssub.s32 %s31, %s38
      %p200 = scmp.eq.s32.totalorder %s199, 0
      %s202 = sadd.s32 %s201, 1
      %s203 = scalar_select %p200, %s201, %s202
      %p206 = pneg %p200
      %p207 = scmp.eq.s32.totalorder %s23, 1
      %p208 = por %p206, %p207
      %p209 = scmp.ne.s32.totalorder %s201, %s204
      %p210 = scmp.eq.s32.totalorder %s23, 0
      %p211 = por %p209, %p210
      %p212 = scmp.ne.s32.totalorder %s201, %s204
      %p213 = scmp.eq.s32.totalorder %s28, 1
      %p214 = por %p212, %p213
      %p215 = scmp.ne.s32.totalorder %s204, %s205
      %p216 = scmp.eq.s32.totalorder %s28, 0
      %p217 = por %p215, %p216
      %p218 = scmp.ne.s32.totalorder %s204, %s205
      %p219 = scmp.eq.s32.totalorder %s29, 1
      %p220 = por %p218, %p219
      %p222 = scmp.ne.s32.totalorder %s205, %s221
      %p223 = scmp.eq.s32.totalorder %s29, 0
      %p224 = por %p222, %p223
      %s225 = ssub.s32 %s31, %s38
      %p226 = scmp.eq.s32.totalorder %s225, 0
      %s228 = sadd.s32 %s227, 1
      %s229 = scalar_select %p226, %s227, %s228
      %p232 = pneg %p226
      %p233 = scmp.eq.s32.totalorder %s23, 1
      %p234 = por %p232, %p233
      %p235 = scmp.ne.s32.totalorder %s227, %s230
      %p236 = scmp.eq.s32.totalorder %s23, 0
      %p237 = por %p235, %p236
      %p238 = scmp.ne.s32.totalorder %s227, %s230
      %p239 = scmp.eq.s32.totalorder %s28, 1
      %p240 = por %p238, %p239
      %p241 = scmp.ne.s32.totalorder %s230, %s231
      %p242 = scmp.eq.s32.totalorder %s28, 0
      %p243 = por %p241, %p242
      %p244 = scmp.ne.s32.totalorder %s230, %s231
      %p245 = scmp.eq.s32.totalorder %s29, 1
      %p246 = por %p244, %p245
      %p248 = scmp.ne.s32.totalorder %s231, %s247
      %p249 = scmp.eq.s32.totalorder %s29, 0
      %p250 = por %p248, %p249
      %s251 = ssub.s32 %s31, %s38
      %p252 = scmp.eq.s32.totalorder %s251, 0
      %s254 = sadd.s32 %s253, 1
      %s255 = scalar_select %p252, %s253, %s254
      %p258 = pneg %p252
      %p259 = scmp.eq.s32.totalorder %s23, 1
      %p260 = por %p258, %p259
      %p261 = scmp.ne.s32.totalorder %s253, %s256
      %p262 = scmp.eq.s32.totalorder %s23, 0
      %p263 = por %p261, %p262
      %p264 = scmp.ne.s32.totalorder %s253, %s256
      %p265 = scmp.eq.s32.totalorder %s28, 1
      %p266 = por %p264, %p265
      %p267 = scmp.ne.s32.totalorder %s256, %s257
      %p268 = scmp.eq.s32.totalorder %s28, 0
      %p269 = por %p267, %p268
      %p270 = scmp.ne.s32.totalorder %s256, %s257
      %p271 = scmp.eq.s32.totalorder %s29, 1
      %p272 = por %p270, %p271
      %p274 = scmp.ne.s32.totalorder %s257, %s273
      %p275 = scmp.eq.s32.totalorder %s29, 0
      %p276 = por %p274, %p275
      %s277 = ssub.s32 %s31, %s38
      %p278 = scmp.eq.s32.totalorder %s277, 0
      %s280 = sadd.s32 %s279, 1
      %s281 = scalar_select %p278, %s279, %s280
      %p284 = pneg %p278
      %p285 = scmp.eq.s32.totalorder %s23, 1
      %p286 = por %p284, %p285
      %p287 = scmp.ne.s32.totalorder %s279, %s282
      %p288 = scmp.eq.s32.totalorder %s23, 0
      %p289 = por %p287, %p288
      %p290 = scmp.ne.s32.totalorder %s279, %s282
      %p291 = scmp.eq.s32.totalorder %s28, 1
      %p292 = por %p290, %p291
      %p293 = scmp.ne.s32.totalorder %s282, %s283
      %p294 = scmp.eq.s32.totalorder %s28, 0
      %p295 = por %p293, %p294
      %p296 = scmp.ne.s32.totalorder %s282, %s283
      %p297 = scmp.eq.s32.totalorder %s29, 1
      %p298 = por %p296, %p297
      %p300 = scmp.ne.s32.totalorder %s283, %s299
      %p301 = scmp.eq.s32.totalorder %s29, 0
      %p302 = por %p300, %p301
      %s303 = ssub.s32 %s31, %s38
      %p304 = scmp.eq.s32.totalorder %s303, 0
      %s306 = sadd.s32 %s305, 1
      %s307 = scalar_select %p304, %s305, %s306
      %p310 = pneg %p304
      %p311 = scmp.eq.s32.totalorder %s23, 1
      %p312 = por %p310, %p311
      %p313 = scmp.ne.s32.totalorder %s305, %s308
      %p314 = scmp.eq.s32.totalorder %s23, 0
      %p315 = por %p313, %p314
      %p316 = scmp.ne.s32.totalorder %s305, %s308
      %p317 = scmp.eq.s32.totalorder %s28, 1
      %p318 = por %p316, %p317
      %p319 = scmp.ne.s32.totalorder %s308, %s309
      %p320 = scmp.eq.s32.totalorder %s28, 0
      %p321 = por %p319, %p320
      %p322 = scmp.ne.s32.totalorder %s308, %s309
      %p323 = scmp.eq.s32.totalorder %s29, 1
      %p324 = por %p322, %p323
      %p326 = scmp.ne.s32.totalorder %s309, %s325
      %p327 = scmp.eq.s32.totalorder %s29, 0
      %p328 = por %p326, %p327
      %s329 = ssub.s32 %s31, %s38
      %p330 = scmp.eq.s32.totalorder %s329, 0
      %s332 = sadd.s32 %s331, 1
      %s333 = scalar_select %p330, %s331, %s332
      %p336 = pneg %p330
      %p337 = scmp.eq.s32.totalorder %s23, 1
      %p338 = por %p336, %p337
      %p339 = scmp.ne.s32.totalorder %s331, %s334
      %p340 = scmp.eq.s32.totalorder %s23, 0
      %p341 = por %p339, %p340
      %p342 = scmp.ne.s32.totalorder %s331, %s334
      %p343 = scmp.eq.s32.totalorder %s28, 1
      %p344 = por %p342, %p343
      %p345 = scmp.ne.s32.totalorder %s334, %s335
      %p346 = scmp.eq.s32.totalorder %s28, 0
      %p347 = por %p345, %p346
      %p348 = scmp.ne.s32.totalorder %s334, %s335
      %p349 = scmp.eq.s32.totalorder %s29, 1
      %p350 = por %p348, %p349
      %p352 = scmp.ne.s32.totalorder %s335, %s351
      %p353 = scmp.eq.s32.totalorder %s29, 0
      %p354 = por %p352, %p353
      %s355 = ssub.s32 %s31, %s38
      %p356 = scmp.eq.s32.totalorder %s355, 0
      %s358 = sadd.s32 %s357, 1
      %s359 = scalar_select %p356, %s357, %s358
      %p362 = pneg %p356
      %p363 = scmp.eq.s32.totalorder %s23, 1
      %p364 = por %p362, %p363
      %p365 = scmp.ne.s32.totalorder %s357, %s360
      %p366 = scmp.eq.s32.totalorder %s23, 0
      %p367 = por %p365, %p366
      %p368 = scmp.ne.s32.totalorder %s357, %s360
      %p369 = scmp.eq.s32.totalorder %s28, 1
      %p370 = por %p368, %p369
      %p371 = scmp.ne.s32.totalorder %s360, %s361
      %p372 = scmp.eq.s32.totalorder %s28, 0
      %p373 = por %p371, %p372
      %p374 = scmp.ne.s32.totalorder %s360, %s361
      %p375 = scmp.eq.s32.totalorder %s29, 1
      %p376 = por %p374, %p375
      %p378 = scmp.ne.s32.totalorder %s361, %s377
      %p379 = scmp.eq.s32.totalorder %s29, 0
      %p380 = por %p378, %p379
      %s381 = ssub.s32 %s31, %s38
      %p382 = scmp.eq.s32.totalorder %s381, 0
      %s384 = sadd.s32 %s383, 1
      %s385 = scalar_select %p382, %s383, %s384
      %p388 = pneg %p382
      %p389 = scmp.eq.s32.totalorder %s23, 1
      %p390 = por %p388, %p389
      %p391 = scmp.ne.s32.totalorder %s383, %s386
      %p392 = scmp.eq.s32.totalorder %s23, 0
      %p393 = por %p391, %p392
      %p394 = scmp.ne.s32.totalorder %s383, %s386
      %p395 = scmp.eq.s32.totalorder %s28, 1
      %p396 = por %p394, %p395
      %p397 = scmp.ne.s32.totalorder %s386, %s387
      %p398 = scmp.eq.s32.totalorder %s28, 0
      %p399 = por %p397, %p398
      %p400 = scmp.ne.s32.totalorder %s386, %s387
      %p401 = scmp.eq.s32.totalorder %s29, 1
      %p402 = por %p400, %p401
      %p404 = scmp.ne.s32.totalorder %s387, %s403
      %p405 = scmp.eq.s32.totalorder %s29, 0
      %p406 = por %p404, %p405
      %s407 = ssub.s32 %s30, %s42
      %p408 = scmp.eq.s32.totalorder %s407, 0
      %s410 = sadd.s32 %s409, 1
      %s411 = scalar_select %p408, %s409, %s410
      %p414 = pneg %p408
      %p415 = scmp.eq.s32.totalorder %s23, 1
      %p416 = por %p414, %p415
      %p417 = scmp.ne.s32.totalorder %s409, %s412
      %p418 = scmp.eq.s32.totalorder %s23, 0
      %p419 = por %p417, %p418
      %p420 = scmp.ne.s32.totalorder %s409, %s412
      %p421 = scmp.eq.s32.totalorder %s28, 1
      %p422 = por %p420, %p421
      %p423 = scmp.ne.s32.totalorder %s412, %s413
      %p424 = scmp.eq.s32.totalorder %s28, 0
      %p425 = por %p423, %p424
      %p426 = scmp.ne.s32.totalorder %s412, %s413
      %p427 = scmp.eq.s32.totalorder %s29, 1
      %p428 = por %p426, %p427
      %p430 = scmp.ne.s32.totalorder %s413, %s429
      %p431 = scmp.eq.s32.totalorder %s29, 0
      %p432 = por %p430, %p431
      %p433 = scmp.le.s32.totalorder 1, %s23
      %p434 = scmp.lt.s32.totalorder %s23, 3
      %p435 = pnand %p433, %p434
      %p436 = pneg %p435
      // Predicated region
      $region9: #{tpu_custom_call.1} parent=5 // pred_check
        _
      $region10: #{tpu_custom_call.1} parent=5 // pred_check_branch
        %438 = sbr.rel (%p435) target = $region12
      $region11: #{tpu_custom_call.1} parent=5 // pred_region
        %s439 = ssub.s32 %s23, 1
        // Predicated region
        $region13: #{tpu_custom_call.1} parent=11 // pred_check
          %p440 = pneg %p61
        $region14: #{tpu_custom_call.1} parent=11 // pred_check_branch
          %442 = sbr.rel (%p440) target = $region16
        $region15: #{tpu_custom_call.1} parent=11 // pred_region
          %s443 = smul.u32 4, %s32
          %s445 = ssub.s32 1024, 1024
          %446 = vsyncadd [#allocation5], %s445
          %s447 = smul.addr %s443, 2
          %s448 = smul.addr %s447, 128
          %s449 = scalar_lea.hbm %s0, %s448
          %s450 = sshll.u32 [#allocation4], 4
          %s451 = int_to_ptr.vmem [resolvable:$true] %s450
          %456 = dma.hbm_to_vmem [thread:$0]  %s449, 1024, %s451, [#allocation5], 256, 256, 16
        $region16: #{tpu_custom_call.1} parent=11 // pred_fallthru
          _
        // Predicated region
        $region17: #{tpu_custom_call.1} parent=11 // pred_check
          %p457 = pneg %p87
        $region18: #{tpu_custom_call.1} parent=11 // pred_check_branch
          %459 = sbr.rel (%p457) target = $region20
        $region19: #{tpu_custom_call.1} parent=11 // pred_region
          %s461 = ssub.s32 64, 64
          %462 = vsyncadd [#allocation8], %s461
          %s463 = smul.addr %s32, 64
          %s464 = scalar_lea.hbm %s1, %s463
          %s466 = sshll.u32 [#allocation7], 4
          %s467 = int_to_ptr.vmem [resolvable:$true] %s466
          %469 = dma.hbm_to_vmem [thread:$0]  %s464, 64, %s467, [#allocation8]
        $region20: #{tpu_custom_call.1} parent=11 // pred_fallthru
          _
      $region12: #{tpu_custom_call.1} parent=5 // pred_fallthru
        _
      %p470 = scmp.lt.s32.totalorder %s23, 2
      // Predicated region
      $region21: #{tpu_custom_call.1} parent=5 // pred_check
        %p471 = pneg %p470
      $region22: #{tpu_custom_call.1} parent=5 // pred_check_branch
        %473 = sbr.rel (%p471) target = $region24
      $region23: #{tpu_custom_call.1} parent=5 // pred_region
        // Predicated region
        $region25: #{tpu_custom_call.1} parent=23 // pred_check
          %p474 = pneg %p107
        $region26: #{tpu_custom_call.1} parent=23 // pred_check_branch
          %476 = sbr.rel (%p474) target = $region28
        $region27: #{tpu_custom_call.1} parent=23 // pred_region
          %s477 = sand.u32 %s23, 1
          %s478 = scalar_lea.sflag [#allocation5], %s477
          %s479 = sand.u32 %s97, 1
          %s480 = smul.addr %s479, 768
          %s481 = scalar_lea.vmem [#allocation9], %s480
          %s483 = ssub.s32 12288, 12288
          %484 = vsyncadd %s478, %s483
          %s485 = smul.addr %s31, 192
          %s486 = smul.addr %s485, 64
          %s487 = scalar_lea.hbm %s2, %s486
          %s488 = sshll.u32 %s481, 4
          %s489 = int_to_ptr.vmem [resolvable:$true] %s488
          %494 = dma.hbm_to_vmem [thread:$0]  %s487, 12288, %s489, %s478, 384, 384, 24
        $region28: #{tpu_custom_call.1} parent=23 // pred_fallthru
          _
        // Predicated region
        $region29: #{tpu_custom_call.1} parent=23 // pred_check
          %p495 = pneg %p133
        $region30: #{tpu_custom_call.1} parent=23 // pred_check_branch
          %497 = sbr.rel (%p495) target = $region32
        $region31: #{tpu_custom_call.1} parent=23 // pred_region
          %s498 = sand.u32 %s23, 1
          %s499 = scalar_lea.sflag [#allocation5], %s498
          %s500 = sand.u32 %s123, 1
          %s501 = smul.addr %s500, 6
          %s502 = scalar_lea.vmem [#allocation10], %s501
          %s504 = ssub.s32 96, 96
          %505 = vsyncadd %s499, %s504
          %s506 = smul.addr %s31, 6
          %s507 = smul.addr %s506, 16
          %s508 = scalar_lea.hbm %s3, %s507
          %s510 = sshll.u32 %s502, 4
          %s511 = int_to_ptr.vmem [resolvable:$true] %s510
          %513 = dma.hbm_to_vmem [thread:$0]  %s508, 96, %s511, %s499
        $region32: #{tpu_custom_call.1} parent=23 // pred_fallthru
          _
        // Predicated region
        $region33: #{tpu_custom_call.1} parent=23 // pred_check
          %p514 = pneg %p159
        $region34: #{tpu_custom_call.1} parent=23 // pred_check_branch
          %516 = sbr.rel (%p514) target = $region36
        $region35: #{tpu_custom_call.1} parent=23 // pred_region
          %s517 = sand.u32 %s23, 1
          %s518 = scalar_lea.sflag [#allocation5], %s517
          %s519 = sand.u32 %s149, 1
          %s520 = smul.addr %s519, 256
          %s521 = scalar_lea.vmem [#allocation11], %s520
          %s523 = ssub.s32 4096, 4096
          %524 = vsyncadd %s518, %s523
          %s525 = smul.addr %s31, 64
          %s526 = smul.addr %s525, 64
          %s527 = scalar_lea.hbm %s4, %s526
          %s528 = sshll.u32 %s521, 4
          %s529 = int_to_ptr.vmem [resolvable:$true] %s528
          %534 = dma.hbm_to_vmem [thread:$0]  %s527, 4096, %s529, %s518, 128, 128, 8
        $region36: #{tpu_custom_call.1} parent=23 // pred_fallthru
          _
        // Predicated region
        $region37: #{tpu_custom_call.1} parent=23 // pred_check
          %p535 = pneg %p185
        $region38: #{tpu_custom_call.1} parent=23 // pred_check_branch
          %537 = sbr.rel (%p535) target = $region40
        $region39: #{tpu_custom_call.1} parent=23 // pred_region
          %p538 = scmp.lt.s32.totalorder %s31, 1
          %s539 = scalar_select %p538, %s31, 1
          %s540 = smul.addr %s539, 2
          %s541 = scalar_lea.vmem %s5, %s540
        $region40: #{tpu_custom_call.1} parent=23 // pred_fallthru
          _
        // Predicated region
        $region41: #{tpu_custom_call.1} parent=23 // pred_check
          %p542 = pneg %p211
        $region42: #{tpu_custom_call.1} parent=23 // pred_check_branch
          %544 = sbr.rel (%p542) target = $region44
        $region43: #{tpu_custom_call.1} parent=23 // pred_region
          %s545 = sand.u32 %s23, 1
          %s546 = scalar_lea.sflag [#allocation5], %s545
          %s547 = sand.u32 %s201, 1
          %s548 = smul.addr %s547, 512
          %s549 = scalar_lea.vmem [#allocation12], %s548
          %s551 = ssub.s32 8192, 8192
          %552 = vsyncadd %s546, %s551
          %s553 = smul.addr %s31, 128
          %s554 = smul.addr %s553, 64
          %s555 = scalar_lea.hbm %s6, %s554
          %s556 = sshll.u32 %s549, 4
          %s557 = int_to_ptr.vmem [resolvable:$true] %s556
          %562 = dma.hbm_to_vmem [thread:$0]  %s555, 8192, %s557, %s546, 256, 256, 16
        $region44: #{tpu_custom_call.1} parent=23 // pred_fallthru
          _
        // Predicated region
        $region45: #{tpu_custom_call.1} parent=23 // pred_check
          %p563 = pneg %p237
        $region46: #{tpu_custom_call.1} parent=23 // pred_check_branch
          %565 = sbr.rel (%p563) target = $region48
        $region47: #{tpu_custom_call.1} parent=23 // pred_region
          %p566 = scmp.lt.s32.totalorder %s31, 1
          %s567 = scalar_select %p566, %s31, 1
          %s568 = smul.addr %s567, 4
          %s569 = scalar_lea.vmem %s7, %s568
        $region48: #{tpu_custom_call.1} parent=23 // pred_fallthru
          _
        // Predicated region
        $region49: #{tpu_custom_call.1} parent=23 // pred_check
          %p570 = pneg %p263
        $region50: #{tpu_custom_call.1} parent=23 // pred_check_branch
          %572 = sbr.rel (%p570) target = $region52
        $region51: #{tpu_custom_call.1} parent=23 // pred_region
          %s573 = sand.u32 %s23, 1
          %s574 = scalar_lea.sflag [#allocation5], %s573
          %s575 = sand.u32 %s253, 1
          %s576 = smul.addr %s575, 512
          %s577 = scalar_lea.vmem [#allocation13], %s576
          %s579 = ssub.s32 8192, 8192
          %580 = vsyncadd %s574, %s579
          %s581 = smul.addr %s31, 128
          %s582 = smul.addr %s581, 64
          %s583 = scalar_lea.hbm %s8, %s582
          %s584 = sshll.u32 %s577, 4
          %s585 = int_to_ptr.vmem [resolvable:$true] %s584
          %590 = dma.hbm_to_vmem [thread:$0]  %s583, 8192, %s585, %s574, 128, 128, 8
        $region52: #{tpu_custom_call.1} parent=23 // pred_fallthru
          _
        // Predicated region
        $region53: #{tpu_custom_call.1} parent=23 // pred_check
          %p591 = pneg %p289
        $region54: #{tpu_custom_call.1} parent=23 // pred_check_branch
          %593 = sbr.rel (%p591) target = $region56
        $region55: #{tpu_custom_call.1} parent=23 // pred_region
          %p594 = scmp.lt.s32.totalorder %s31, 1
          %s595 = scalar_select %p594, %s31, 1
          %s596 = smul.addr %s595, 2
          %s597 = scalar_lea.vmem %s9, %s596
        $region56: #{tpu_custom_call.1} parent=23 // pred_fallthru
          _
        // Predicated region
        $region57: #{tpu_custom_call.1} parent=23 // pred_check
          %p598 = pneg %p315
        $region58: #{tpu_custom_call.1} parent=23 // pred_check_branch
          %600 = sbr.rel (%p598) target = $region60
        $region59: #{tpu_custom_call.1} parent=23 // pred_region
          %p601 = scmp.lt.s32.totalorder %s31, 1
          %s602 = scalar_select %p601, %s31, 1
          %s603 = smul.addr %s602, 2
          %s604 = scalar_lea.vmem %s10, %s603
        $region60: #{tpu_custom_call.1} parent=23 // pred_fallthru
          _
        // Predicated region
        $region61: #{tpu_custom_call.1} parent=23 // pred_check
          %p605 = pneg %p341
        $region62: #{tpu_custom_call.1} parent=23 // pred_check_branch
          %607 = sbr.rel (%p605) target = $region64
        $region63: #{tpu_custom_call.1} parent=23 // pred_region
          %p608 = scmp.lt.s32.totalorder %s31, 1
          %s609 = scalar_select %p608, %s31, 1
          %s610 = smul.addr %s609, 2
          %s611 = scalar_lea.vmem %s11, %s610
        $region64: #{tpu_custom_call.1} parent=23 // pred_fallthru
          _
        // Predicated region
        $region65: #{tpu_custom_call.1} parent=23 // pred_check
          %p612 = pneg %p367
        $region66: #{tpu_custom_call.1} parent=23 // pred_check_branch
          %614 = sbr.rel (%p612) target = $region68
        $region67: #{tpu_custom_call.1} parent=23 // pred_region
          %p615 = scmp.lt.s32.totalorder %s31, 1
          %s616 = scalar_select %p615, %s31, 1
          %s617 = smul.addr %s616, 2
          %s618 = scalar_lea.vmem %s12, %s617
        $region68: #{tpu_custom_call.1} parent=23 // pred_fallthru
          _
        // Predicated region
        $region69: #{tpu_custom_call.1} parent=23 // pred_check
          %p619 = pneg %p393
        $region70: #{tpu_custom_call.1} parent=23 // pred_check_branch
          %621 = sbr.rel (%p619) target = $region72
        $region71: #{tpu_custom_call.1} parent=23 // pred_region
          %p622 = scmp.lt.s32.totalorder %s31, 1
          %s623 = scalar_select %p622, %s31, 1
          %s624 = smul.addr %s623, 2
          %s625 = scalar_lea.vmem %s13, %s624
        $region72: #{tpu_custom_call.1} parent=23 // pred_fallthru
          _
      $region24: #{tpu_custom_call.1} parent=5 // pred_fallthru
        _
      %p626 = scmp.le.s32.totalorder 1, %s23
      %p627 = scmp.lt.s32.totalorder %s23, 3
      %p628 = pnand %p626, %p627
      %p629 = pneg %p628
      // Predicated region
      $region73: #{tpu_custom_call.1} parent=5 // pred_check
        _
      $region74: #{tpu_custom_call.1} parent=5 // pred_check_branch
        %631 = sbr.rel (%p628) target = $region76
      $region75: #{tpu_custom_call.1} parent=5 // pred_region
        %s632 = ssub.s32 %s23, 1
        // Predicated region
        $region77: #{tpu_custom_call.1} parent=75 // pred_check
          %p633 = pneg %p61
        $region78: #{tpu_custom_call.1} parent=75 // pred_check_branch
          %635 = sbr.rel (%p633) target = $region80
        $region79: #{tpu_custom_call.1} parent=75 // pred_region
          %636 = dma.done [#allocation5], 1024
        $region80: #{tpu_custom_call.1} parent=75 // pred_fallthru
          _
        // Predicated region
        $region81: #{tpu_custom_call.1} parent=75 // pred_check
          %p637 = pneg %p87
        $region82: #{tpu_custom_call.1} parent=75 // pred_check_branch
          %639 = sbr.rel (%p637) target = $region84
        $region83: #{tpu_custom_call.1} parent=75 // pred_region
          %640 = dma.done [#allocation8], 64
        $region84: #{tpu_custom_call.1} parent=75 // pred_fallthru
          _
        %s641 = sand.u32 %s28, 1
        %s642 = scalar_lea.sflag [#allocation5], %s641
        %s643 = sand.u32 %s100, 1
        %s644 = smul.addr %s643, 768
        %s645 = scalar_lea.vmem [#allocation9], %s644
        // Predicated region
        $region85: #{tpu_custom_call.1} parent=75 // pred_check
          %p646 = pneg %p113
        $region86: #{tpu_custom_call.1} parent=75 // pred_check_branch
          %648 = sbr.rel (%p646) target = $region88
        $region87: #{tpu_custom_call.1} parent=75 // pred_region
          %649 = dma.done %s642, 12288
        $region88: #{tpu_custom_call.1} parent=75 // pred_fallthru
          _
        %s650 = sand.u32 %s28, 1
        %s651 = scalar_lea.sflag [#allocation5], %s650
        %s652 = sand.u32 %s126, 1
        %s653 = smul.addr %s652, 6
        %s654 = scalar_lea.vmem [#allocation10], %s653
        // Predicated region
        $region89: #{tpu_custom_call.1} parent=75 // pred_check
          %p655 = pneg %p139
        $region90: #{tpu_custom_call.1} parent=75 // pred_check_branch
          %657 = sbr.rel (%p655) target = $region92
        $region91: #{tpu_custom_call.1} parent=75 // pred_region
          %658 = dma.done %s651, 96
        $region92: #{tpu_custom_call.1} parent=75 // pred_fallthru
          _
        %s659 = sand.u32 %s28, 1
        %s660 = scalar_lea.sflag [#allocation5], %s659
        %s661 = sand.u32 %s152, 1
        %s662 = smul.addr %s661, 256
        %s663 = scalar_lea.vmem [#allocation11], %s662
        // Predicated region
        $region93: #{tpu_custom_call.1} parent=75 // pred_check
          %p664 = pneg %p165
        $region94: #{tpu_custom_call.1} parent=75 // pred_check_branch
          %666 = sbr.rel (%p664) target = $region96
        $region95: #{tpu_custom_call.1} parent=75 // pred_region
          %667 = dma.done %s660, 4096
        $region96: #{tpu_custom_call.1} parent=75 // pred_fallthru
          _
        %s668 = sand.u32 %s28, 1
        %s669 = scalar_lea.sflag [#allocation5], %s668
        %s670 = sand.u32 %s204, 1
        %s671 = smul.addr %s670, 512
        %s672 = scalar_lea.vmem [#allocation12], %s671
        // Predicated region
        $region97: #{tpu_custom_call.1} parent=75 // pred_check
          %p673 = pneg %p217
        $region98: #{tpu_custom_call.1} parent=75 // pred_check_branch
          %675 = sbr.rel (%p673) target = $region100
        $region99: #{tpu_custom_call.1} parent=75 // pred_region
          %676 = dma.done %s669, 8192
        $region100: #{tpu_custom_call.1} parent=75 // pred_fallthru
          _
        %s677 = sand.u32 %s28, 1
        %s678 = scalar_lea.sflag [#allocation5], %s677
        %s679 = sand.u32 %s256, 1
        %s680 = smul.addr %s679, 512
        %s681 = scalar_lea.vmem [#allocation13], %s680
        // Predicated region
        $region101: #{tpu_custom_call.1} parent=75 // pred_check
          %p682 = pneg %p269
        $region102: #{tpu_custom_call.1} parent=75 // pred_check_branch
          %684 = sbr.rel (%p682) target = $region104
        $region103: #{tpu_custom_call.1} parent=75 // pred_region
          %685 = dma.done %s678, 8192
        $region104: #{tpu_custom_call.1} parent=75 // pred_fallthru
          _
        %p686 = pneg %p61
        %p687 = pneg %p58
        %p688 = pneg %p87
        %p689 = pneg %p84
        %s690 = sand.u32 %s28, 1
        %s691 = scalar_lea.sflag [#allocation5], %s690
        %s692 = sand.u32 %s100, 1
        %s693 = smul.addr %s692, 768
        %s694 = scalar_lea.vmem [#allocation9], %s693
        %p695 = pneg %p113
        %p696 = pneg %p110
        %s697 = sand.u32 %s28, 1
        %s698 = scalar_lea.sflag [#allocation5], %s697
        %s699 = sand.u32 %s126, 1
        %s700 = smul.addr %s699, 6
        %s701 = scalar_lea.vmem [#allocation10], %s700
        %p702 = pneg %p139
        %p703 = pneg %p136
        %s704 = sand.u32 %s28, 1
        %s705 = scalar_lea.sflag [#allocation5], %s704
        %s706 = sand.u32 %s152, 1
        %s707 = smul.addr %s706, 256
        %s708 = scalar_lea.vmem [#allocation11], %s707
        %p709 = pneg %p165
        %p710 = pneg %p162
        %p711 = scmp.lt.s32.totalorder %s33, 1
        %s712 = scalar_select %p711, %s33, 1
        %s713 = smul.addr %s712, 2
        %s714 = scalar_lea.vmem %s5, %s713
        %p715 = pneg %p191
        %p716 = pneg %p188
        %s717 = sand.u32 %s28, 1
        %s718 = scalar_lea.sflag [#allocation5], %s717
        %s719 = sand.u32 %s204, 1
        %s720 = smul.addr %s719, 512
        %s721 = scalar_lea.vmem [#allocation12], %s720
        %p722 = pneg %p217
        %p723 = pneg %p214
        %p724 = scmp.lt.s32.totalorder %s33, 1
        %s725 = scalar_select %p724, %s33, 1
        %s726 = smul.addr %s725, 4
        %s727 = scalar_lea.vmem %s7, %s726
        %p728 = pneg %p243
        %p729 = pneg %p240
        %s730 = sand.u32 %s28, 1
        %s731 = scalar_lea.sflag [#allocation5], %s730
        %s732 = sand.u32 %s256, 1
        %s733 = smul.addr %s732, 512
        %s734 = scalar_lea.vmem [#allocation13], %s733
        %p735 = pneg %p269
        %p736 = pneg %p266
        %p737 = scmp.lt.s32.totalorder %s33, 1
        %s738 = scalar_select %p737, %s33, 1
        %s739 = smul.addr %s738, 2
        %s740 = scalar_lea.vmem %s9, %s739
        %p741 = pneg %p295
        %p742 = pneg %p292
        %p743 = scmp.lt.s32.totalorder %s33, 1
        %s744 = scalar_select %p743, %s33, 1
        %s745 = smul.addr %s744, 2
        %s746 = scalar_lea.vmem %s10, %s745
        %p747 = pneg %p321
        %p748 = pneg %p318
        %p749 = scmp.lt.s32.totalorder %s33, 1
        %s750 = scalar_select %p749, %s33, 1
        %s751 = smul.addr %s750, 2
        %s752 = scalar_lea.vmem %s11, %s751
        %p753 = pneg %p347
        %p754 = pneg %p344
        %p755 = scmp.lt.s32.totalorder %s33, 1
        %s756 = scalar_select %p755, %s33, 1
        %s757 = smul.addr %s756, 2
        %s758 = scalar_lea.vmem %s12, %s757
        %p759 = pneg %p373
        %p760 = pneg %p370
        %p761 = scmp.lt.s32.totalorder %s33, 1
        %s762 = scalar_select %p761, %s33, 1
        %s763 = smul.addr %s762, 2
        %s764 = scalar_lea.vmem %s13, %s763
        %p765 = pneg %p399
        %p766 = pneg %p396
        %p767 = pneg %p425
        %p768 = pneg %p422
        %s769 = smul.u32 4, %s32
        %p770 = scmp.lt.s32.totalorder %s33, 1
        %s771 = scalar_select %p770, %s33, 1
        %s772 = smul.addr %s771, 2
        %s773 = scalar_lea.vmem %s5, %s772
        %p774 = scmp.lt.s32.totalorder %s33, 1
        %s775 = scalar_select %p774, %s33, 1
        %s776 = smul.addr %s775, 4
        %s777 = scalar_lea.vmem %s7, %s776
        %p778 = scmp.lt.s32.totalorder %s33, 1
        %s779 = scalar_select %p778, %s33, 1
        %s780 = smul.addr %s779, 2
        %s781 = scalar_lea.vmem %s9, %s780
        %p782 = scmp.lt.s32.totalorder %s33, 1
        %s783 = scalar_select %p782, %s33, 1
        %s784 = smul.addr %s783, 2
        %s785 = scalar_lea.vmem %s10, %s784
        %p786 = scmp.lt.s32.totalorder %s33, 1
        %s787 = scalar_select %p786, %s33, 1
        %s788 = smul.addr %s787, 2
        %s789 = scalar_lea.vmem %s11, %s788
        %p790 = scmp.lt.s32.totalorder %s33, 1
        %s791 = scalar_select %p790, %s33, 1
        %s792 = smul.addr %s791, 2
        %s793 = scalar_lea.vmem %s12, %s792
        %p794 = scmp.lt.s32.totalorder %s33, 1
        %s795 = scalar_select %p794, %s33, 1
        %s796 = smul.addr %s795, 2
        %s797 = scalar_lea.vmem %s13, %s796
        %s798 = smul.u32 4, %s32
        %p800 = scmp.eq.s32.totalorder %s33, 0
        // Predicated region
        $region105: #{tpu_custom_call.1} parent=75 // pred_check
          %p801 = pneg %p800
        $region106: #{tpu_custom_call.1} parent=75 // pred_check_branch
          %803 = sbr.rel (%p801) target = $region108
        $region107: #{tpu_custom_call.1} parent=75 // pred_region
          %v804 = vld [vmem:[#allocation4] sm:$0xff]
          %v805 = vld [vmem:[#allocation4 + $0x8] sm:$0xff]
          %v806 = vld [vmem:[#allocation4 + $0x10] sm:$0xff]
          %v807 = vld [vmem:[#allocation4 + $0x18] sm:$0xff]
          %v808 = vld [vmem:[#allocation4 + $0x20] sm:$0xff]
          %v809 = vld [vmem:[#allocation4 + $0x28] sm:$0xff]
          %v810 = vld [vmem:[#allocation4 + $0x30] sm:$0xff]
          %v811 = vld [vmem:[#allocation4 + $0x38] sm:$0xff]
          %812 = vst [vmem:[#allocation2] sm:$0xff] %v804
          %813 = vst [vmem:[#allocation2 + $0x8] sm:$0xff] %v805
          %814 = vst [vmem:[#allocation2 + $0x10] sm:$0xff] %v806
          %815 = vst [vmem:[#allocation2 + $0x18] sm:$0xff] %v807
          %816 = vst [vmem:[#allocation2 + $0x20] sm:$0xff] %v808
          %817 = vst [vmem:[#allocation2 + $0x28] sm:$0xff] %v809
          %818 = vst [vmem:[#allocation2 + $0x30] sm:$0xff] %v810
          %819 = vst [vmem:[#allocation2 + $0x38] sm:$0xff] %v811
        $region108: #{tpu_custom_call.1} parent=75 // pred_fallthru
          _
        %v820 = vld [vmem:[#allocation2] sm:$0xff]
        %v821 = vld [vmem:[#allocation2 + $0x8] sm:$0xff]
        %v822 = vld [vmem:[#allocation2 + $0x10] sm:$0xff]
        %v823 = vld [vmem:[#allocation2 + $0x18] sm:$0xff]
        %v824 = vld [vmem:[#allocation2 + $0x20] sm:$0xff]
        %v825 = vld [vmem:[#allocation2 + $0x28] sm:$0xff]
        %v826 = vld [vmem:[#allocation2 + $0x30] sm:$0xff]
        %v827 = vld [vmem:[#allocation2 + $0x38] sm:$0xff]
        %v828 = vpack.c.bf16 %v822, %v820
        %v829 = vpack.c.bf16 %v823, %v821
        %v830 = vpack.c.bf16 %v826, %v824
        %v831 = vpack.c.bf16 %v827, %v825
        %v832 = vld [vmem:[%s645] sm:$0xff]
        %v833 = vld [vmem:[%s645 + $0x8] sm:$0xff]
        %v834 = vld [vmem:[%s645 + $0x10] sm:$0xff]
        %v835 = vld [vmem:[%s645 + $0x18] sm:$0xff]
        %v836 = vld [vmem:[%s645 + $0x20] sm:$0xff]
        %v837 = vld [vmem:[%s645 + $0x28] sm:$0xff]
        %v838 = vld [vmem:[%s645 + $0x30] sm:$0xff]
        %v839 = vld [vmem:[%s645 + $0x38] sm:$0xff]
        %v840 = vld [vmem:[%s645 + $0x40] sm:$0xff]
        %v841 = vld [vmem:[%s645 + $0x48] sm:$0xff]
        %v842 = vld [vmem:[%s645 + $0x50] sm:$0xff]
        %v843 = vld [vmem:[%s645 + $0x58] sm:$0xff]
        %v844 = vld [vmem:[%s645 + $0x60] sm:$0xff]
        %v845 = vld [vmem:[%s645 + $0x68] sm:$0xff]
        %v846 = vld [vmem:[%s645 + $0x70] sm:$0xff]
        %v847 = vld [vmem:[%s645 + $0x78] sm:$0xff]
        %v848 = vld [vmem:[%s645 + $0x80] sm:$0xff]
        %v849 = vld [vmem:[%s645 + $0x88] sm:$0xff]
        %v850 = vld [vmem:[%s645 + $0x90] sm:$0xff]
        %v851 = vld [vmem:[%s645 + $0x98] sm:$0xff]
        %v852 = vld [vmem:[%s645 + $0xa0] sm:$0xff]
        %v853 = vld [vmem:[%s645 + $0xa8] sm:$0xff]
        %v854 = vld [vmem:[%s645 + $0xb0] sm:$0xff]
        %v855 = vld [vmem:[%s645 + $0xb8] sm:$0xff]
        %v856 = vld [vmem:[%s645 + $0xc0] sm:$0xff]
        %v857 = vld [vmem:[%s645 + $0xc8] sm:$0xff]
        %v858 = vld [vmem:[%s645 + $0xd0] sm:$0xff]
        %v859 = vld [vmem:[%s645 + $0xd8] sm:$0xff]
        %v860 = vld [vmem:[%s645 + $0xe0] sm:$0xff]
        %v861 = vld [vmem:[%s645 + $0xe8] sm:$0xff]
        %v862 = vld [vmem:[%s645 + $0xf0] sm:$0xff]
        %v863 = vld [vmem:[%s645 + $0xf8] sm:$0xff]
        %v864 = vld [vmem:[%s645 + $0x100] sm:$0xff]
        %v865 = vld [vmem:[%s645 + $0x108] sm:$0xff]
        %v866 = vld [vmem:[%s645 + $0x110] sm:$0xff]
        %v867 = vld [vmem:[%s645 + $0x118] sm:$0xff]
        %v868 = vld [vmem:[%s645 + $0x120] sm:$0xff]
        %v869 = vld [vmem:[%s645 + $0x128] sm:$0xff]
        %v870 = vld [vmem:[%s645 + $0x130] sm:$0xff]
        %v871 = vld [vmem:[%s645 + $0x138] sm:$0xff]
        %v872 = vld [vmem:[%s645 + $0x140] sm:$0xff]
        %v873 = vld [vmem:[%s645 + $0x148] sm:$0xff]
        %v874 = vld [vmem:[%s645 + $0x150] sm:$0xff]
        %v875 = vld [vmem:[%s645 + $0x158] sm:$0xff]
        %v876 = vld [vmem:[%s645 + $0x160] sm:$0xff]
        %v877 = vld [vmem:[%s645 + $0x168] sm:$0xff]
        %v878 = vld [vmem:[%s645 + $0x170] sm:$0xff]
        %v879 = vld [vmem:[%s645 + $0x178] sm:$0xff]
        %v880 = vld [vmem:[%s645 + $0x180] sm:$0xff]
        %v881 = vld [vmem:[%s645 + $0x188] sm:$0xff]
        %v882 = vld [vmem:[%s645 + $0x190] sm:$0xff]
        %v883 = vld [vmem:[%s645 + $0x198] sm:$0xff]
        %v884 = vld [vmem:[%s645 + $0x1a0] sm:$0xff]
        %v885 = vld [vmem:[%s645 + $0x1a8] sm:$0xff]
        %v886 = vld [vmem:[%s645 + $0x1b0] sm:$0xff]
        %v887 = vld [vmem:[%s645 + $0x1b8] sm:$0xff]
        %v888 = vld [vmem:[%s645 + $0x1c0] sm:$0xff]
        %v889 = vld [vmem:[%s645 + $0x1c8] sm:$0xff]
        %v890 = vld [vmem:[%s645 + $0x1d0] sm:$0xff]
        %v891 = vld [vmem:[%s645 + $0x1d8] sm:$0xff]
        %v892 = vld [vmem:[%s645 + $0x1e0] sm:$0xff]
        %v893 = vld [vmem:[%s645 + $0x1e8] sm:$0xff]
        %v894 = vld [vmem:[%s645 + $0x1f0] sm:$0xff]
        %v895 = vld [vmem:[%s645 + $0x1f8] sm:$0xff]
        %v896 = vld [vmem:[%s645 + $0x200] sm:$0xff]
        %v897 = vld [vmem:[%s645 + $0x208] sm:$0xff]
        %v898 = vld [vmem:[%s645 + $0x210] sm:$0xff]
        %v899 = vld [vmem:[%s645 + $0x218] sm:$0xff]
        %v900 = vld [vmem:[%s645 + $0x220] sm:$0xff]
        %v901 = vld [vmem:[%s645 + $0x228] sm:$0xff]
        %v902 = vld [vmem:[%s645 + $0x230] sm:$0xff]
        %v903 = vld [vmem:[%s645 + $0x238] sm:$0xff]
        %v904 = vld [vmem:[%s645 + $0x240] sm:$0xff]
        %v905 = vld [vmem:[%s645 + $0x248] sm:$0xff]
        %v906 = vld [vmem:[%s645 + $0x250] sm:$0xff]
        %v907 = vld [vmem:[%s645 + $0x258] sm:$0xff]
        %v908 = vld [vmem:[%s645 + $0x260] sm:$0xff]
        %v909 = vld [vmem:[%s645 + $0x268] sm:$0xff]
        %v910 = vld [vmem:[%s645 + $0x270] sm:$0xff]
        %v911 = vld [vmem:[%s645 + $0x278] sm:$0xff]
        %v912 = vld [vmem:[%s645 + $0x280] sm:$0xff]
        %v913 = vld [vmem:[%s645 + $0x288] sm:$0xff]
        %v914 = vld [vmem:[%s645 + $0x290] sm:$0xff]
        %v915 = vld [vmem:[%s645 + $0x298] sm:$0xff]
        %v916 = vld [vmem:[%s645 + $0x2a0] sm:$0xff]
        %v917 = vld [vmem:[%s645 + $0x2a8] sm:$0xff]
        %v918 = vld [vmem:[%s645 + $0x2b0] sm:$0xff]
        %v919 = vld [vmem:[%s645 + $0x2b8] sm:$0xff]
        %v920 = vld [vmem:[%s645 + $0x2c0] sm:$0xff]
        %v921 = vld [vmem:[%s645 + $0x2c8] sm:$0xff]
        %v922 = vld [vmem:[%s645 + $0x2d0] sm:$0xff]
        %v923 = vld [vmem:[%s645 + $0x2d8] sm:$0xff]
        %v924 = vld [vmem:[%s645 + $0x2e0] sm:$0xff]
        %v925 = vld [vmem:[%s645 + $0x2e8] sm:$0xff]
        %v926 = vld [vmem:[%s645 + $0x2f0] sm:$0xff]
        %v927 = vld [vmem:[%s645 + $0x2f8] sm:$0xff]
        %v928 = vld [vmem:[%s654] sm:$0x3f]
        %v930 = vlaneseq
        %v931 = vshrl.u32 %v930, 7
        %v932 = vsub.s32 0, %v931
        %v933 = vrot.slane %v928, %v932
        %v934 = vlaneseq
        %v935 = vshrl.u32 %v934, 7
        %v936 = vsub.s32 1, %v935
        %v937 = vrot.slane %v928, %v936
        %v938 = vlaneseq
        %v939 = vshrl.u32 %v938, 7
        %v940 = vsub.s32 2, %v939
        %v941 = vrot.slane %v928, %v940
        %v942 = vlaneseq
        %v943 = vshrl.u32 %v942, 7
        %v944 = vsub.s32 3, %v943
        %v945 = vrot.slane %v928, %v944
        %v946 = vlaneseq
        %v947 = vshrl.u32 %v946, 7
        %v948 = vsub.s32 4, %v947
        %v949 = vrot.slane %v928, %v948
        %v950 = vlaneseq
        %v951 = vshrl.u32 %v950, 7
        %v952 = vsub.s32 5, %v951
        %v953 = vrot.slane %v928, %v952
        %v1056 = vunpack.c.l.b16 %v832
        %v1057 = vunpack.c.h.b16 %v832
        %v1058 = vunpack.c.l.b16 %v833
        %v1059 = vunpack.c.h.b16 %v833
        %v1060 = vunpack.c.l.b16 %v834
        %v1061 = vunpack.c.h.b16 %v834
        %v1062 = vunpack.c.l.b16 %v835
        %v1063 = vunpack.c.h.b16 %v835
        %v1064 = vunpack.c.l.b16 %v836
        %v1065 = vunpack.c.h.b16 %v836
        %v1066 = vunpack.c.l.b16 %v837
        %v1067 = vunpack.c.h.b16 %v837
        %v1068 = vunpack.c.l.b16 %v838
        %v1069 = vunpack.c.h.b16 %v838
        %v1070 = vunpack.c.l.b16 %v839
        %v1071 = vunpack.c.h.b16 %v839
        %v1072 = vunpack.c.l.b16 %v840
        %v1073 = vunpack.c.h.b16 %v840
        %v1074 = vunpack.c.l.b16 %v841
        %v1075 = vunpack.c.h.b16 %v841
        %v1076 = vunpack.c.l.b16 %v842
        %v1077 = vunpack.c.h.b16 %v842
        %v1078 = vunpack.c.l.b16 %v843
        %v1079 = vunpack.c.h.b16 %v843
        %v1080 = vunpack.c.l.b16 %v844
        %v1081 = vunpack.c.h.b16 %v844
        %v1082 = vunpack.c.l.b16 %v845
        %v1083 = vunpack.c.h.b16 %v845
        %v1084 = vunpack.c.l.b16 %v846
        %v1085 = vunpack.c.h.b16 %v846
        %v1086 = vunpack.c.l.b16 %v847
        %v1087 = vunpack.c.h.b16 %v847
        %v1088 = vunpack.c.l.b16 %v848
        %v1089 = vunpack.c.h.b16 %v848
        %v1090 = vunpack.c.l.b16 %v849
        %v1091 = vunpack.c.h.b16 %v849
        %v1092 = vunpack.c.l.b16 %v850
        %v1093 = vunpack.c.h.b16 %v850
        %v1094 = vunpack.c.l.b16 %v851
        %v1095 = vunpack.c.h.b16 %v851
        %v1096 = vunpack.c.l.b16 %v852
        %v1097 = vunpack.c.h.b16 %v852
        %v1098 = vunpack.c.l.b16 %v853
        %v1099 = vunpack.c.h.b16 %v853
        %v1100 = vunpack.c.l.b16 %v854
        %v1101 = vunpack.c.h.b16 %v854
        %v1102 = vunpack.c.l.b16 %v855
        %v1103 = vunpack.c.h.b16 %v855
        %v1104 = vunpack.c.l.b16 %v856
        %v1105 = vunpack.c.h.b16 %v856
        %v1106 = vunpack.c.l.b16 %v857
        %v1107 = vunpack.c.h.b16 %v857
        %v1108 = vunpack.c.l.b16 %v858
        %v1109 = vunpack.c.h.b16 %v858
        %v1110 = vunpack.c.l.b16 %v859
        %v1111 = vunpack.c.h.b16 %v859
        %v1112 = vunpack.c.l.b16 %v860
        %v1113 = vunpack.c.h.b16 %v860
        %v1114 = vunpack.c.l.b16 %v861
        %v1115 = vunpack.c.h.b16 %v861
        %v1116 = vunpack.c.l.b16 %v862
        %v1117 = vunpack.c.h.b16 %v862
        %v1118 = vunpack.c.l.b16 %v863
        %v1119 = vunpack.c.h.b16 %v863
        %v1120 = vunpack.c.l.b16 %v864
        %v1121 = vunpack.c.h.b16 %v864
        %v1122 = vunpack.c.l.b16 %v865
        %v1123 = vunpack.c.h.b16 %v865
        %v1124 = vunpack.c.l.b16 %v866
        %v1125 = vunpack.c.h.b16 %v866
        %v1126 = vunpack.c.l.b16 %v867
        %v1127 = vunpack.c.h.b16 %v867
        %v1128 = vunpack.c.l.b16 %v868
        %v1129 = vunpack.c.h.b16 %v868
        %v1130 = vunpack.c.l.b16 %v869
        %v1131 = vunpack.c.h.b16 %v869
        %v1132 = vunpack.c.l.b16 %v870
        %v1133 = vunpack.c.h.b16 %v870
        %v1134 = vunpack.c.l.b16 %v871
        %v1135 = vunpack.c.h.b16 %v871
        %v1136 = vunpack.c.l.b16 %v872
        %v1137 = vunpack.c.h.b16 %v872
        %v1138 = vunpack.c.l.b16 %v873
        %v1139 = vunpack.c.h.b16 %v873
        %v1140 = vunpack.c.l.b16 %v874
        %v1141 = vunpack.c.h.b16 %v874
        %v1142 = vunpack.c.l.b16 %v875
        %v1143 = vunpack.c.h.b16 %v875
        %v1144 = vunpack.c.l.b16 %v876
        %v1145 = vunpack.c.h.b16 %v876
        %v1146 = vunpack.c.l.b16 %v877
        %v1147 = vunpack.c.h.b16 %v877
        %v1148 = vunpack.c.l.b16 %v878
        %v1149 = vunpack.c.h.b16 %v878
        %v1150 = vunpack.c.l.b16 %v879
        %v1151 = vunpack.c.h.b16 %v879
        %v1152 = vunpack.c.l.b16 %v880
        %v1153 = vunpack.c.h.b16 %v880
        %v1154 = vunpack.c.l.b16 %v881
        %v1155 = vunpack.c.h.b16 %v881
        %v1156 = vunpack.c.l.b16 %v882
        %v1157 = vunpack.c.h.b16 %v882
        %v1158 = vunpack.c.l.b16 %v883
        %v1159 = vunpack.c.h.b16 %v883
        %v1160 = vunpack.c.l.b16 %v884
        %v1161 = vunpack.c.h.b16 %v884
        %v1162 = vunpack.c.l.b16 %v885
        %v1163 = vunpack.c.h.b16 %v885
        %v1164 = vunpack.c.l.b16 %v886
        %v1165 = vunpack.c.h.b16 %v886
        %v1166 = vunpack.c.l.b16 %v887
        %v1167 = vunpack.c.h.b16 %v887
        %v1168 = vunpack.c.l.b16 %v888
        %v1169 = vunpack.c.h.b16 %v888
        %v1170 = vunpack.c.l.b16 %v889
        %v1171 = vunpack.c.h.b16 %v889
        %v1172 = vunpack.c.l.b16 %v890
        %v1173 = vunpack.c.h.b16 %v890
        %v1174 = vunpack.c.l.b16 %v891
        %v1175 = vunpack.c.h.b16 %v891
        %v1176 = vunpack.c.l.b16 %v892
        %v1177 = vunpack.c.h.b16 %v892
        %v1178 = vunpack.c.l.b16 %v893
        %v1179 = vunpack.c.h.b16 %v893
        %v1180 = vunpack.c.l.b16 %v894
        %v1181 = vunpack.c.h.b16 %v894
        %v1182 = vunpack.c.l.b16 %v895
        %v1183 = vunpack.c.h.b16 %v895
        %v1184 = vunpack.c.l.b16 %v896
        %v1185 = vunpack.c.h.b16 %v896
        %v1186 = vunpack.c.l.b16 %v897
        %v1187 = vunpack.c.h.b16 %v897
        %v1188 = vunpack.c.l.b16 %v898
        %v1189 = vunpack.c.h.b16 %v898
        %v1190 = vunpack.c.l.b16 %v899
        %v1191 = vunpack.c.h.b16 %v899
        %v1192 = vunpack.c.l.b16 %v900
        %v1193 = vunpack.c.h.b16 %v900
        %v1194 = vunpack.c.l.b16 %v901
        %v1195 = vunpack.c.h.b16 %v901
        %v1196 = vunpack.c.l.b16 %v902
        %v1197 = vunpack.c.h.b16 %v902
        %v1198 = vunpack.c.l.b16 %v903
        %v1199 = vunpack.c.h.b16 %v903
        %v1200 = vunpack.c.l.b16 %v904
        %v1201 = vunpack.c.h.b16 %v904
        %v1202 = vunpack.c.l.b16 %v905
        %v1203 = vunpack.c.h.b16 %v905
        %v1204 = vunpack.c.l.b16 %v906
        %v1205 = vunpack.c.h.b16 %v906
        %v1206 = vunpack.c.l.b16 %v907
        %v1207 = vunpack.c.h.b16 %v907
        %v1208 = vunpack.c.l.b16 %v908
        %v1209 = vunpack.c.h.b16 %v908
        %v1210 = vunpack.c.l.b16 %v909
        %v1211 = vunpack.c.h.b16 %v909
        %v1212 = vunpack.c.l.b16 %v910
        %v1213 = vunpack.c.h.b16 %v910
        %v1214 = vunpack.c.l.b16 %v911
        %v1215 = vunpack.c.h.b16 %v911
        %v1216 = vunpack.c.l.b16 %v912
        %v1217 = vunpack.c.h.b16 %v912
        %v1218 = vunpack.c.l.b16 %v913
        %v1219 = vunpack.c.h.b16 %v913
        %v1220 = vunpack.c.l.b16 %v914
        %v1221 = vunpack.c.h.b16 %v914
        %v1222 = vunpack.c.l.b16 %v915
        %v1223 = vunpack.c.h.b16 %v915
        %v1224 = vunpack.c.l.b16 %v916
        %v1225 = vunpack.c.h.b16 %v916
        %v1226 = vunpack.c.l.b16 %v917
        %v1227 = vunpack.c.h.b16 %v917
        %v1228 = vunpack.c.l.b16 %v918
        %v1229 = vunpack.c.h.b16 %v918
        %v1230 = vunpack.c.l.b16 %v919
        %v1231 = vunpack.c.h.b16 %v919
        %v1232 = vunpack.c.l.b16 %v920
        %v1233 = vunpack.c.h.b16 %v920
        %v1234 = vunpack.c.l.b16 %v921
        %v1235 = vunpack.c.h.b16 %v921
        %v1236 = vunpack.c.l.b16 %v922
        %v1237 = vunpack.c.h.b16 %v922
        %v1238 = vunpack.c.l.b16 %v923
        %v1239 = vunpack.c.h.b16 %v923
        %v1240 = vunpack.c.l.b16 %v924
        %v1241 = vunpack.c.h.b16 %v924
        %v1242 = vunpack.c.l.b16 %v925
        %v1243 = vunpack.c.h.b16 %v925
        %v1244 = vunpack.c.l.b16 %v926
        %v1245 = vunpack.c.h.b16 %v926
        %v1246 = vunpack.c.l.b16 %v927
        %v1247 = vunpack.c.h.b16 %v927
        %v1248 = vpack.c.b16 %v1062, %v1056
        %v1249 = vpack.c.b16 %v1063, %v1057
        %v1250 = vpack.c.b16 %v1064, %v1058
        %v1251 = vpack.c.b16 %v1065, %v1059
        %v1252 = vpack.c.b16 %v1066, %v1060
        %v1253 = vpack.c.b16 %v1067, %v1061
        %v1254 = vpack.c.b16 %v1074, %v1068
        %v1255 = vpack.c.b16 %v1075, %v1069
        %v1256 = vpack.c.b16 %v1076, %v1070
        %v1257 = vpack.c.b16 %v1077, %v1071
        %v1258 = vpack.c.b16 %v1078, %v1072
        %v1259 = vpack.c.b16 %v1079, %v1073
        %v1260 = vpack.c.b16 %v1086, %v1080
        %v1261 = vpack.c.b16 %v1087, %v1081
        %v1262 = vpack.c.b16 %v1088, %v1082
        %v1263 = vpack.c.b16 %v1089, %v1083
        %v1264 = vpack.c.b16 %v1090, %v1084
        %v1265 = vpack.c.b16 %v1091, %v1085
        %v1266 = vpack.c.b16 %v1098, %v1092
        %v1267 = vpack.c.b16 %v1099, %v1093
        %v1268 = vpack.c.b16 %v1100, %v1094
        %v1269 = vpack.c.b16 %v1101, %v1095
        %v1270 = vpack.c.b16 %v1102, %v1096
        %v1271 = vpack.c.b16 %v1103, %v1097
        %v1272 = vpack.c.b16 %v1110, %v1104
        %v1273 = vpack.c.b16 %v1111, %v1105
        %v1274 = vpack.c.b16 %v1112, %v1106
        %v1275 = vpack.c.b16 %v1113, %v1107
        %v1276 = vpack.c.b16 %v1114, %v1108
        %v1277 = vpack.c.b16 %v1115, %v1109
        %v1278 = vpack.c.b16 %v1122, %v1116
        %v1279 = vpack.c.b16 %v1123, %v1117
        %v1280 = vpack.c.b16 %v1124, %v1118
        %v1281 = vpack.c.b16 %v1125, %v1119
        %v1282 = vpack.c.b16 %v1126, %v1120
        %v1283 = vpack.c.b16 %v1127, %v1121
        %v1284 = vpack.c.b16 %v1134, %v1128
        %v1285 = vpack.c.b16 %v1135, %v1129
        %v1286 = vpack.c.b16 %v1136, %v1130
        %v1287 = vpack.c.b16 %v1137, %v1131
        %v1288 = vpack.c.b16 %v1138, %v1132
        %v1289 = vpack.c.b16 %v1139, %v1133
        %v1290 = vpack.c.b16 %v1146, %v1140
        %v1291 = vpack.c.b16 %v1147, %v1141
        %v1292 = vpack.c.b16 %v1148, %v1142
        %v1293 = vpack.c.b16 %v1149, %v1143
        %v1294 = vpack.c.b16 %v1150, %v1144
        %v1295 = vpack.c.b16 %v1151, %v1145
        %v1296 = vpack.c.b16 %v1158, %v1152
        %v1297 = vpack.c.b16 %v1159, %v1153
        %v1298 = vpack.c.b16 %v1160, %v1154
        %v1299 = vpack.c.b16 %v1161, %v1155
        %v1300 = vpack.c.b16 %v1162, %v1156
        %v1301 = vpack.c.b16 %v1163, %v1157
        %v1302 = vpack.c.b16 %v1170, %v1164
        %v1303 = vpack.c.b16 %v1171, %v1165
        %v1304 = vpack.c.b16 %v1172, %v1166
        %v1305 = vpack.c.b16 %v1173, %v1167
        %v1306 = vpack.c.b16 %v1174, %v1168
        %v1307 = vpack.c.b16 %v1175, %v1169
        %v1308 = vpack.c.b16 %v1182, %v1176
        %v1309 = vpack.c.b16 %v1183, %v1177
        %v1310 = vpack.c.b16 %v1184, %v1178
        %v1311 = vpack.c.b16 %v1185, %v1179
        %v1312 = vpack.c.b16 %v1186, %v1180
        %v1313 = vpack.c.b16 %v1187, %v1181
        %v1314 = vpack.c.b16 %v1194, %v1188
        %v1315 = vpack.c.b16 %v1195, %v1189
        %v1316 = vpack.c.b16 %v1196, %v1190
        %v1317 = vpack.c.b16 %v1197, %v1191
        %v1318 = vpack.c.b16 %v1198, %v1192
        %v1319 = vpack.c.b16 %v1199, %v1193
        %v1320 = vpack.c.b16 %v1206, %v1200
        %v1321 = vpack.c.b16 %v1207, %v1201
        %v1322 = vpack.c.b16 %v1208, %v1202
        %v1323 = vpack.c.b16 %v1209, %v1203
        %v1324 = vpack.c.b16 %v1210, %v1204
        %v1325 = vpack.c.b16 %v1211, %v1205
        %v1326 = vpack.c.b16 %v1218, %v1212
        %v1327 = vpack.c.b16 %v1219, %v1213
        %v1328 = vpack.c.b16 %v1220, %v1214
        %v1329 = vpack.c.b16 %v1221, %v1215
        %v1330 = vpack.c.b16 %v1222, %v1216
        %v1331 = vpack.c.b16 %v1223, %v1217
        %v1332 = vpack.c.b16 %v1230, %v1224
        %v1333 = vpack.c.b16 %v1231, %v1225
        %v1334 = vpack.c.b16 %v1232, %v1226
        %v1335 = vpack.c.b16 %v1233, %v1227
        %v1336 = vpack.c.b16 %v1234, %v1228
        %v1337 = vpack.c.b16 %v1235, %v1229
        %v1338 = vpack.c.b16 %v1242, %v1236
        %v1339 = vpack.c.b16 %v1243, %v1237
        %v1340 = vpack.c.b16 %v1244, %v1238
        %v1341 = vpack.c.b16 %v1245, %v1239
        %v1342 = vpack.c.b16 %v1246, %v1240
        %v1343 = vpack.c.b16 %v1247, %v1241
        %1440 = vmatprep.subr.bf16.mxu0 %v1249
        %1441 = vmatpush1.bf16.msra.mxu0 %v1248
        %1442 = vmatprep.subr.bf16.mxu0 %v1255
        %1443 = vmatpush1.bf16.msra.mxu0 %v1254
        %1444 = vmatprep.subr.bf16.mxu0 %v1261
        %1445 = vmatpush1.bf16.msra.mxu0 %v1260
        %1446 = vmatprep.subr.bf16.mxu0 %v1267
        %1447 = vmatpush1.bf16.msra.mxu0 %v1266
        %1448 = vmatprep.subr.bf16.mxu0 %v1273
        %1449 = vmatpush1.bf16.msra.mxu0 %v1272
        %1450 = vmatprep.subr.bf16.mxu0 %v1279
        %1451 = vmatpush1.bf16.msra.mxu0 %v1278
        %1452 = vmatprep.subr.bf16.mxu0 %v1285
        %1453 = vmatpush1.bf16.msra.mxu0 %v1284
        %1454 = vmatprep.subr.bf16.mxu0 %v1291
        %1455 = vmatpush1.bf16.msra.mxu0 %v1290
        %1456 = vmatprep.subr.bf16.mxu0 %v1297
        %1457 = vmatpush1.bf16.msra.mxu0 %v1296
        %1458 = vmatprep.subr.bf16.mxu0 %v1303
        %1459 = vmatpush1.bf16.msra.mxu0 %v1302
        %1460 = vmatprep.subr.bf16.mxu0 %v1309
        %1461 = vmatpush1.bf16.msra.mxu0 %v1308
        %1462 = vmatprep.subr.bf16.mxu0 %v1315
        %1463 = vmatpush1.bf16.msra.mxu0 %v1314
        %1464 = vmatprep.subr.bf16.mxu0 %v1321
        %1465 = vmatpush1.bf16.msra.mxu0 %v1320
        %1466 = vmatprep.subr.bf16.mxu0 %v1327
        %1467 = vmatpush1.bf16.msra.mxu0 %v1326
        %1468 = vmatprep.subr.bf16.mxu0 %v1333
        %1469 = vmatpush1.bf16.msra.mxu0 %v1332
        %1470 = vmatprep.subr.bf16.mxu0 %v1339
        %1471 = vmatpush1.bf16.msra.mxu0 %v1338
        %1472 = vmatprep.mubr.bf16.mxu0 %v829
        %1473 = vmatmul.mubr.bf16.gmra.mrb[0].mxu0 %v828
        %v1474 = vpop.f32.mrb[0].mxu0
        %v1475 = vadd.f32 %v933, %v1474
        %v1476 = vpop.f32.mrb[0].mxu0
        %v1477 = vadd.f32 %v937, %v1476
        %v1478 = vpop.f32.mrb[0].mxu0
        %v1479 = vadd.f32 %v933, %v1478
        %v1480 = vpop.f32.mrb[0].mxu0
        %v1481 = vadd.f32 %v937, %v1480
        %1482 = vmatprep.mubr.bf16.mxu0 %v831
        %1483 = vmatmul.mubr.bf16.gmra.mrb[0].mxu0 %v830
        %v1484 = vpop.f32.mrb[0].mxu0
        %v1485 = vadd.f32 %v933, %v1484
        %v1486 = vpop.f32.mrb[0].mxu0
        %v1487 = vadd.f32 %v937, %v1486
        %v1488 = vpop.f32.mrb[0].mxu0
        %v1489 = vadd.f32 %v933, %v1488
        %v1490 = vpop.f32.mrb[0].mxu0
        %v1491 = vadd.f32 %v937, %v1490
        %1492 = vdwg.mxu0
        %1493 = vmatprep.subr.bf16.mxu0 %v1251
        %1494 = vmatpush1.bf16.msra.mxu0 %v1250
        %1495 = vmatprep.subr.bf16.mxu0 %v1257
        %1496 = vmatpush1.bf16.msra.mxu0 %v1256
        %1497 = vmatprep.subr.bf16.mxu0 %v1263
        %1498 = vmatpush1.bf16.msra.mxu0 %v1262
        %1499 = vmatprep.subr.bf16.mxu0 %v1269
        %1500 = vmatpush1.bf16.msra.mxu0 %v1268
        %1501 = vmatprep.subr.bf16.mxu0 %v1275
        %1502 = vmatpush1.bf16.msra.mxu0 %v1274
        %1503 = vmatprep.subr.bf16.mxu0 %v1281
        %1504 = vmatpush1.bf16.msra.mxu0 %v1280
        %1505 = vmatprep.subr.bf16.mxu0 %v1287
        %1506 = vmatpush1.bf16.msra.mxu0 %v1286
        %1507 = vmatprep.subr.bf16.mxu0 %v1293
        %1508 = vmatpush1.bf16.msra.mxu0 %v1292
        %1509 = vmatprep.subr.bf16.mxu0 %v1299
        %1510 = vmatpush1.bf16.msra.mxu0 %v1298
        %1511 = vmatprep.subr.bf16.mxu0 %v1305
        %1512 = vmatpush1.bf16.msra.mxu0 %v1304
        %1513 = vmatprep.subr.bf16.mxu0 %v1311
        %1514 = vmatpush1.bf16.msra.mxu0 %v1310
        %1515 = vmatprep.subr.bf16.mxu0 %v1317
        %1516 = vmatpush1.bf16.msra.mxu0 %v1316
        %1517 = vmatprep.subr.bf16.mxu0 %v1323
        %1518 = vmatpush1.bf16.msra.mxu0 %v1322
        %1519 = vmatprep.subr.bf16.mxu0 %v1329
        %1520 = vmatpush1.bf16.msra.mxu0 %v1328
        %1521 = vmatprep.subr.bf16.mxu0 %v1335
        %1522 = vmatpush1.bf16.msra.mxu0 %v1334
        %1523 = vmatprep.subr.bf16.mxu0 %v1341
        %1524 = vmatpush1.bf16.msra.mxu0 %v1340
        %1525 = vmatprep.mubr.bf16.mxu0 %v829
        %1526 = vmatmul.mubr.bf16.gmra.mrb[0].mxu0 %v828
        %v1527 = vpop.f32.mrb[0].mxu0
        %v1528 = vadd.f32 %v941, %v1527
        %v1529 = vpop.f32.mrb[0].mxu0
        %v1530 = vadd.f32 %v945, %v1529
        %v1531 = vpop.f32.mrb[0].mxu0
        %v1532 = vadd.f32 %v941, %v1531
        %v1533 = vpop.f32.mrb[0].mxu0
        %v1534 = vadd.f32 %v945, %v1533
        %1535 = vmatprep.mubr.bf16.mxu0 %v831
        %1536 = vmatmul.mubr.bf16.gmra.mrb[0].mxu0 %v830
        %v1537 = vpop.f32.mrb[0].mxu0
        %v1538 = vadd.f32 %v941, %v1537
        %v1539 = vpop.f32.mrb[0].mxu0
        %v1540 = vadd.f32 %v945, %v1539
        %v1541 = vpop.f32.mrb[0].mxu0
        %v1542 = vadd.f32 %v941, %v1541
        %v1543 = vpop.f32.mrb[0].mxu0
        %v1544 = vadd.f32 %v945, %v1543
        %1545 = vdwg.mxu0
        %1546 = vmatprep.subr.bf16.mxu0 %v1253
        %1547 = vmatpush1.bf16.msra.mxu0 %v1252
        %1548 = vmatprep.subr.bf16.mxu0 %v1259
        %1549 = vmatpush1.bf16.msra.mxu0 %v1258
        %1550 = vmatprep.subr.bf16.mxu0 %v1265
        %1551 = vmatpush1.bf16.msra.mxu0 %v1264
        %1552 = vmatprep.subr.bf16.mxu0 %v1271
        %1553 = vmatpush1.bf16.msra.mxu0 %v1270
        %1554 = vmatprep.subr.bf16.mxu0 %v1277
        %1555 = vmatpush1.bf16.msra.mxu0 %v1276
        %1556 = vmatprep.subr.bf16.mxu0 %v1283
        %1557 = vmatpush1.bf16.msra.mxu0 %v1282
        %1558 = vmatprep.subr.bf16.mxu0 %v1289
        %1559 = vmatpush1.bf16.msra.mxu0 %v1288
        %1560 = vmatprep.subr.bf16.mxu0 %v1295
        %1561 = vmatpush1.bf16.msra.mxu0 %v1294
        %1562 = vmatprep.subr.bf16.mxu0 %v1301
        %1563 = vmatpush1.bf16.msra.mxu0 %v1300
        %1564 = vmatprep.subr.bf16.mxu0 %v1307
        %1565 = vmatpush1.bf16.msra.mxu0 %v1306
        %1566 = vmatprep.subr.bf16.mxu0 %v1313
        %1567 = vmatpush1.bf16.msra.mxu0 %v1312
        %1568 = vmatprep.subr.bf16.mxu0 %v1319
        %1569 = vmatpush1.bf16.msra.mxu0 %v1318
        %1570 = vmatprep.subr.bf16.mxu0 %v1325
        %1571 = vmatpush1.bf16.msra.mxu0 %v1324
        %1572 = vmatprep.subr.bf16.mxu0 %v1331
        %1573 = vmatpush1.bf16.msra.mxu0 %v1330
        %1574 = vmatprep.subr.bf16.mxu0 %v1337
        %1575 = vmatpush1.bf16.msra.mxu0 %v1336
        %1576 = vmatprep.subr.bf16.mxu0 %v1343
        %1577 = vmatpush1.bf16.msra.mxu0 %v1342
        %1578 = vmatprep.mubr.bf16.mxu0 %v829
        %1579 = vmatmul.mubr.bf16.gmra.mrb[0].mxu0 %v828
        %v1580 = vpop.f32.mrb[0].mxu0
        %v1581 = vadd.f32 %v949, %v1580
        %v1582 = vpop.f32.mrb[0].mxu0
        %v1583 = vadd.f32 %v953, %v1582
        %v1584 = vpop.f32.mrb[0].mxu0
        %v1585 = vadd.f32 %v949, %v1584
        %v1586 = vpop.f32.mrb[0].mxu0
        %v1587 = vadd.f32 %v953, %v1586
        %1588 = vmatprep.mubr.bf16.mxu0 %v831
        %1589 = vmatmul.mubr.bf16.gmra.mrb[0].mxu0 %v830
        %v1590 = vpop.f32.mrb[0].mxu0
        %v1591 = vadd.f32 %v949, %v1590
        %v1592 = vpop.f32.mrb[0].mxu0
        %v1593 = vadd.f32 %v953, %v1592
        %v1594 = vpop.f32.mrb[0].mxu0
        %v1595 = vadd.f32 %v949, %v1594
        %v1596 = vpop.f32.mrb[0].mxu0
        %v1597 = vadd.f32 %v953, %v1596
        %1598 = vdwg.mxu0
        %v1599 = vld [vmem:[#allocation7] sm:$0xf]
        %v1602 = vunpack.c.l.s4 1966171168
        %v1603 = vunpack.c.0.s8 %v1602
        %v1604 = vlaneseq
        %v1605 = vshrl.u32 %v1604, 7
        %v1606 = vsub.s32 %v1603, %v1605
        %v1607 = vrot.slane %v1599, %v1606
        %v1608 = vcombine.high %v1607, %v1607
        %v1610 = vunpack.c.l.s4 1966171168
        %v1611 = vunpack.c.0.s8 %v1610
        %v1612 = vlaneseq
        %v1613 = vshrl.u32 %v1612, 7
        %v1614 = vsub.s32 %v1611, %v1613
        %v1615 = vrot.slane %v1607, %v1614
        %v1617 = vunpack.c.l.s4 1966171168
        %v1618 = vunpack.c.0.s8 %v1617
        %v1619 = vlaneseq
        %v1620 = vshrl.u32 %v1619, 7
        %v1621 = vsub.s32 %v1618, %v1620
        %v1622 = vrot.slane %v1608, %v1621
        %v1623 = vcombine.high %v1615, %v1615
        %v1624 = vcombine.high %v1622, %v1622
        %v1625 = vpack.c.bf16 %v1475, %v1475
        %v1626 = vpack.c.bf16 %v1479, %v1479
        %v1627 = vpack.c.bf16 %v1485, %v1485
        %v1628 = vpack.c.bf16 %v1489, %v1489
        %v1629 = vpack.c.bf16 %v1528, %v1528
        %v1630 = vpack.c.bf16 %v1532, %v1532
        %v1631 = vpack.c.bf16 %v1538, %v1538
        %v1632 = vpack.c.bf16 %v1542, %v1542
        %v1633 = vpack.c.bf16 %v1581, %v1581
        %v1634 = vpack.c.bf16 %v1585, %v1585
        %v1635 = vpack.c.bf16 %v1591, %v1591
        %v1636 = vpack.c.bf16 %v1595, %v1595
        %1637 = vmatprep.subr.bf16.mxu0 0
        %1638 = vmatpush1.bf16.xpose.msra.mxu0 %v1629
        %1639 = vmatprep.subr.bf16.mxu0 0
        %1640 = vmatpush1.bf16.xpose.msra.mxu0 0
        %1641 = vmatprep.subr.bf16.mxu0 0
        %1642 = vmatpush1.bf16.xpose.msra.mxu0 0
        %1643 = vmatprep.subr.bf16.mxu0 0
        %1644 = vmatpush1.bf16.xpose.msra.mxu0 0
        %1645 = vmatprep.subr.bf16.mxu0 0
        %1646 = vmatpush1.bf16.xpose.msra.mxu0 0
        %1647 = vmatprep.subr.bf16.mxu0 0
        %1648 = vmatpush1.bf16.xpose.msra.mxu0 0
        %1649 = vmatprep.subr.bf16.mxu0 0
        %1650 = vmatpush1.bf16.xpose.msra.mxu0 0
        %1651 = vmatprep.subr.bf16.mxu0 0
        %1652 = vmatpush1.bf16.xpose.msra.mxu0 0
        %1653 = vmatprep.subr.bf16.mxu0 0
        %1654 = vmatpush1.bf16.xpose.msra.mxu0 0
        %1655 = vmatprep.subr.bf16.mxu0 0
        %1656 = vmatpush1.bf16.xpose.msra.mxu0 0
        %1657 = vmatprep.subr.bf16.mxu0 0
        %1658 = vmatpush1.bf16.xpose.msra.mxu0 0
        %1659 = vmatprep.subr.bf16.mxu0 0
        %1660 = vmatpush1.bf16.xpose.msra.mxu0 0
        %1661 = vmatprep.subr.bf16.mxu0 0
        %1662 = vmatpush1.bf16.xpose.msra.mxu0 0
        %1663 = vmatprep.subr.bf16.mxu0 0
        %1664 = vmatpush1.bf16.xpose.msra.mxu0 0
        %1665 = vmatprep.subr.bf16.mxu0 0
        %1666 = vmatpush1.bf16.xpose.msra.mxu0 0
        %1667 = vmatprep.subr.bf16.mxu0 0
        %1668 = vmatpush1.bf16.xpose.msra.mxu0 0
        %1669 = vmatprep.mubr.bf16.mxu0 0
        %1670 = vmatmul.mubr.bf16.gmra.mrb[0].mxu0 %v1625
        %v1671 = vpop.f32.mrb[0].mxu0
        %v1672 = vadd.f32 0.0, %v1671
        %v1673 = vpop.f32.mrb[0].mxu0
        %v1674 = vpop.f32.mrb[0].mxu0
        %v1675 = vpop.f32.mrb[0].mxu0
        %1676 = vdwg.mxu0
        %1677 = vmatprep.subr.bf16.mxu0 0
        %1678 = vmatpush1.bf16.xpose.msra.mxu0 %v1630
        %1679 = vmatprep.subr.bf16.mxu0 0
        %1680 = vmatpush1.bf16.xpose.msra.mxu0 0
        %1681 = vmatprep.subr.bf16.mxu0 0
        %1682 = vmatpush1.bf16.xpose.msra.mxu0 0
        %1683 = vmatprep.subr.bf16.mxu0 0
        %1684 = vmatpush1.bf16.xpose.msra.mxu0 0
        %1685 = vmatprep.subr.bf16.mxu0 0
        %1686 = vmatpush1.bf16.xpose.msra.mxu0 0
        %1687 = vmatprep.subr.bf16.mxu0 0
        %1688 = vmatpush1.bf16.xpose.msra.mxu0 0
        %1689 = vmatprep.subr.bf16.mxu0 0
        %1690 = vmatpush1.bf16.xpose.msra.mxu0 0
        %1691 = vmatprep.subr.bf16.mxu0 0
        %1692 = vmatpush1.bf16.xpose.msra.mxu0 0
        %1693 = vmatprep.subr.bf16.mxu0 0
        %1694 = vmatpush1.bf16.xpose.msra.mxu0 0
        %1695 = vmatprep.subr.bf16.mxu0 0
        %1696 = vmatpush1.bf16.xpose.msra.mxu0 0
        %1697 = vmatprep.subr.bf16.mxu0 0
        %1698 = vmatpush1.bf16.xpose.msra.mxu0 0
        %1699 = vmatprep.subr.bf16.mxu0 0
        %1700 = vmatpush1.bf16.xpose.msra.mxu0 0
        %1701 = vmatprep.subr.bf16.mxu0 0
        %1702 = vmatpush1.bf16.xpose.msra.mxu0 0
        %1703 = vmatprep.subr.bf16.mxu0 0
        %1704 = vmatpush1.bf16.xpose.msra.mxu0 0
        %1705 = vmatprep.subr.bf16.mxu0 0
        %1706 = vmatpush1.bf16.xpose.msra.mxu0 0
        %1707 = vmatprep.subr.bf16.mxu0 0
        %1708 = vmatpush1.bf16.xpose.msra.mxu0 0
        %1709 = vmatprep.mubr.bf16.mxu0 0
        %1710 = vmatmul.mubr.bf16.gmra.mrb[0].mxu0 %v1626
        %v1711 = vpop.f32.mrb[0].mxu0
        %v1712 = vadd.f32 0.0, %v1711
        %v1713 = vpop.f32.mrb[0].mxu0
        %v1714 = vpop.f32.mrb[0].mxu0
        %v1715 = vpop.f32.mrb[0].mxu0
        %1716 = vdwg.mxu0
        %1717 = vmatprep.subr.bf16.mxu0 0
        %1718 = vmatpush1.bf16.xpose.msra.mxu0 %v1631
        %1719 = vmatprep.subr.bf16.mxu0 0
        %1720 = vmatpush1.bf16.xpose.msra.mxu0 0
        %1721 = vmatprep.subr.bf16.mxu0 0
        %1722 = vmatpush1.bf16.xpose.msra.mxu0 0
        %1723 = vmatprep.subr.bf16.mxu0 0
        %1724 = vmatpush1.bf16.xpose.msra.mxu0 0
        %1725 = vmatprep.subr.bf16.mxu0 0
        %1726 = vmatpush1.bf16.xpose.msra.mxu0 0
        %1727 = vmatprep.subr.bf16.mxu0 0
        %1728 = vmatpush1.bf16.xpose.msra.mxu0 0
        %1729 = vmatprep.subr.bf16.mxu0 0
        %1730 = vmatpush1.bf16.xpose.msra.mxu0 0
        %1731 = vmatprep.subr.bf16.mxu0 0
        %1732 = vmatpush1.bf16.xpose.msra.mxu0 0
        %1733 = vmatprep.subr.bf16.mxu0 0
        %1734 = vmatpush1.bf16.xpose.msra.mxu0 0
        %1735 = vmatprep.subr.bf16.mxu0 0
        %1736 = vmatpush1.bf16.xpose.msra.mxu0 0
        %1737 = vmatprep.subr.bf16.mxu0 0
        %1738 = vmatpush1.bf16.xpose.msra.mxu0 0
        %1739 = vmatprep.subr.bf16.mxu0 0
        %1740 = vmatpush1.bf16.xpose.msra.mxu0 0
        %1741 = vmatprep.subr.bf16.mxu0 0
        %1742 = vmatpush1.bf16.xpose.msra.mxu0 0
        %1743 = vmatprep.subr.bf16.mxu0 0
        %1744 = vmatpush1.bf16.xpose.msra.mxu0 0
        %1745 = vmatprep.subr.bf16.mxu0 0
        %1746 = vmatpush1.bf16.xpose.msra.mxu0 0
        %1747 = vmatprep.subr.bf16.mxu0 0
        %1748 = vmatpush1.bf16.xpose.msra.mxu0 0
        %1749 = vmatprep.mubr.bf16.mxu0 0
        %1750 = vmatmul.mubr.bf16.gmra.mrb[0].mxu0 %v1627
        %v1751 = vpop.f32.mrb[0].mxu0
        %v1752 = vadd.f32 0.0, %v1751
        %v1753 = vpop.f32.mrb[0].mxu0
        %v1754 = vpop.f32.mrb[0].mxu0
        %v1755 = vpop.f32.mrb[0].mxu0
        %1756 = vdwg.mxu0
        %1757 = vmatprep.subr.bf16.mxu0 0
        %1758 = vmatpush1.bf16.xpose.msra.mxu0 %v1632
        %1759 = vmatprep.subr.bf16.mxu0 0
        %1760 = vmatpush1.bf16.xpose.msra.mxu0 0
        %1761 = vmatprep.subr.bf16.mxu0 0
        %1762 = vmatpush1.bf16.xpose.msra.mxu0 0
        %1763 = vmatprep.subr.bf16.mxu0 0
        %1764 = vmatpush1.bf16.xpose.msra.mxu0 0
        %1765 = vmatprep.subr.bf16.mxu0 0
        %1766 = vmatpush1.bf16.xpose.msra.mxu0 0
        %1767 = vmatprep.subr.bf16.mxu0 0
        %1768 = vmatpush1.bf16.xpose.msra.mxu0 0
        %1769 = vmatprep.subr.bf16.mxu0 0
        %1770 = vmatpush1.bf16.xpose.msra.mxu0 0
        %1771 = vmatprep.subr.bf16.mxu0 0
        %1772 = vmatpush1.bf16.xpose.msra.mxu0 0
        %1773 = vmatprep.subr.bf16.mxu0 0
        %1774 = vmatpush1.bf16.xpose.msra.mxu0 0
        %1775 = vmatprep.subr.bf16.mxu0 0
        %1776 = vmatpush1.bf16.xpose.msra.mxu0 0
        %1777 = vmatprep.subr.bf16.mxu0 0
        %1778 = vmatpush1.bf16.xpose.msra.mxu0 0
        %1779 = vmatprep.subr.bf16.mxu0 0
        %1780 = vmatpush1.bf16.xpose.msra.mxu0 0
        %1781 = vmatprep.subr.bf16.mxu0 0
        %1782 = vmatpush1.bf16.xpose.msra.mxu0 0
        %1783 = vmatprep.subr.bf16.mxu0 0
        %1784 = vmatpush1.bf16.xpose.msra.mxu0 0
        %1785 = vmatprep.subr.bf16.mxu0 0
        %1786 = vmatpush1.bf16.xpose.msra.mxu0 0
        %1787 = vmatprep.subr.bf16.mxu0 0
        %1788 = vmatpush1.bf16.xpose.msra.mxu0 0
        %1789 = vmatprep.mubr.bf16.mxu0 0
        %1790 = vmatmul.mubr.bf16.gmra.mrb[0].mxu0 %v1628
        %v1791 = vpop.f32.mrb[0].mxu0
        %v1792 = vadd.f32 0.0, %v1791
        %v1793 = vpop.f32.mrb[0].mxu0
        %v1794 = vpop.f32.mrb[0].mxu0
        %v1795 = vpop.f32.mrb[0].mxu0
        %1796 = vdwg.mxu0
        %v1797 = vmul.f32 %v1672, 0.088388346
        %v1798 = vmul.f32 %v1712, 0.088388346
        %v1799 = vmul.f32 %v1752, 0.088388346
        %v1800 = vmul.f32 %v1792, 0.088388346
        %v1801 = vlaneseq
        %v1802 = vshrl.u32 %v1801, 7
        %v1803 = vsub.s32 0, %v1802
        %v1804 = vrot.slane %v1615, %v1803
        %v1805 = vlaneseq
        %v1806 = vshrl.u32 %v1805, 7
        %v1807 = vsub.s32 0, %v1806
        %v1808 = vrot.slane %v1622, %v1807
        %v1809 = vlaneseq
        %v1810 = vshrl.u32 %v1809, 7
        %v1811 = vsub.s32 0, %v1810
        %v1812 = vrot.slane %v1623, %v1811
        %v1813 = vlaneseq
        %v1814 = vshrl.u32 %v1813, 7
        %v1815 = vsub.s32 0, %v1814
        %v1816 = vrot.slane %v1624, %v1815
        %v1821 = vadd.f32 %v1797, %v1804
        %v1822 = vadd.f32 %v1798, %v1808
        %v1823 = vadd.f32 %v1799, %v1812
        %v1824 = vadd.f32 %v1800, %v1816
        %vm1825 = vcmask 64512
        %v1826 = vsel %vm1825, %v1821, -inf
        %1827 = vmax.xlane.f32.xlu0 %v1826
        %v1828 = vpop.xlane.xlu0 %1827
        %v1829 = vsel %vm1825, %v1822, -inf
        %1830 = vmax.xlane.f32.xlu0 %v1829
        %v1831 = vpop.xlane.xlu0 %1830
        %v1832 = vsel %vm1825, %v1823, -inf
        %1833 = vmax.xlane.f32.xlu0 %v1832
        %v1834 = vpop.xlane.xlu0 %1833
        %v1835 = vsel %vm1825, %v1824, -inf
        %1836 = vmax.xlane.f32.xlu0 %v1835
        %v1837 = vpop.xlane.xlu0 %1836
        %v1838 = vsub.f32 %v1821, %v1828
        %v1839 = vsub.f32 %v1822, %v1831
        %v1840 = vsub.f32 %v1823, %v1834
        %v1841 = vsub.f32 %v1824, %v1837
        %v1842 = vmul.f32 %v1838, 1.442695
        %v1843 = vpow.pop %v1842
        %v1844 = vmul.f32 %v1839, 1.442695
        %v1845 = vpow.pop %v1844
        %v1846 = vmul.f32 %v1840, 1.442695
        %v1847 = vpow.pop %v1846
        %v1848 = vmul.f32 %v1841, 1.442695
        %v1849 = vpow.pop %v1848
        %v1850 = vsel %vm1825, %v1843, 0.0
        %1851 = vadd.xlane.f32.xlu0 %v1850
        %v1852 = vpop.xlane.xlu0 %1851
        %v1853 = vsel %vm1825, %v1845, 0.0
        %1854 = vadd.xlane.f32.xlu0 %v1853
        %v1855 = vpop.xlane.xlu0 %1854
        %v1856 = vsel %vm1825, %v1847, 0.0
        %1857 = vadd.xlane.f32.xlu0 %v1856
        %v1858 = vpop.xlane.xlu0 %1857
        %v1859 = vsel %vm1825, %v1849, 0.0
        %1860 = vadd.xlane.f32.xlu0 %v1859
        %v1861 = vpop.xlane.xlu0 %1860
        %v1862 = vrcp.pop %v1852
        %v1863 = vrcp.pop %v1855
        %v1864 = vrcp.pop %v1858
        %v1865 = vrcp.pop %v1861
        %v1866 = vmul.f32 %v1843, %v1862
        %v1867 = vmul.f32 %v1845, %v1863
        %v1868 = vmul.f32 %v1847, %v1864
        %v1869 = vmul.f32 %v1849, %v1865
        %v1870 = vpack.c.bf16 %v1866, %v1866
        %v1871 = vpack.c.bf16 %v1867, %v1867
        %v1872 = vpack.c.bf16 %v1868, %v1868
        %v1873 = vpack.c.bf16 %v1869, %v1869
        %v1875 = vsel %vm1825, %v1870, 0
        %vm1877 = vcmask 1043456
        %v1879 = vsel %vm1877, %v1633, 0
        %1881 = vmatprep.subr.bf16.mxu0 0
        %1882 = vmatpush1.bf16.msra.mxu0 %v1879
        %1883 = vmatprep.subr.bf16.mxu0 0
        %1884 = vmatpush1.bf16.msra.mxu0 0
        %1885 = vmatprep.subr.bf16.mxu0 0
        %1886 = vmatpush1.bf16.msra.mxu0 0
        %1887 = vmatprep.subr.bf16.mxu0 0
        %1888 = vmatpush1.bf16.msra.mxu0 0
        %1889 = vmatprep.subr.bf16.mxu0 0
        %1890 = vmatpush1.bf16.msra.mxu0 0
        %1891 = vmatprep.subr.bf16.mxu0 0
        %1892 = vmatpush1.bf16.msra.mxu0 0
        %1893 = vmatprep.subr.bf16.mxu0 0
        %1894 = vmatpush1.bf16.msra.mxu0 0
        %1895 = vmatprep.subr.bf16.mxu0 0
        %1896 = vmatpush1.bf16.msra.mxu0 0
        %1897 = vmatprep.subr.bf16.mxu0 0
        %1898 = vmatpush1.bf16.msra.mxu0 0
        %1899 = vmatprep.subr.bf16.mxu0 0
        %1900 = vmatpush1.bf16.msra.mxu0 0
        %1901 = vmatprep.subr.bf16.mxu0 0
        %1902 = vmatpush1.bf16.msra.mxu0 0
        %1903 = vmatprep.subr.bf16.mxu0 0
        %1904 = vmatpush1.bf16.msra.mxu0 0
        %1905 = vmatprep.subr.bf16.mxu0 0
        %1906 = vmatpush1.bf16.msra.mxu0 0
        %1907 = vmatprep.subr.bf16.mxu0 0
        %1908 = vmatpush1.bf16.msra.mxu0 0
        %1909 = vmatprep.subr.bf16.mxu0 0
        %1910 = vmatpush1.bf16.msra.mxu0 0
        %1911 = vmatprep.subr.bf16.mxu0 0
        %1912 = vmatpush1.bf16.msra.mxu0 0
        %1913 = vmatprep.mubr.bf16.mxu0 0
        %1914 = vmatmul.mubr.bf16.gmra.mrb[0].mxu0 %v1875
        %v1915 = vpop.f32.mrb[0].mxu0
        %v1916 = vadd.f32 0.0, %v1915
        %v1917 = vpop.f32.mrb[0].mxu0
        %v1918 = vpop.f32.mrb[0].mxu0
        %v1919 = vpop.f32.mrb[0].mxu0
        %1920 = vdwg.mxu0
        %v1922 = vsel %vm1825, %v1871, 0
        %v1925 = vsel %vm1877, %v1634, 0
        %1927 = vmatprep.subr.bf16.mxu0 0
        %1928 = vmatpush1.bf16.msra.mxu0 %v1925
        %1929 = vmatprep.subr.bf16.mxu0 0
        %1930 = vmatpush1.bf16.msra.mxu0 0
        %1931 = vmatprep.subr.bf16.mxu0 0
        %1932 = vmatpush1.bf16.msra.mxu0 0
        %1933 = vmatprep.subr.bf16.mxu0 0
        %1934 = vmatpush1.bf16.msra.mxu0 0
        %1935 = vmatprep.subr.bf16.mxu0 0
        %1936 = vmatpush1.bf16.msra.mxu0 0
        %1937 = vmatprep.subr.bf16.mxu0 0
        %1938 = vmatpush1.bf16.msra.mxu0 0
        %1939 = vmatprep.subr.bf16.mxu0 0
        %1940 = vmatpush1.bf16.msra.mxu0 0
        %1941 = vmatprep.subr.bf16.mxu0 0
        %1942 = vmatpush1.bf16.msra.mxu0 0
        %1943 = vmatprep.subr.bf16.mxu0 0
        %1944 = vmatpush1.bf16.msra.mxu0 0
        %1945 = vmatprep.subr.bf16.mxu0 0
        %1946 = vmatpush1.bf16.msra.mxu0 0
        %1947 = vmatprep.subr.bf16.mxu0 0
        %1948 = vmatpush1.bf16.msra.mxu0 0
        %1949 = vmatprep.subr.bf16.mxu0 0
        %1950 = vmatpush1.bf16.msra.mxu0 0
        %1951 = vmatprep.subr.bf16.mxu0 0
        %1952 = vmatpush1.bf16.msra.mxu0 0
        %1953 = vmatprep.subr.bf16.mxu0 0
        %1954 = vmatpush1.bf16.msra.mxu0 0
        %1955 = vmatprep.subr.bf16.mxu0 0
        %1956 = vmatpush1.bf16.msra.mxu0 0
        %1957 = vmatprep.subr.bf16.mxu0 0
        %1958 = vmatpush1.bf16.msra.mxu0 0
        %1959 = vmatprep.mubr.bf16.mxu0 0
        %1960 = vmatmul.mubr.bf16.gmra.mrb[0].mxu0 %v1922
        %v1961 = vpop.f32.mrb[0].mxu0
        %v1962 = vadd.f32 0.0, %v1961
        %v1963 = vpop.f32.mrb[0].mxu0
        %v1964 = vpop.f32.mrb[0].mxu0
        %v1965 = vpop.f32.mrb[0].mxu0
        %1966 = vdwg.mxu0
        %v1968 = vsel %vm1825, %v1872, 0
        %v1971 = vsel %vm1877, %v1635, 0
        %1973 = vmatprep.subr.bf16.mxu0 0
        %1974 = vmatpush1.bf16.msra.mxu0 %v1971
        %1975 = vmatprep.subr.bf16.mxu0 0
        %1976 = vmatpush1.bf16.msra.mxu0 0
        %1977 = vmatprep.subr.bf16.mxu0 0
        %1978 = vmatpush1.bf16.msra.mxu0 0
        %1979 = vmatprep.subr.bf16.mxu0 0
        %1980 = vmatpush1.bf16.msra.mxu0 0
        %1981 = vmatprep.subr.bf16.mxu0 0
        %1982 = vmatpush1.bf16.msra.mxu0 0
        %1983 = vmatprep.subr.bf16.mxu0 0
        %1984 = vmatpush1.bf16.msra.mxu0 0
        %1985 = vmatprep.subr.bf16.mxu0 0
        %1986 = vmatpush1.bf16.msra.mxu0 0
        %1987 = vmatprep.subr.bf16.mxu0 0
        %1988 = vmatpush1.bf16.msra.mxu0 0
        %1989 = vmatprep.subr.bf16.mxu0 0
        %1990 = vmatpush1.bf16.msra.mxu0 0
        %1991 = vmatprep.subr.bf16.mxu0 0
        %1992 = vmatpush1.bf16.msra.mxu0 0
        %1993 = vmatprep.subr.bf16.mxu0 0
        %1994 = vmatpush1.bf16.msra.mxu0 0
        %1995 = vmatprep.subr.bf16.mxu0 0
        %1996 = vmatpush1.bf16.msra.mxu0 0
        %1997 = vmatprep.subr.bf16.mxu0 0
        %1998 = vmatpush1.bf16.msra.mxu0 0
        %1999 = vmatprep.subr.bf16.mxu0 0
        %2000 = vmatpush1.bf16.msra.mxu0 0
        %2001 = vmatprep.subr.bf16.mxu0 0
        %2002 = vmatpush1.bf16.msra.mxu0 0
        %2003 = vmatprep.subr.bf16.mxu0 0
        %2004 = vmatpush1.bf16.msra.mxu0 0
        %2005 = vmatprep.mubr.bf16.mxu0 0
        %2006 = vmatmul.mubr.bf16.gmra.mrb[0].mxu0 %v1968
        %v2007 = vpop.f32.mrb[0].mxu0
        %v2008 = vadd.f32 0.0, %v2007
        %v2009 = vpop.f32.mrb[0].mxu0
        %v2010 = vpop.f32.mrb[0].mxu0
        %v2011 = vpop.f32.mrb[0].mxu0
        %2012 = vdwg.mxu0
        %v2014 = vsel %vm1825, %v1873, 0
        %v2017 = vsel %vm1877, %v1636, 0
        %2019 = vmatprep.subr.bf16.mxu0 0
        %2020 = vmatpush1.bf16.msra.mxu0 %v2017
        %2021 = vmatprep.subr.bf16.mxu0 0
        %2022 = vmatpush1.bf16.msra.mxu0 0
        %2023 = vmatprep.subr.bf16.mxu0 0
        %2024 = vmatpush1.bf16.msra.mxu0 0
        %2025 = vmatprep.subr.bf16.mxu0 0
        %2026 = vmatpush1.bf16.msra.mxu0 0
        %2027 = vmatprep.subr.bf16.mxu0 0
        %2028 = vmatpush1.bf16.msra.mxu0 0
        %2029 = vmatprep.subr.bf16.mxu0 0
        %2030 = vmatpush1.bf16.msra.mxu0 0
        %2031 = vmatprep.subr.bf16.mxu0 0
        %2032 = vmatpush1.bf16.msra.mxu0 0
        %2033 = vmatprep.subr.bf16.mxu0 0
        %2034 = vmatpush1.bf16.msra.mxu0 0
        %2035 = vmatprep.subr.bf16.mxu0 0
        %2036 = vmatpush1.bf16.msra.mxu0 0
        %2037 = vmatprep.subr.bf16.mxu0 0
        %2038 = vmatpush1.bf16.msra.mxu0 0
        %2039 = vmatprep.subr.bf16.mxu0 0
        %2040 = vmatpush1.bf16.msra.mxu0 0
        %2041 = vmatprep.subr.bf16.mxu0 0
        %2042 = vmatpush1.bf16.msra.mxu0 0
        %2043 = vmatprep.subr.bf16.mxu0 0
        %2044 = vmatpush1.bf16.msra.mxu0 0
        %2045 = vmatprep.subr.bf16.mxu0 0
        %2046 = vmatpush1.bf16.msra.mxu0 0
        %2047 = vmatprep.subr.bf16.mxu0 0
        %2048 = vmatpush1.bf16.msra.mxu0 0
        %2049 = vmatprep.subr.bf16.mxu0 0
        %2050 = vmatpush1.bf16.msra.mxu0 0
        %2051 = vmatprep.mubr.bf16.mxu0 0
        %2052 = vmatmul.mubr.bf16.gmra.mrb[0].mxu0 %v2014
        %v2053 = vpop.f32.mrb[0].mxu0
        %v2054 = vadd.f32 0.0, %v2053
        %v2055 = vpop.f32.mrb[0].mxu0
        %v2056 = vpop.f32.mrb[0].mxu0
        %v2057 = vpop.f32.mrb[0].mxu0
        %2058 = vdwg.mxu0
        %v2059 = vpack.c.bf16 %v1962, %v1916
        %v2060 = vpack.c.bf16 %v2054, %v2008
        %2061 = vst [vmem:[#allocation3] sm:$0xff] %v2059
        %2062 = vst [vmem:[#allocation3 + $0x10] sm:$0xff] %v2060
        %v2063 = vpack.c.bf16 %v1477, %v1477
        %v2064 = vpack.c.bf16 %v1481, %v1481
        %v2065 = vpack.c.bf16 %v1487, %v1487
        %v2066 = vpack.c.bf16 %v1491, %v1491
        %v2067 = vpack.c.bf16 %v1530, %v1530
        %v2068 = vpack.c.bf16 %v1534, %v1534
        %v2069 = vpack.c.bf16 %v1540, %v1540
        %v2070 = vpack.c.bf16 %v1544, %v1544
        %v2071 = vpack.c.bf16 %v1583, %v1583
        %v2072 = vpack.c.bf16 %v1587, %v1587
        %v2073 = vpack.c.bf16 %v1593, %v1593
        %v2074 = vpack.c.bf16 %v1597, %v1597
        %2075 = vmatprep.subr.bf16.mxu0 0
        %2076 = vmatpush1.bf16.xpose.msra.mxu0 %v2067
        %2077 = vmatprep.subr.bf16.mxu0 0
        %2078 = vmatpush1.bf16.xpose.msra.mxu0 0
        %2079 = vmatprep.subr.bf16.mxu0 0
        %2080 = vmatpush1.bf16.xpose.msra.mxu0 0
        %2081 = vmatprep.subr.bf16.mxu0 0
        %2082 = vmatpush1.bf16.xpose.msra.mxu0 0
        %2083 = vmatprep.subr.bf16.mxu0 0
        %2084 = vmatpush1.bf16.xpose.msra.mxu0 0
        %2085 = vmatprep.subr.bf16.mxu0 0
        %2086 = vmatpush1.bf16.xpose.msra.mxu0 0
        %2087 = vmatprep.subr.bf16.mxu0 0
        %2088 = vmatpush1.bf16.xpose.msra.mxu0 0
        %2089 = vmatprep.subr.bf16.mxu0 0
        %2090 = vmatpush1.bf16.xpose.msra.mxu0 0
        %2091 = vmatprep.subr.bf16.mxu0 0
        %2092 = vmatpush1.bf16.xpose.msra.mxu0 0
        %2093 = vmatprep.subr.bf16.mxu0 0
        %2094 = vmatpush1.bf16.xpose.msra.mxu0 0
        %2095 = vmatprep.subr.bf16.mxu0 0
        %2096 = vmatpush1.bf16.xpose.msra.mxu0 0
        %2097 = vmatprep.subr.bf16.mxu0 0
        %2098 = vmatpush1.bf16.xpose.msra.mxu0 0
        %2099 = vmatprep.subr.bf16.mxu0 0
        %2100 = vmatpush1.bf16.xpose.msra.mxu0 0
        %2101 = vmatprep.subr.bf16.mxu0 0
        %2102 = vmatpush1.bf16.xpose.msra.mxu0 0
        %2103 = vmatprep.subr.bf16.mxu0 0
        %2104 = vmatpush1.bf16.xpose.msra.mxu0 0
        %2105 = vmatprep.subr.bf16.mxu0 0
        %2106 = vmatpush1.bf16.xpose.msra.mxu0 0
        %2107 = vmatprep.mubr.bf16.mxu0 0
        %2108 = vmatmul.mubr.bf16.gmra.mrb[0].mxu0 %v2063
        %v2109 = vpop.f32.mrb[0].mxu0
        %v2110 = vadd.f32 0.0, %v2109
        %v2111 = vpop.f32.mrb[0].mxu0
        %v2112 = vpop.f32.mrb[0].mxu0
        %v2113 = vpop.f32.mrb[0].mxu0
        %2114 = vdwg.mxu0
        %2115 = vmatprep.subr.bf16.mxu0 0
        %2116 = vmatpush1.bf16.xpose.msra.mxu0 %v2068
        %2117 = vmatprep.subr.bf16.mxu0 0
        %2118 = vmatpush1.bf16.xpose.msra.mxu0 0
        %2119 = vmatprep.subr.bf16.mxu0 0
        %2120 = vmatpush1.bf16.xpose.msra.mxu0 0
        %2121 = vmatprep.subr.bf16.mxu0 0
        %2122 = vmatpush1.bf16.xpose.msra.mxu0 0
        %2123 = vmatprep.subr.bf16.mxu0 0
        %2124 = vmatpush1.bf16.xpose.msra.mxu0 0
        %2125 = vmatprep.subr.bf16.mxu0 0
        %2126 = vmatpush1.bf16.xpose.msra.mxu0 0
        %2127 = vmatprep.subr.bf16.mxu0 0
        %2128 = vmatpush1.bf16.xpose.msra.mxu0 0
        %2129 = vmatprep.subr.bf16.mxu0 0
        %2130 = vmatpush1.bf16.xpose.msra.mxu0 0
        %2131 = vmatprep.subr.bf16.mxu0 0
        %2132 = vmatpush1.bf16.xpose.msra.mxu0 0
        %2133 = vmatprep.subr.bf16.mxu0 0
        %2134 = vmatpush1.bf16.xpose.msra.mxu0 0
        %2135 = vmatprep.subr.bf16.mxu0 0
        %2136 = vmatpush1.bf16.xpose.msra.mxu0 0
        %2137 = vmatprep.subr.bf16.mxu0 0
        %2138 = vmatpush1.bf16.xpose.msra.mxu0 0
        %2139 = vmatprep.subr.bf16.mxu0 0
        %2140 = vmatpush1.bf16.xpose.msra.mxu0 0
        %2141 = vmatprep.subr.bf16.mxu0 0
        %2142 = vmatpush1.bf16.xpose.msra.mxu0 0
        %2143 = vmatprep.subr.bf16.mxu0 0
        %2144 = vmatpush1.bf16.xpose.msra.mxu0 0
        %2145 = vmatprep.subr.bf16.mxu0 0
        %2146 = vmatpush1.bf16.xpose.msra.mxu0 0
        %2147 = vmatprep.mubr.bf16.mxu0 0
        %2148 = vmatmul.mubr.bf16.gmra.mrb[0].mxu0 %v2064
        %v2149 = vpop.f32.mrb[0].mxu0
        %v2150 = vadd.f32 0.0, %v2149
        %v2151 = vpop.f32.mrb[0].mxu0
        %v2152 = vpop.f32.mrb[0].mxu0
        %v2153 = vpop.f32.mrb[0].mxu0
        %2154 = vdwg.mxu0
        %2155 = vmatprep.subr.bf16.mxu0 0
        %2156 = vmatpush1.bf16.xpose.msra.mxu0 %v2069
        %2157 = vmatprep.subr.bf16.mxu0 0
        %2158 = vmatpush1.bf16.xpose.msra.mxu0 0
        %2159 = vmatprep.subr.bf16.mxu0 0
        %2160 = vmatpush1.bf16.xpose.msra.mxu0 0
        %2161 = vmatprep.subr.bf16.mxu0 0
        %2162 = vmatpush1.bf16.xpose.msra.mxu0 0
        %2163 = vmatprep.subr.bf16.mxu0 0
        %2164 = vmatpush1.bf16.xpose.msra.mxu0 0
        %2165 = vmatprep.subr.bf16.mxu0 0
        %2166 = vmatpush1.bf16.xpose.msra.mxu0 0
        %2167 = vmatprep.subr.bf16.mxu0 0
        %2168 = vmatpush1.bf16.xpose.msra.mxu0 0
        %2169 = vmatprep.subr.bf16.mxu0 0
        %2170 = vmatpush1.bf16.xpose.msra.mxu0 0
        %2171 = vmatprep.subr.bf16.mxu0 0
        %2172 = vmatpush1.bf16.xpose.msra.mxu0 0
        %2173 = vmatprep.subr.bf16.mxu0 0
        %2174 = vmatpush1.bf16.xpose.msra.mxu0 0
        %2175 = vmatprep.subr.bf16.mxu0 0
        %2176 = vmatpush1.bf16.xpose.msra.mxu0 0
        %2177 = vmatprep.subr.bf16.mxu0 0
        %2178 = vmatpush1.bf16.xpose.msra.mxu0 0
        %2179 = vmatprep.subr.bf16.mxu0 0
        %2180 = vmatpush1.bf16.xpose.msra.mxu0 0
        %2181 = vmatprep.subr.bf16.mxu0 0
        %2182 = vmatpush1.bf16.xpose.msra.mxu0 0
        %2183 = vmatprep.subr.bf16.mxu0 0
        %2184 = vmatpush1.bf16.xpose.msra.mxu0 0
        %2185 = vmatprep.subr.bf16.mxu0 0
        %2186 = vmatpush1.bf16.xpose.msra.mxu0 0
        %2187 = vmatprep.mubr.bf16.mxu0 0
        %2188 = vmatmul.mubr.bf16.gmra.mrb[0].mxu0 %v2065
        %v2189 = vpop.f32.mrb[0].mxu0
        %v2190 = vadd.f32 0.0, %v2189
        %v2191 = vpop.f32.mrb[0].mxu0
        %v2192 = vpop.f32.mrb[0].mxu0
        %v2193 = vpop.f32.mrb[0].mxu0
        %2194 = vdwg.mxu0
        %2195 = vmatprep.subr.bf16.mxu0 0
        %2196 = vmatpush1.bf16.xpose.msra.mxu0 %v2070
        %2197 = vmatprep.subr.bf16.mxu0 0
        %2198 = vmatpush1.bf16.xpose.msra.mxu0 0
        %2199 = vmatprep.subr.bf16.mxu0 0
        %2200 = vmatpush1.bf16.xpose.msra.mxu0 0
        %2201 = vmatprep.subr.bf16.mxu0 0
        %2202 = vmatpush1.bf16.xpose.msra.mxu0 0
        %2203 = vmatprep.subr.bf16.mxu0 0
        %2204 = vmatpush1.bf16.xpose.msra.mxu0 0
        %2205 = vmatprep.subr.bf16.mxu0 0
        %2206 = vmatpush1.bf16.xpose.msra.mxu0 0
        %2207 = vmatprep.subr.bf16.mxu0 0
        %2208 = vmatpush1.bf16.xpose.msra.mxu0 0
        %2209 = vmatprep.subr.bf16.mxu0 0
        %2210 = vmatpush1.bf16.xpose.msra.mxu0 0
        %2211 = vmatprep.subr.bf16.mxu0 0
        %2212 = vmatpush1.bf16.xpose.msra.mxu0 0
        %2213 = vmatprep.subr.bf16.mxu0 0
        %2214 = vmatpush1.bf16.xpose.msra.mxu0 0
        %2215 = vmatprep.subr.bf16.mxu0 0
        %2216 = vmatpush1.bf16.xpose.msra.mxu0 0
        %2217 = vmatprep.subr.bf16.mxu0 0
        %2218 = vmatpush1.bf16.xpose.msra.mxu0 0
        %2219 = vmatprep.subr.bf16.mxu0 0
        %2220 = vmatpush1.bf16.xpose.msra.mxu0 0
        %2221 = vmatprep.subr.bf16.mxu0 0
        %2222 = vmatpush1.bf16.xpose.msra.mxu0 0
        %2223 = vmatprep.subr.bf16.mxu0 0
        %2224 = vmatpush1.bf16.xpose.msra.mxu0 0
        %2225 = vmatprep.subr.bf16.mxu0 0
        %2226 = vmatpush1.bf16.xpose.msra.mxu0 0
        %2227 = vmatprep.mubr.bf16.mxu0 0
        %2228 = vmatmul.mubr.bf16.gmra.mrb[0].mxu0 %v2066
        %v2229 = vpop.f32.mrb[0].mxu0
        %v2230 = vadd.f32 0.0, %v2229
        %v2231 = vpop.f32.mrb[0].mxu0
        %v2232 = vpop.f32.mrb[0].mxu0
        %v2233 = vpop.f32.mrb[0].mxu0
        %2234 = vdwg.mxu0
        %v2235 = vmul.f32 %v2110, 0.088388346
        %v2236 = vmul.f32 %v2150, 0.088388346
        %v2237 = vmul.f32 %v2190, 0.088388346
        %v2238 = vmul.f32 %v2230, 0.088388346
        %v2239 = vadd.f32 %v2235, %v1804
        %v2240 = vadd.f32 %v2236, %v1808
        %v2241 = vadd.f32 %v2237, %v1812
        %v2242 = vadd.f32 %v2238, %v1816
        %v2243 = vsel %vm1825, %v2239, -inf
        %2244 = vmax.xlane.f32.xlu0 %v2243
        %v2245 = vpop.xlane.xlu0 %2244
        %v2246 = vsel %vm1825, %v2240, -inf
        %2247 = vmax.xlane.f32.xlu0 %v2246
        %v2248 = vpop.xlane.xlu0 %2247
        %v2249 = vsel %vm1825, %v2241, -inf
        %2250 = vmax.xlane.f32.xlu0 %v2249
        %v2251 = vpop.xlane.xlu0 %2250
        %v2252 = vsel %vm1825, %v2242, -inf
        %2253 = vmax.xlane.f32.xlu0 %v2252
        %v2254 = vpop.xlane.xlu0 %2253
        %v2255 = vsub.f32 %v2239, %v2245
        %v2256 = vsub.f32 %v2240, %v2248
        %v2257 = vsub.f32 %v2241, %v2251
        %v2258 = vsub.f32 %v2242, %v2254
        %v2259 = vmul.f32 %v2255, 1.442695
        %v2260 = vpow.pop %v2259
        %v2261 = vmul.f32 %v2256, 1.442695
        %v2262 = vpow.pop %v2261
        %v2263 = vmul.f32 %v2257, 1.442695
        %v2264 = vpow.pop %v2263
        %v2265 = vmul.f32 %v2258, 1.442695
        %v2266 = vpow.pop %v2265
        %v2267 = vsel %vm1825, %v2260, 0.0
        %2268 = vadd.xlane.f32.xlu0 %v2267
        %v2269 = vpop.xlane.xlu0 %2268
        %v2270 = vsel %vm1825, %v2262, 0.0
        %2271 = vadd.xlane.f32.xlu0 %v2270
        %v2272 = vpop.xlane.xlu0 %2271
        %v2273 = vsel %vm1825, %v2264, 0.0
        %2274 = vadd.xlane.f32.xlu0 %v2273
        %v2275 = vpop.xlane.xlu0 %2274
        %v2276 = vsel %vm1825, %v2266, 0.0
        %2277 = vadd.xlane.f32.xlu0 %v2276
        %v2278 = vpop.xlane.xlu0 %2277
        %v2279 = vrcp.pop %v2269
        %v2280 = vrcp.pop %v2272
        %v2281 = vrcp.pop %v2275
        %v2282 = vrcp.pop %v2278
        %v2283 = vmul.f32 %v2260, %v2279
        %v2284 = vmul.f32 %v2262, %v2280
        %v2285 = vmul.f32 %v2264, %v2281
        %v2286 = vmul.f32 %v2266, %v2282
        %v2287 = vpack.c.bf16 %v2283, %v2283
        %v2288 = vpack.c.bf16 %v2284, %v2284
        %v2289 = vpack.c.bf16 %v2285, %v2285
        %v2290 = vpack.c.bf16 %v2286, %v2286
        %v2292 = vsel %vm1825, %v2287, 0
        %v2295 = vsel %vm1877, %v2071, 0
        %2297 = vmatprep.subr.bf16.mxu0 0
        %2298 = vmatpush1.bf16.msra.mxu0 %v2295
        %2299 = vmatprep.subr.bf16.mxu0 0
        %2300 = vmatpush1.bf16.msra.mxu0 0
        %2301 = vmatprep.subr.bf16.mxu0 0
        %2302 = vmatpush1.bf16.msra.mxu0 0
        %2303 = vmatprep.subr.bf16.mxu0 0
        %2304 = vmatpush1.bf16.msra.mxu0 0
        %2305 = vmatprep.subr.bf16.mxu0 0
        %2306 = vmatpush1.bf16.msra.mxu0 0
        %2307 = vmatprep.subr.bf16.mxu0 0
        %2308 = vmatpush1.bf16.msra.mxu0 0
        %2309 = vmatprep.subr.bf16.mxu0 0
        %2310 = vmatpush1.bf16.msra.mxu0 0
        %2311 = vmatprep.subr.bf16.mxu0 0
        %2312 = vmatpush1.bf16.msra.mxu0 0
        %2313 = vmatprep.subr.bf16.mxu0 0
        %2314 = vmatpush1.bf16.msra.mxu0 0
        %2315 = vmatprep.subr.bf16.mxu0 0
        %2316 = vmatpush1.bf16.msra.mxu0 0
        %2317 = vmatprep.subr.bf16.mxu0 0
        %2318 = vmatpush1.bf16.msra.mxu0 0
        %2319 = vmatprep.subr.bf16.mxu0 0
        %2320 = vmatpush1.bf16.msra.mxu0 0
        %2321 = vmatprep.subr.bf16.mxu0 0
        %2322 = vmatpush1.bf16.msra.mxu0 0
        %2323 = vmatprep.subr.bf16.mxu0 0
        %2324 = vmatpush1.bf16.msra.mxu0 0
        %2325 = vmatprep.subr.bf16.mxu0 0
        %2326 = vmatpush1.bf16.msra.mxu0 0
        %2327 = vmatprep.subr.bf16.mxu0 0
        %2328 = vmatpush1.bf16.msra.mxu0 0
        %2329 = vmatprep.mubr.bf16.mxu0 0
        %2330 = vmatmul.mubr.bf16.gmra.mrb[0].mxu0 %v2292
        %v2331 = vpop.f32.mrb[0].mxu0
        %v2332 = vadd.f32 0.0, %v2331
        %v2333 = vpop.f32.mrb[0].mxu0
        %v2334 = vpop.f32.mrb[0].mxu0
        %v2335 = vpop.f32.mrb[0].mxu0
        %2336 = vdwg.mxu0
        %v2338 = vsel %vm1825, %v2288, 0
        %v2341 = vsel %vm1877, %v2072, 0
        %2343 = vmatprep.subr.bf16.mxu0 0
        %2344 = vmatpush1.bf16.msra.mxu0 %v2341
        %2345 = vmatprep.subr.bf16.mxu0 0
        %2346 = vmatpush1.bf16.msra.mxu0 0
        %2347 = vmatprep.subr.bf16.mxu0 0
        %2348 = vmatpush1.bf16.msra.mxu0 0
        %2349 = vmatprep.subr.bf16.mxu0 0
        %2350 = vmatpush1.bf16.msra.mxu0 0
        %2351 = vmatprep.subr.bf16.mxu0 0
        %2352 = vmatpush1.bf16.msra.mxu0 0
        %2353 = vmatprep.subr.bf16.mxu0 0
        %2354 = vmatpush1.bf16.msra.mxu0 0
        %2355 = vmatprep.subr.bf16.mxu0 0
        %2356 = vmatpush1.bf16.msra.mxu0 0
        %2357 = vmatprep.subr.bf16.mxu0 0
        %2358 = vmatpush1.bf16.msra.mxu0 0
        %2359 = vmatprep.subr.bf16.mxu0 0
        %2360 = vmatpush1.bf16.msra.mxu0 0
        %2361 = vmatprep.subr.bf16.mxu0 0
        %2362 = vmatpush1.bf16.msra.mxu0 0
        %2363 = vmatprep.subr.bf16.mxu0 0
        %2364 = vmatpush1.bf16.msra.mxu0 0
        %2365 = vmatprep.subr.bf16.mxu0 0
        %2366 = vmatpush1.bf16.msra.mxu0 0
        %2367 = vmatprep.subr.bf16.mxu0 0
        %2368 = vmatpush1.bf16.msra.mxu0 0
        %2369 = vmatprep.subr.bf16.mxu0 0
        %2370 = vmatpush1.bf16.msra.mxu0 0
        %2371 = vmatprep.subr.bf16.mxu0 0
        %2372 = vmatpush1.bf16.msra.mxu0 0
        %2373 = vmatprep.subr.bf16.mxu0 0
        %2374 = vmatpush1.bf16.msra.mxu0 0
        %2375 = vmatprep.mubr.bf16.mxu0 0
        %2376 = vmatmul.mubr.bf16.gmra.mrb[0].mxu0 %v2338
        %v2377 = vpop.f32.mrb[0].mxu0
        %v2378 = vadd.f32 0.0, %v2377
        %v2379 = vpop.f32.mrb[0].mxu0
        %v2380 = vpop.f32.mrb[0].mxu0
        %v2381 = vpop.f32.mrb[0].mxu0
        %2382 = vdwg.mxu0
        %v2384 = vsel %vm1825, %v2289, 0
        %v2387 = vsel %vm1877, %v2073, 0
        %2389 = vmatprep.subr.bf16.mxu0 0
        %2390 = vmatpush1.bf16.msra.mxu0 %v2387
        %2391 = vmatprep.subr.bf16.mxu0 0
        %2392 = vmatpush1.bf16.msra.mxu0 0
        %2393 = vmatprep.subr.bf16.mxu0 0
        %2394 = vmatpush1.bf16.msra.mxu0 0
        %2395 = vmatprep.subr.bf16.mxu0 0
        %2396 = vmatpush1.bf16.msra.mxu0 0
        %2397 = vmatprep.subr.bf16.mxu0 0
        %2398 = vmatpush1.bf16.msra.mxu0 0
        %2399 = vmatprep.subr.bf16.mxu0 0
        %2400 = vmatpush1.bf16.msra.mxu0 0
        %2401 = vmatprep.subr.bf16.mxu0 0
        %2402 = vmatpush1.bf16.msra.mxu0 0
        %2403 = vmatprep.subr.bf16.mxu0 0
        %2404 = vmatpush1.bf16.msra.mxu0 0
        %2405 = vmatprep.subr.bf16.mxu0 0
        %2406 = vmatpush1.bf16.msra.mxu0 0
        %2407 = vmatprep.subr.bf16.mxu0 0
        %2408 = vmatpush1.bf16.msra.mxu0 0
        %2409 = vmatprep.subr.bf16.mxu0 0
        %2410 = vmatpush1.bf16.msra.mxu0 0
        %2411 = vmatprep.subr.bf16.mxu0 0
        %2412 = vmatpush1.bf16.msra.mxu0 0
        %2413 = vmatprep.subr.bf16.mxu0 0
        %2414 = vmatpush1.bf16.msra.mxu0 0
        %2415 = vmatprep.subr.bf16.mxu0 0
        %2416 = vmatpush1.bf16.msra.mxu0 0
        %2417 = vmatprep.subr.bf16.mxu0 0
        %2418 = vmatpush1.bf16.msra.mxu0 0
        %2419 = vmatprep.subr.bf16.mxu0 0
        %2420 = vmatpush1.bf16.msra.mxu0 0
        %2421 = vmatprep.mubr.bf16.mxu0 0
        %2422 = vmatmul.mubr.bf16.gmra.mrb[0].mxu0 %v2384
        %v2423 = vpop.f32.mrb[0].mxu0
        %v2424 = vadd.f32 0.0, %v2423
        %v2425 = vpop.f32.mrb[0].mxu0
        %v2426 = vpop.f32.mrb[0].mxu0
        %v2427 = vpop.f32.mrb[0].mxu0
        %2428 = vdwg.mxu0
        %v2430 = vsel %vm1825, %v2290, 0
        %v2433 = vsel %vm1877, %v2074, 0
        %2435 = vmatprep.subr.bf16.mxu0 0
        %2436 = vmatpush1.bf16.msra.mxu0 %v2433
        %2437 = vmatprep.subr.bf16.mxu0 0
        %2438 = vmatpush1.bf16.msra.mxu0 0
        %2439 = vmatprep.subr.bf16.mxu0 0
        %2440 = vmatpush1.bf16.msra.mxu0 0
        %2441 = vmatprep.subr.bf16.mxu0 0
        %2442 = vmatpush1.bf16.msra.mxu0 0
        %2443 = vmatprep.subr.bf16.mxu0 0
        %2444 = vmatpush1.bf16.msra.mxu0 0
        %2445 = vmatprep.subr.bf16.mxu0 0
        %2446 = vmatpush1.bf16.msra.mxu0 0
        %2447 = vmatprep.subr.bf16.mxu0 0
        %2448 = vmatpush1.bf16.msra.mxu0 0
        %2449 = vmatprep.subr.bf16.mxu0 0
        %2450 = vmatpush1.bf16.msra.mxu0 0
        %2451 = vmatprep.subr.bf16.mxu0 0
        %2452 = vmatpush1.bf16.msra.mxu0 0
        %2453 = vmatprep.subr.bf16.mxu0 0
        %2454 = vmatpush1.bf16.msra.mxu0 0
        %2455 = vmatprep.subr.bf16.mxu0 0
        %2456 = vmatpush1.bf16.msra.mxu0 0
        %2457 = vmatprep.subr.bf16.mxu0 0
        %2458 = vmatpush1.bf16.msra.mxu0 0
        %2459 = vmatprep.subr.bf16.mxu0 0
        %2460 = vmatpush1.bf16.msra.mxu0 0
        %2461 = vmatprep.subr.bf16.mxu0 0
        %2462 = vmatpush1.bf16.msra.mxu0 0
        %2463 = vmatprep.subr.bf16.mxu0 0
        %2464 = vmatpush1.bf16.msra.mxu0 0
        %2465 = vmatprep.subr.bf16.mxu0 0
        %2466 = vmatpush1.bf16.msra.mxu0 0
        %2467 = vmatprep.mubr.bf16.mxu0 0
        %2468 = vmatmul.mubr.bf16.gmra.mrb[0].mxu0 %v2430
        %v2469 = vpop.f32.mrb[0].mxu0
        %v2470 = vadd.f32 0.0, %v2469
        %v2471 = vpop.f32.mrb[0].mxu0
        %v2472 = vpop.f32.mrb[0].mxu0
        %v2473 = vpop.f32.mrb[0].mxu0
        %2474 = vdwg.mxu0
        %v2475 = vpack.c.bf16 %v2378, %v2332
        %v2476 = vpack.c.bf16 %v2470, %v2424
        %2477 = vst [vmem:[#allocation3 + $0x8] sm:$0xff] %v2475
        %2478 = vst [vmem:[#allocation3 + $0x18] sm:$0xff] %v2476
        %v2479 = vld [vmem:[#allocation3] sm:$0xff]
        %v2480 = vld [vmem:[#allocation3 + $0x8] sm:$0xff]
        %v2481 = vld [vmem:[#allocation3 + $0x10] sm:$0xff]
        %v2482 = vld [vmem:[#allocation3 + $0x18] sm:$0xff]
        %v2483 = vld [vmem:[%s663] sm:$0xff]
        %v2484 = vld [vmem:[%s663 + $0x8] sm:$0xff]
        %v2485 = vld [vmem:[%s663 + $0x10] sm:$0xff]
        %v2486 = vld [vmem:[%s663 + $0x18] sm:$0xff]
        %v2487 = vld [vmem:[%s663 + $0x20] sm:$0xff]
        %v2488 = vld [vmem:[%s663 + $0x28] sm:$0xff]
        %v2489 = vld [vmem:[%s663 + $0x30] sm:$0xff]
        %v2490 = vld [vmem:[%s663 + $0x38] sm:$0xff]
        %v2491 = vld [vmem:[%s663 + $0x40] sm:$0xff]
        %v2492 = vld [vmem:[%s663 + $0x48] sm:$0xff]
        %v2493 = vld [vmem:[%s663 + $0x50] sm:$0xff]
        %v2494 = vld [vmem:[%s663 + $0x58] sm:$0xff]
        %v2495 = vld [vmem:[%s663 + $0x60] sm:$0xff]
        %v2496 = vld [vmem:[%s663 + $0x68] sm:$0xff]
        %v2497 = vld [vmem:[%s663 + $0x70] sm:$0xff]
        %v2498 = vld [vmem:[%s663 + $0x78] sm:$0xff]
        %v2499 = vld [vmem:[%s663 + $0x80] sm:$0xff]
        %v2500 = vld [vmem:[%s663 + $0x88] sm:$0xff]
        %v2501 = vld [vmem:[%s663 + $0x90] sm:$0xff]
        %v2502 = vld [vmem:[%s663 + $0x98] sm:$0xff]
        %v2503 = vld [vmem:[%s663 + $0xa0] sm:$0xff]
        %v2504 = vld [vmem:[%s663 + $0xa8] sm:$0xff]
        %v2505 = vld [vmem:[%s663 + $0xb0] sm:$0xff]
        %v2506 = vld [vmem:[%s663 + $0xb8] sm:$0xff]
        %v2507 = vld [vmem:[%s663 + $0xc0] sm:$0xff]
        %v2508 = vld [vmem:[%s663 + $0xc8] sm:$0xff]
        %v2509 = vld [vmem:[%s663 + $0xd0] sm:$0xff]
        %v2510 = vld [vmem:[%s663 + $0xd8] sm:$0xff]
        %v2511 = vld [vmem:[%s663 + $0xe0] sm:$0xff]
        %v2512 = vld [vmem:[%s663 + $0xe8] sm:$0xff]
        %v2513 = vld [vmem:[%s663 + $0xf0] sm:$0xff]
        %v2514 = vld [vmem:[%s663 + $0xf8] sm:$0xff]
        %v2515 = vld [vmem:[%s773] sm:$0x3]
        %v2517 = vlaneseq
        %v2518 = vshrl.u32 %v2517, 7
        %v2519 = vsub.s32 0, %v2518
        %v2520 = vrot.slane %v2515, %v2519
        %v2521 = vlaneseq
        %v2522 = vshrl.u32 %v2521, 7
        %v2523 = vsub.s32 1, %v2522
        %v2524 = vrot.slane %v2515, %v2523
        %v2559 = vunpack.c.l.b16 %v2483
        %v2560 = vunpack.c.h.b16 %v2483
        %v2561 = vunpack.c.l.b16 %v2484
        %v2562 = vunpack.c.h.b16 %v2484
        %v2563 = vunpack.c.l.b16 %v2485
        %v2564 = vunpack.c.h.b16 %v2485
        %v2565 = vunpack.c.l.b16 %v2486
        %v2566 = vunpack.c.h.b16 %v2486
        %v2567 = vunpack.c.l.b16 %v2487
        %v2568 = vunpack.c.h.b16 %v2487
        %v2569 = vunpack.c.l.b16 %v2488
        %v2570 = vunpack.c.h.b16 %v2488
        %v2571 = vunpack.c.l.b16 %v2489
        %v2572 = vunpack.c.h.b16 %v2489
        %v2573 = vunpack.c.l.b16 %v2490
        %v2574 = vunpack.c.h.b16 %v2490
        %v2575 = vunpack.c.l.b16 %v2491
        %v2576 = vunpack.c.h.b16 %v2491
        %v2577 = vunpack.c.l.b16 %v2492
        %v2578 = vunpack.c.h.b16 %v2492
        %v2579 = vunpack.c.l.b16 %v2493
        %v2580 = vunpack.c.h.b16 %v2493
        %v2581 = vunpack.c.l.b16 %v2494
        %v2582 = vunpack.c.h.b16 %v2494
        %v2583 = vunpack.c.l.b16 %v2495
        %v2584 = vunpack.c.h.b16 %v2495
        %v2585 = vunpack.c.l.b16 %v2496
        %v2586 = vunpack.c.h.b16 %v2496
        %v2587 = vunpack.c.l.b16 %v2497
        %v2588 = vunpack.c.h.b16 %v2497
        %v2589 = vunpack.c.l.b16 %v2498
        %v2590 = vunpack.c.h.b16 %v2498
        %v2591 = vunpack.c.l.b16 %v2499
        %v2592 = vunpack.c.h.b16 %v2499
        %v2593 = vunpack.c.l.b16 %v2500
        %v2594 = vunpack.c.h.b16 %v2500
        %v2595 = vunpack.c.l.b16 %v2501
        %v2596 = vunpack.c.h.b16 %v2501
        %v2597 = vunpack.c.l.b16 %v2502
        %v2598 = vunpack.c.h.b16 %v2502
        %v2599 = vunpack.c.l.b16 %v2503
        %v2600 = vunpack.c.h.b16 %v2503
        %v2601 = vunpack.c.l.b16 %v2504
        %v2602 = vunpack.c.h.b16 %v2504
        %v2603 = vunpack.c.l.b16 %v2505
        %v2604 = vunpack.c.h.b16 %v2505
        %v2605 = vunpack.c.l.b16 %v2506
        %v2606 = vunpack.c.h.b16 %v2506
        %v2607 = vunpack.c.l.b16 %v2507
        %v2608 = vunpack.c.h.b16 %v2507
        %v2609 = vunpack.c.l.b16 %v2508
        %v2610 = vunpack.c.h.b16 %v2508
        %v2611 = vunpack.c.l.b16 %v2509
        %v2612 = vunpack.c.h.b16 %v2509
        %v2613 = vunpack.c.l.b16 %v2510
        %v2614 = vunpack.c.h.b16 %v2510
        %v2615 = vunpack.c.l.b16 %v2511
        %v2616 = vunpack.c.h.b16 %v2511
        %v2617 = vunpack.c.l.b16 %v2512
        %v2618 = vunpack.c.h.b16 %v2512
        %v2619 = vunpack.c.l.b16 %v2513
        %v2620 = vunpack.c.h.b16 %v2513
        %v2621 = vunpack.c.l.b16 %v2514
        %v2622 = vunpack.c.h.b16 %v2514
        %v2623 = vpack.c.b16 %v2561, %v2559
        %v2624 = vpack.c.b16 %v2562, %v2560
        %v2625 = vpack.c.b16 %v2565, %v2563
        %v2626 = vpack.c.b16 %v2566, %v2564
        %v2627 = vpack.c.b16 %v2569, %v2567
        %v2628 = vpack.c.b16 %v2570, %v2568
        %v2629 = vpack.c.b16 %v2573, %v2571
        %v2630 = vpack.c.b16 %v2574, %v2572
        %v2631 = vpack.c.b16 %v2577, %v2575
        %v2632 = vpack.c.b16 %v2578, %v2576
        %v2633 = vpack.c.b16 %v2581, %v2579
        %v2634 = vpack.c.b16 %v2582, %v2580
        %v2635 = vpack.c.b16 %v2585, %v2583
        %v2636 = vpack.c.b16 %v2586, %v2584
        %v2637 = vpack.c.b16 %v2589, %v2587
        %v2638 = vpack.c.b16 %v2590, %v2588
        %v2639 = vpack.c.b16 %v2593, %v2591
        %v2640 = vpack.c.b16 %v2594, %v2592
        %v2641 = vpack.c.b16 %v2597, %v2595
        %v2642 = vpack.c.b16 %v2598, %v2596
        %v2643 = vpack.c.b16 %v2601, %v2599
        %v2644 = vpack.c.b16 %v2602, %v2600
        %v2645 = vpack.c.b16 %v2605, %v2603
        %v2646 = vpack.c.b16 %v2606, %v2604
        %v2647 = vpack.c.b16 %v2609, %v2607
        %v2648 = vpack.c.b16 %v2610, %v2608
        %v2649 = vpack.c.b16 %v2613, %v2611
        %v2650 = vpack.c.b16 %v2614, %v2612
        %v2651 = vpack.c.b16 %v2617, %v2615
        %v2652 = vpack.c.b16 %v2618, %v2616
        %v2653 = vpack.c.b16 %v2621, %v2619
        %v2654 = vpack.c.b16 %v2622, %v2620
        %2687 = vmatprep.subr.bf16.mxu0 %v2624
        %2688 = vmatpush1.bf16.msra.mxu0 %v2623
        %2689 = vmatprep.subr.bf16.mxu0 %v2626
        %2690 = vmatpush1.bf16.msra.mxu0 %v2625
        %2691 = vmatprep.subr.bf16.mxu0 %v2628
        %2692 = vmatpush1.bf16.msra.mxu0 %v2627
        %2693 = vmatprep.subr.bf16.mxu0 %v2630
        %2694 = vmatpush1.bf16.msra.mxu0 %v2629
        %2695 = vmatprep.subr.bf16.mxu0 %v2632
        %2696 = vmatpush1.bf16.msra.mxu0 %v2631
        %2697 = vmatprep.subr.bf16.mxu0 %v2634
        %2698 = vmatpush1.bf16.msra.mxu0 %v2633
        %2699 = vmatprep.subr.bf16.mxu0 %v2636
        %2700 = vmatpush1.bf16.msra.mxu0 %v2635
        %2701 = vmatprep.subr.bf16.mxu0 %v2638
        %2702 = vmatpush1.bf16.msra.mxu0 %v2637
        %2703 = vmatprep.subr.bf16.mxu0 %v2640
        %2704 = vmatpush1.bf16.msra.mxu0 %v2639
        %2705 = vmatprep.subr.bf16.mxu0 %v2642
        %2706 = vmatpush1.bf16.msra.mxu0 %v2641
        %2707 = vmatprep.subr.bf16.mxu0 %v2644
        %2708 = vmatpush1.bf16.msra.mxu0 %v2643
        %2709 = vmatprep.subr.bf16.mxu0 %v2646
        %2710 = vmatpush1.bf16.msra.mxu0 %v2645
        %2711 = vmatprep.subr.bf16.mxu0 %v2648
        %2712 = vmatpush1.bf16.msra.mxu0 %v2647
        %2713 = vmatprep.subr.bf16.mxu0 %v2650
        %2714 = vmatpush1.bf16.msra.mxu0 %v2649
        %2715 = vmatprep.subr.bf16.mxu0 %v2652
        %2716 = vmatpush1.bf16.msra.mxu0 %v2651
        %2717 = vmatprep.subr.bf16.mxu0 %v2654
        %2718 = vmatpush1.bf16.msra.mxu0 %v2653
        %2719 = vmatprep.mubr.bf16.mxu0 %v2480
        %2720 = vmatmul.mubr.bf16.gmra.mrb[0].mxu0 %v2479
        %v2721 = vpop.f32.mrb[0].mxu0
        %v2722 = vadd.f32 %v2520, %v2721
        %v2723 = vpop.f32.mrb[0].mxu0
        %v2724 = vadd.f32 %v2524, %v2723
        %v2725 = vpop.f32.mrb[0].mxu0
        %v2726 = vadd.f32 %v2520, %v2725
        %v2727 = vpop.f32.mrb[0].mxu0
        %v2728 = vadd.f32 %v2524, %v2727
        %2729 = vmatprep.mubr.bf16.mxu0 %v2482
        %2730 = vmatmul.mubr.bf16.gmra.mrb[0].mxu0 %v2481
        %v2731 = vpop.f32.mrb[0].mxu0
        %v2732 = vadd.f32 %v2520, %v2731
        %v2733 = vpop.f32.mrb[0].mxu0
        %v2734 = vadd.f32 %v2524, %v2733
        %v2735 = vpop.f32.mrb[0].mxu0
        %v2736 = vadd.f32 %v2520, %v2735
        %v2737 = vpop.f32.mrb[0].mxu0
        %v2738 = vadd.f32 %v2524, %v2737
        %2739 = vdwg.mxu0
        %v2740 = vadd.f32 %v820, %v2722
        %v2741 = vadd.f32 %v821, %v2724
        %v2742 = vadd.f32 %v822, %v2726
        %v2743 = vadd.f32 %v823, %v2728
        %v2744 = vadd.f32 %v824, %v2732
        %v2745 = vadd.f32 %v825, %v2734
        %v2746 = vadd.f32 %v826, %v2736
        %v2747 = vadd.f32 %v827, %v2738
        %v2748 = vld [vmem:[%s785] sm:$0x3]
        %v2749 = vld [vmem:[%s789] sm:$0x3]
        %v2750 = vadd.f32 %v2740, %v2741
        %2751 = vadd.xlane.f32.xlu0 %v2750
        %v2752 = vpop.xlane.xlu0 %2751
        %v2753 = vadd.f32 %v2742, %v2743
        %2754 = vadd.xlane.f32.xlu0 %v2753
        %v2755 = vpop.xlane.xlu0 %2754
        %v2756 = vadd.f32 %v2744, %v2745
        %2757 = vadd.xlane.f32.xlu0 %v2756
        %v2758 = vpop.xlane.xlu0 %2757
        %v2759 = vadd.f32 %v2746, %v2747
        %2760 = vadd.xlane.f32.xlu0 %v2759
        %v2761 = vpop.xlane.xlu0 %2760
        %v2762 = vrcp.pop 256.0
        %v2763 = vmul.f32 %v2752, %v2762
        %v2764 = vmul.f32 %v2755, %v2762
        %v2765 = vmul.f32 %v2758, %v2762
        %v2766 = vmul.f32 %v2761, %v2762
        %v2767 = vsub.f32 %v2740, %v2763
        %v2768 = vsub.f32 %v2741, %v2763
        %v2769 = vsub.f32 %v2742, %v2764
        %v2770 = vsub.f32 %v2743, %v2764
        %v2771 = vsub.f32 %v2744, %v2765
        %v2772 = vsub.f32 %v2745, %v2765
        %v2773 = vsub.f32 %v2746, %v2766
        %v2774 = vsub.f32 %v2747, %v2766
        %v2775 = vmul.f32 %v2767, %v2767
        %v2776 = vmul.f32 %v2768, %v2768
        %v2777 = vmul.f32 %v2769, %v2769
        %v2778 = vmul.f32 %v2770, %v2770
        %v2779 = vmul.f32 %v2771, %v2771
        %v2780 = vmul.f32 %v2772, %v2772
        %v2781 = vmul.f32 %v2773, %v2773
        %v2782 = vmul.f32 %v2774, %v2774
        %v2783 = vadd.f32 %v2775, %v2776
        %2784 = vadd.xlane.f32.xlu0 %v2783
        %v2785 = vpop.xlane.xlu0 %2784
        %v2786 = vadd.f32 %v2777, %v2778
        %2787 = vadd.xlane.f32.xlu0 %v2786
        %v2788 = vpop.xlane.xlu0 %2787
        %v2789 = vadd.f32 %v2779, %v2780
        %2790 = vadd.xlane.f32.xlu0 %v2789
        %v2791 = vpop.xlane.xlu0 %2790
        %v2792 = vadd.f32 %v2781, %v2782
        %2793 = vadd.xlane.f32.xlu0 %v2792
        %v2794 = vpop.xlane.xlu0 %2793
        %v2795 = vmul.f32 %v2785, %v2762
        %v2796 = vmul.f32 %v2788, %v2762
        %v2797 = vmul.f32 %v2791, %v2762
        %v2798 = vmul.f32 %v2794, %v2762
        %v2799 = vadd.f32 %v2795, 1e-05
        %v2800 = vadd.f32 %v2796, 1e-05
        %v2801 = vadd.f32 %v2797, 1e-05
        %v2802 = vadd.f32 %v2798, 1e-05
        %v2803 = vrsqrt.pop %v2799
        %v2804 = vrsqrt.pop %v2800
        %v2805 = vrsqrt.pop %v2801
        %v2806 = vrsqrt.pop %v2802
        %v2807 = vmul.f32 %v2767, %v2803
        %v2808 = vmul.f32 %v2768, %v2803
        %v2809 = vmul.f32 %v2769, %v2804
        %v2810 = vmul.f32 %v2770, %v2804
        %v2811 = vmul.f32 %v2771, %v2805
        %v2812 = vmul.f32 %v2772, %v2805
        %v2813 = vmul.f32 %v2773, %v2806
        %v2814 = vmul.f32 %v2774, %v2806
        %v2816 = vlaneseq
        %v2817 = vshrl.u32 %v2816, 7
        %v2818 = vsub.s32 0, %v2817
        %v2819 = vrot.slane %v2748, %v2818
        %v2820 = vlaneseq
        %v2821 = vshrl.u32 %v2820, 7
        %v2822 = vsub.s32 1, %v2821
        %v2823 = vrot.slane %v2748, %v2822
        %v2826 = vmul.f32 %v2807, %v2819
        %v2827 = vmul.f32 %v2808, %v2823
        %v2828 = vmul.f32 %v2809, %v2819
        %v2829 = vmul.f32 %v2810, %v2823
        %v2830 = vmul.f32 %v2811, %v2819
        %v2831 = vmul.f32 %v2812, %v2823
        %v2832 = vmul.f32 %v2813, %v2819
        %v2833 = vmul.f32 %v2814, %v2823
        %v2835 = vlaneseq
        %v2836 = vshrl.u32 %v2835, 7
        %v2837 = vsub.s32 0, %v2836
        %v2838 = vrot.slane %v2749, %v2837
        %v2839 = vlaneseq
        %v2840 = vshrl.u32 %v2839, 7
        %v2841 = vsub.s32 1, %v2840
        %v2842 = vrot.slane %v2749, %v2841
        %v2845 = vadd.f32 %v2826, %v2838
        %v2846 = vadd.f32 %v2827, %v2842
        %v2847 = vadd.f32 %v2828, %v2838
        %v2848 = vadd.f32 %v2829, %v2842
        %v2849 = vadd.f32 %v2830, %v2838
        %v2850 = vadd.f32 %v2831, %v2842
        %v2851 = vadd.f32 %v2832, %v2838
        %v2852 = vadd.f32 %v2833, %v2842
        %v2853 = vpack.c.bf16 %v2847, %v2845
        %v2854 = vpack.c.bf16 %v2848, %v2846
        %v2855 = vpack.c.bf16 %v2851, %v2849
        %v2856 = vpack.c.bf16 %v2852, %v2850
        %v2857 = vld [vmem:[%s672] sm:$0xff]
        %v2858 = vld [vmem:[%s672 + $0x8] sm:$0xff]
        %v2859 = vld [vmem:[%s672 + $0x10] sm:$0xff]
        %v2860 = vld [vmem:[%s672 + $0x18] sm:$0xff]
        %v2861 = vld [vmem:[%s672 + $0x20] sm:$0xff]
        %v2862 = vld [vmem:[%s672 + $0x28] sm:$0xff]
        %v2863 = vld [vmem:[%s672 + $0x30] sm:$0xff]
        %v2864 = vld [vmem:[%s672 + $0x38] sm:$0xff]
        %v2865 = vld [vmem:[%s672 + $0x40] sm:$0xff]
        %v2866 = vld [vmem:[%s672 + $0x48] sm:$0xff]
        %v2867 = vld [vmem:[%s672 + $0x50] sm:$0xff]
        %v2868 = vld [vmem:[%s672 + $0x58] sm:$0xff]
        %v2869 = vld [vmem:[%s672 + $0x60] sm:$0xff]
        %v2870 = vld [vmem:[%s672 + $0x68] sm:$0xff]
        %v2871 = vld [vmem:[%s672 + $0x70] sm:$0xff]
        %v2872 = vld [vmem:[%s672 + $0x78] sm:$0xff]
        %v2873 = vld [vmem:[%s672 + $0x80] sm:$0xff]
        %v2874 = vld [vmem:[%s672 + $0x88] sm:$0xff]
        %v2875 = vld [vmem:[%s672 + $0x90] sm:$0xff]
        %v2876 = vld [vmem:[%s672 + $0x98] sm:$0xff]
        %v2877 = vld [vmem:[%s672 + $0xa0] sm:$0xff]
        %v2878 = vld [vmem:[%s672 + $0xa8] sm:$0xff]
        %v2879 = vld [vmem:[%s672 + $0xb0] sm:$0xff]
        %v2880 = vld [vmem:[%s672 + $0xb8] sm:$0xff]
        %v2881 = vld [vmem:[%s672 + $0xc0] sm:$0xff]
        %v2882 = vld [vmem:[%s672 + $0xc8] sm:$0xff]
        %v2883 = vld [vmem:[%s672 + $0xd0] sm:$0xff]
        %v2884 = vld [vmem:[%s672 + $0xd8] sm:$0xff]
        %v2885 = vld [vmem:[%s672 + $0xe0] sm:$0xff]
        %v2886 = vld [vmem:[%s672 + $0xe8] sm:$0xff]
        %v2887 = vld [vmem:[%s672 + $0xf0] sm:$0xff]
        %v2888 = vld [vmem:[%s672 + $0xf8] sm:$0xff]
        %v2889 = vld [vmem:[%s672 + $0x100] sm:$0xff]
        %v2890 = vld [vmem:[%s672 + $0x108] sm:$0xff]
        %v2891 = vld [vmem:[%s672 + $0x110] sm:$0xff]
        %v2892 = vld [vmem:[%s672 + $0x118] sm:$0xff]
        %v2893 = vld [vmem:[%s672 + $0x120] sm:$0xff]
        %v2894 = vld [vmem:[%s672 + $0x128] sm:$0xff]
        %v2895 = vld [vmem:[%s672 + $0x130] sm:$0xff]
        %v2896 = vld [vmem:[%s672 + $0x138] sm:$0xff]
        %v2897 = vld [vmem:[%s672 + $0x140] sm:$0xff]
        %v2898 = vld [vmem:[%s672 + $0x148] sm:$0xff]
        %v2899 = vld [vmem:[%s672 + $0x150] sm:$0xff]
        %v2900 = vld [vmem:[%s672 + $0x158] sm:$0xff]
        %v2901 = vld [vmem:[%s672 + $0x160] sm:$0xff]
        %v2902 = vld [vmem:[%s672 + $0x168] sm:$0xff]
        %v2903 = vld [vmem:[%s672 + $0x170] sm:$0xff]
        %v2904 = vld [vmem:[%s672 + $0x178] sm:$0xff]
        %v2905 = vld [vmem:[%s672 + $0x180] sm:$0xff]
        %v2906 = vld [vmem:[%s672 + $0x188] sm:$0xff]
        %v2907 = vld [vmem:[%s672 + $0x190] sm:$0xff]
        %v2908 = vld [vmem:[%s672 + $0x198] sm:$0xff]
        %v2909 = vld [vmem:[%s672 + $0x1a0] sm:$0xff]
        %v2910 = vld [vmem:[%s672 + $0x1a8] sm:$0xff]
        %v2911 = vld [vmem:[%s672 + $0x1b0] sm:$0xff]
        %v2912 = vld [vmem:[%s672 + $0x1b8] sm:$0xff]
        %v2913 = vld [vmem:[%s672 + $0x1c0] sm:$0xff]
        %v2914 = vld [vmem:[%s672 + $0x1c8] sm:$0xff]
        %v2915 = vld [vmem:[%s672 + $0x1d0] sm:$0xff]
        %v2916 = vld [vmem:[%s672 + $0x1d8] sm:$0xff]
        %v2917 = vld [vmem:[%s672 + $0x1e0] sm:$0xff]
        %v2918 = vld [vmem:[%s672 + $0x1e8] sm:$0xff]
        %v2919 = vld [vmem:[%s672 + $0x1f0] sm:$0xff]
        %v2920 = vld [vmem:[%s672 + $0x1f8] sm:$0xff]
        %v2921 = vld [vmem:[%s777] sm:$0xf]
        %v2923 = vlaneseq
        %v2924 = vshrl.u32 %v2923, 7
        %v2925 = vsub.s32 0, %v2924
        %v2926 = vrot.slane %v2921, %v2925
        %v2927 = vlaneseq
        %v2928 = vshrl.u32 %v2927, 7
        %v2929 = vsub.s32 1, %v2928
        %v2930 = vrot.slane %v2921, %v2929
        %v2931 = vlaneseq
        %v2932 = vshrl.u32 %v2931, 7
        %v2933 = vsub.s32 2, %v2932
        %v2934 = vrot.slane %v2921, %v2933
        %v2935 = vlaneseq
        %v2936 = vshrl.u32 %v2935, 7
        %v2937 = vsub.s32 3, %v2936
        %v2938 = vrot.slane %v2921, %v2937
        %v3007 = vunpack.c.l.b16 %v2857
        %v3008 = vunpack.c.h.b16 %v2857
        %v3009 = vunpack.c.l.b16 %v2858
        %v3010 = vunpack.c.h.b16 %v2858
        %v3011 = vunpack.c.l.b16 %v2859
        %v3012 = vunpack.c.h.b16 %v2859
        %v3013 = vunpack.c.l.b16 %v2860
        %v3014 = vunpack.c.h.b16 %v2860
        %v3015 = vunpack.c.l.b16 %v2861
        %v3016 = vunpack.c.h.b16 %v2861
        %v3017 = vunpack.c.l.b16 %v2862
        %v3018 = vunpack.c.h.b16 %v2862
        %v3019 = vunpack.c.l.b16 %v2863
        %v3020 = vunpack.c.h.b16 %v2863
        %v3021 = vunpack.c.l.b16 %v2864
        %v3022 = vunpack.c.h.b16 %v2864
        %v3023 = vunpack.c.l.b16 %v2865
        %v3024 = vunpack.c.h.b16 %v2865
        %v3025 = vunpack.c.l.b16 %v2866
        %v3026 = vunpack.c.h.b16 %v2866
        %v3027 = vunpack.c.l.b16 %v2867
        %v3028 = vunpack.c.h.b16 %v2867
        %v3029 = vunpack.c.l.b16 %v2868
        %v3030 = vunpack.c.h.b16 %v2868
        %v3031 = vunpack.c.l.b16 %v2869
        %v3032 = vunpack.c.h.b16 %v2869
        %v3033 = vunpack.c.l.b16 %v2870
        %v3034 = vunpack.c.h.b16 %v2870
        %v3035 = vunpack.c.l.b16 %v2871
        %v3036 = vunpack.c.h.b16 %v2871
        %v3037 = vunpack.c.l.b16 %v2872
        %v3038 = vunpack.c.h.b16 %v2872
        %v3039 = vunpack.c.l.b16 %v2873
        %v3040 = vunpack.c.h.b16 %v2873
        %v3041 = vunpack.c.l.b16 %v2874
        %v3042 = vunpack.c.h.b16 %v2874
        %v3043 = vunpack.c.l.b16 %v2875
        %v3044 = vunpack.c.h.b16 %v2875
        %v3045 = vunpack.c.l.b16 %v2876
        %v3046 = vunpack.c.h.b16 %v2876
        %v3047 = vunpack.c.l.b16 %v2877
        %v3048 = vunpack.c.h.b16 %v2877
        %v3049 = vunpack.c.l.b16 %v2878
        %v3050 = vunpack.c.h.b16 %v2878
        %v3051 = vunpack.c.l.b16 %v2879
        %v3052 = vunpack.c.h.b16 %v2879
        %v3053 = vunpack.c.l.b16 %v2880
        %v3054 = vunpack.c.h.b16 %v2880
        %v3055 = vunpack.c.l.b16 %v2881
        %v3056 = vunpack.c.h.b16 %v2881
        %v3057 = vunpack.c.l.b16 %v2882
        %v3058 = vunpack.c.h.b16 %v2882
        %v3059 = vunpack.c.l.b16 %v2883
        %v3060 = vunpack.c.h.b16 %v2883
        %v3061 = vunpack.c.l.b16 %v2884
        %v3062 = vunpack.c.h.b16 %v2884
        %v3063 = vunpack.c.l.b16 %v2885
        %v3064 = vunpack.c.h.b16 %v2885
        %v3065 = vunpack.c.l.b16 %v2886
        %v3066 = vunpack.c.h.b16 %v2886
        %v3067 = vunpack.c.l.b16 %v2887
        %v3068 = vunpack.c.h.b16 %v2887
        %v3069 = vunpack.c.l.b16 %v2888
        %v3070 = vunpack.c.h.b16 %v2888
        %v3071 = vunpack.c.l.b16 %v2889
        %v3072 = vunpack.c.h.b16 %v2889
        %v3073 = vunpack.c.l.b16 %v2890
        %v3074 = vunpack.c.h.b16 %v2890
        %v3075 = vunpack.c.l.b16 %v2891
        %v3076 = vunpack.c.h.b16 %v2891
        %v3077 = vunpack.c.l.b16 %v2892
        %v3078 = vunpack.c.h.b16 %v2892
        %v3079 = vunpack.c.l.b16 %v2893
        %v3080 = vunpack.c.h.b16 %v2893
        %v3081 = vunpack.c.l.b16 %v2894
        %v3082 = vunpack.c.h.b16 %v2894
        %v3083 = vunpack.c.l.b16 %v2895
        %v3084 = vunpack.c.h.b16 %v2895
        %v3085 = vunpack.c.l.b16 %v2896
        %v3086 = vunpack.c.h.b16 %v2896
        %v3087 = vunpack.c.l.b16 %v2897
        %v3088 = vunpack.c.h.b16 %v2897
        %v3089 = vunpack.c.l.b16 %v2898
        %v3090 = vunpack.c.h.b16 %v2898
        %v3091 = vunpack.c.l.b16 %v2899
        %v3092 = vunpack.c.h.b16 %v2899
        %v3093 = vunpack.c.l.b16 %v2900
        %v3094 = vunpack.c.h.b16 %v2900
        %v3095 = vunpack.c.l.b16 %v2901
        %v3096 = vunpack.c.h.b16 %v2901
        %v3097 = vunpack.c.l.b16 %v2902
        %v3098 = vunpack.c.h.b16 %v2902
        %v3099 = vunpack.c.l.b16 %v2903
        %v3100 = vunpack.c.h.b16 %v2903
        %v3101 = vunpack.c.l.b16 %v2904
        %v3102 = vunpack.c.h.b16 %v2904
        %v3103 = vunpack.c.l.b16 %v2905
        %v3104 = vunpack.c.h.b16 %v2905
        %v3105 = vunpack.c.l.b16 %v2906
        %v3106 = vunpack.c.h.b16 %v2906
        %v3107 = vunpack.c.l.b16 %v2907
        %v3108 = vunpack.c.h.b16 %v2907
        %v3109 = vunpack.c.l.b16 %v2908
        %v3110 = vunpack.c.h.b16 %v2908
        %v3111 = vunpack.c.l.b16 %v2909
        %v3112 = vunpack.c.h.b16 %v2909
        %v3113 = vunpack.c.l.b16 %v2910
        %v3114 = vunpack.c.h.b16 %v2910
        %v3115 = vunpack.c.l.b16 %v2911
        %v3116 = vunpack.c.h.b16 %v2911
        %v3117 = vunpack.c.l.b16 %v2912
        %v3118 = vunpack.c.h.b16 %v2912
        %v3119 = vunpack.c.l.b16 %v2913
        %v3120 = vunpack.c.h.b16 %v2913
        %v3121 = vunpack.c.l.b16 %v2914
        %v3122 = vunpack.c.h.b16 %v2914
        %v3123 = vunpack.c.l.b16 %v2915
        %v3124 = vunpack.c.h.b16 %v2915
        %v3125 = vunpack.c.l.b16 %v2916
        %v3126 = vunpack.c.h.b16 %v2916
        %v3127 = vunpack.c.l.b16 %v2917
        %v3128 = vunpack.c.h.b16 %v2917
        %v3129 = vunpack.c.l.b16 %v2918
        %v3130 = vunpack.c.h.b16 %v2918
        %v3131 = vunpack.c.l.b16 %v2919
        %v3132 = vunpack.c.h.b16 %v2919
        %v3133 = vunpack.c.l.b16 %v2920
        %v3134 = vunpack.c.h.b16 %v2920
        %v3135 = vpack.c.b16 %v3011, %v3007
        %v3136 = vpack.c.b16 %v3012, %v3008
        %v3137 = vpack.c.b16 %v3013, %v3009
        %v3138 = vpack.c.b16 %v3014, %v3010
        %v3139 = vpack.c.b16 %v3019, %v3015
        %v3140 = vpack.c.b16 %v3020, %v3016
        %v3141 = vpack.c.b16 %v3021, %v3017
        %v3142 = vpack.c.b16 %v3022, %v3018
        %v3143 = vpack.c.b16 %v3027, %v3023
        %v3144 = vpack.c.b16 %v3028, %v3024
        %v3145 = vpack.c.b16 %v3029, %v3025
        %v3146 = vpack.c.b16 %v3030, %v3026
        %v3147 = vpack.c.b16 %v3035, %v3031
        %v3148 = vpack.c.b16 %v3036, %v3032
        %v3149 = vpack.c.b16 %v3037, %v3033
        %v3150 = vpack.c.b16 %v3038, %v3034
        %v3151 = vpack.c.b16 %v3043, %v3039
        %v3152 = vpack.c.b16 %v3044, %v3040
        %v3153 = vpack.c.b16 %v3045, %v3041
        %v3154 = vpack.c.b16 %v3046, %v3042
        %v3155 = vpack.c.b16 %v3051, %v3047
        %v3156 = vpack.c.b16 %v3052, %v3048
        %v3157 = vpack.c.b16 %v3053, %v3049
        %v3158 = vpack.c.b16 %v3054, %v3050
        %v3159 = vpack.c.b16 %v3059, %v3055
        %v3160 = vpack.c.b16 %v3060, %v3056
        %v3161 = vpack.c.b16 %v3061, %v3057
        %v3162 = vpack.c.b16 %v3062, %v3058
        %v3163 = vpack.c.b16 %v3067, %v3063
        %v3164 = vpack.c.b16 %v3068, %v3064
        %v3165 = vpack.c.b16 %v3069, %v3065
        %v3166 = vpack.c.b16 %v3070, %v3066
        %v3167 = vpack.c.b16 %v3075, %v3071
        %v3168 = vpack.c.b16 %v3076, %v3072
        %v3169 = vpack.c.b16 %v3077, %v3073
        %v3170 = vpack.c.b16 %v3078, %v3074
        %v3171 = vpack.c.b16 %v3083, %v3079
        %v3172 = vpack.c.b16 %v3084, %v3080
        %v3173 = vpack.c.b16 %v3085, %v3081
        %v3174 = vpack.c.b16 %v3086, %v3082
        %v3175 = vpack.c.b16 %v3091, %v3087
        %v3176 = vpack.c.b16 %v3092, %v3088
        %v3177 = vpack.c.b16 %v3093, %v3089
        %v3178 = vpack.c.b16 %v3094, %v3090
        %v3179 = vpack.c.b16 %v3099, %v3095
        %v3180 = vpack.c.b16 %v3100, %v3096
        %v3181 = vpack.c.b16 %v3101, %v3097
        %v3182 = vpack.c.b16 %v3102, %v3098
        %v3183 = vpack.c.b16 %v3107, %v3103
        %v3184 = vpack.c.b16 %v3108, %v3104
        %v3185 = vpack.c.b16 %v3109, %v3105
        %v3186 = vpack.c.b16 %v3110, %v3106
        %v3187 = vpack.c.b16 %v3115, %v3111
        %v3188 = vpack.c.b16 %v3116, %v3112
        %v3189 = vpack.c.b16 %v3117, %v3113
        %v3190 = vpack.c.b16 %v3118, %v3114
        %v3191 = vpack.c.b16 %v3123, %v3119
        %v3192 = vpack.c.b16 %v3124, %v3120
        %v3193 = vpack.c.b16 %v3125, %v3121
        %v3194 = vpack.c.b16 %v3126, %v3122
        %v3195 = vpack.c.b16 %v3131, %v3127
        %v3196 = vpack.c.b16 %v3132, %v3128
        %v3197 = vpack.c.b16 %v3133, %v3129
        %v3198 = vpack.c.b16 %v3134, %v3130
        %3263 = vmatprep.subr.bf16.mxu0 %v3136
        %3264 = vmatpush1.bf16.msra.mxu0 %v3135
        %3265 = vmatprep.subr.bf16.mxu0 %v3140
        %3266 = vmatpush1.bf16.msra.mxu0 %v3139
        %3267 = vmatprep.subr.bf16.mxu0 %v3144
        %3268 = vmatpush1.bf16.msra.mxu0 %v3143
        %3269 = vmatprep.subr.bf16.mxu0 %v3148
        %3270 = vmatpush1.bf16.msra.mxu0 %v3147
        %3271 = vmatprep.subr.bf16.mxu0 %v3152
        %3272 = vmatpush1.bf16.msra.mxu0 %v3151
        %3273 = vmatprep.subr.bf16.mxu0 %v3156
        %3274 = vmatpush1.bf16.msra.mxu0 %v3155
        %3275 = vmatprep.subr.bf16.mxu0 %v3160
        %3276 = vmatpush1.bf16.msra.mxu0 %v3159
        %3277 = vmatprep.subr.bf16.mxu0 %v3164
        %3278 = vmatpush1.bf16.msra.mxu0 %v3163
        %3279 = vmatprep.subr.bf16.mxu0 %v3168
        %3280 = vmatpush1.bf16.msra.mxu0 %v3167
        %3281 = vmatprep.subr.bf16.mxu0 %v3172
        %3282 = vmatpush1.bf16.msra.mxu0 %v3171
        %3283 = vmatprep.subr.bf16.mxu0 %v3176
        %3284 = vmatpush1.bf16.msra.mxu0 %v3175
        %3285 = vmatprep.subr.bf16.mxu0 %v3180
        %3286 = vmatpush1.bf16.msra.mxu0 %v3179
        %3287 = vmatprep.subr.bf16.mxu0 %v3184
        %3288 = vmatpush1.bf16.msra.mxu0 %v3183
        %3289 = vmatprep.subr.bf16.mxu0 %v3188
        %3290 = vmatpush1.bf16.msra.mxu0 %v3187
        %3291 = vmatprep.subr.bf16.mxu0 %v3192
        %3292 = vmatpush1.bf16.msra.mxu0 %v3191
        %3293 = vmatprep.subr.bf16.mxu0 %v3196
        %3294 = vmatpush1.bf16.msra.mxu0 %v3195
        %3295 = vmatprep.mubr.bf16.mxu0 %v2854
        %3296 = vmatmul.mubr.bf16.gmra.mrb[0].mxu0 %v2853
        %v3297 = vpop.f32.mrb[0].mxu0
        %v3298 = vadd.f32 %v2926, %v3297
        %v3299 = vpop.f32.mrb[0].mxu0
        %v3300 = vadd.f32 %v2930, %v3299
        %v3301 = vpop.f32.mrb[0].mxu0
        %v3302 = vadd.f32 %v2926, %v3301
        %v3303 = vpop.f32.mrb[0].mxu0
        %v3304 = vadd.f32 %v2930, %v3303
        %3305 = vmatprep.mubr.bf16.mxu0 %v2856
        %3306 = vmatmul.mubr.bf16.gmra.mrb[0].mxu0 %v2855
        %v3307 = vpop.f32.mrb[0].mxu0
        %v3308 = vadd.f32 %v2926, %v3307
        %v3309 = vpop.f32.mrb[0].mxu0
        %v3310 = vadd.f32 %v2930, %v3309
        %v3311 = vpop.f32.mrb[0].mxu0
        %v3312 = vadd.f32 %v2926, %v3311
        %v3313 = vpop.f32.mrb[0].mxu0
        %v3314 = vadd.f32 %v2930, %v3313
        %3315 = vdwg.mxu0
        %3316 = vmatprep.subr.bf16.mxu0 %v3138
        %3317 = vmatpush1.bf16.msra.mxu0 %v3137
        %3318 = vmatprep.subr.bf16.mxu0 %v3142
        %3319 = vmatpush1.bf16.msra.mxu0 %v3141
        %3320 = vmatprep.subr.bf16.mxu0 %v3146
        %3321 = vmatpush1.bf16.msra.mxu0 %v3145
        %3322 = vmatprep.subr.bf16.mxu0 %v3150
        %3323 = vmatpush1.bf16.msra.mxu0 %v3149
        %3324 = vmatprep.subr.bf16.mxu0 %v3154
        %3325 = vmatpush1.bf16.msra.mxu0 %v3153
        %3326 = vmatprep.subr.bf16.mxu0 %v3158
        %3327 = vmatpush1.bf16.msra.mxu0 %v3157
        %3328 = vmatprep.subr.bf16.mxu0 %v3162
        %3329 = vmatpush1.bf16.msra.mxu0 %v3161
        %3330 = vmatprep.subr.bf16.mxu0 %v3166
        %3331 = vmatpush1.bf16.msra.mxu0 %v3165
        %3332 = vmatprep.subr.bf16.mxu0 %v3170
        %3333 = vmatpush1.bf16.msra.mxu0 %v3169
        %3334 = vmatprep.subr.bf16.mxu0 %v3174
        %3335 = vmatpush1.bf16.msra.mxu0 %v3173
        %3336 = vmatprep.subr.bf16.mxu0 %v3178
        %3337 = vmatpush1.bf16.msra.mxu0 %v3177
        %3338 = vmatprep.subr.bf16.mxu0 %v3182
        %3339 = vmatpush1.bf16.msra.mxu0 %v3181
        %3340 = vmatprep.subr.bf16.mxu0 %v3186
        %3341 = vmatpush1.bf16.msra.mxu0 %v3185
        %3342 = vmatprep.subr.bf16.mxu0 %v3190
        %3343 = vmatpush1.bf16.msra.mxu0 %v3189
        %3344 = vmatprep.subr.bf16.mxu0 %v3194
        %3345 = vmatpush1.bf16.msra.mxu0 %v3193
        %3346 = vmatprep.subr.bf16.mxu0 %v3198
        %3347 = vmatpush1.bf16.msra.mxu0 %v3197
        %3348 = vmatprep.mubr.bf16.mxu0 %v2854
        %3349 = vmatmul.mubr.bf16.gmra.mrb[0].mxu0 %v2853
        %v3350 = vpop.f32.mrb[0].mxu0
        %v3351 = vadd.f32 %v2934, %v3350
        %v3352 = vpop.f32.mrb[0].mxu0
        %v3353 = vadd.f32 %v2938, %v3352
        %v3354 = vpop.f32.mrb[0].mxu0
        %v3355 = vadd.f32 %v2934, %v3354
        %v3356 = vpop.f32.mrb[0].mxu0
        %v3357 = vadd.f32 %v2938, %v3356
        %3358 = vmatprep.mubr.bf16.mxu0 %v2856
        %3359 = vmatmul.mubr.bf16.gmra.mrb[0].mxu0 %v2855
        %v3360 = vpop.f32.mrb[0].mxu0
        %v3361 = vadd.f32 %v2934, %v3360
        %v3362 = vpop.f32.mrb[0].mxu0
        %v3363 = vadd.f32 %v2938, %v3362
        %v3364 = vpop.f32.mrb[0].mxu0
        %v3365 = vadd.f32 %v2934, %v3364
        %v3366 = vpop.f32.mrb[0].mxu0
        %v3367 = vadd.f32 %v2938, %v3366
        %3368 = vdwg.mxu0
        %v3369 = vmax.f32 %v3298, 0.0
        %v3370 = vmax.f32 %v3300, 0.0
        %v3371 = vmax.f32 %v3351, 0.0
        %v3372 = vmax.f32 %v3353, 0.0
        %v3373 = vmax.f32 %v3302, 0.0
        %v3374 = vmax.f32 %v3304, 0.0
        %v3375 = vmax.f32 %v3355, 0.0
        %v3376 = vmax.f32 %v3357, 0.0
        %v3377 = vmax.f32 %v3308, 0.0
        %v3378 = vmax.f32 %v3310, 0.0
        %v3379 = vmax.f32 %v3361, 0.0
        %v3380 = vmax.f32 %v3363, 0.0
        %v3381 = vmax.f32 %v3312, 0.0
        %v3382 = vmax.f32 %v3314, 0.0
        %v3383 = vmax.f32 %v3365, 0.0
        %v3384 = vmax.f32 %v3367, 0.0
        %v3385 = vpack.c.bf16 %v3373, %v3369
        %v3386 = vpack.c.bf16 %v3374, %v3370
        %v3387 = vpack.c.bf16 %v3375, %v3371
        %v3388 = vpack.c.bf16 %v3376, %v3372
        %v3389 = vpack.c.bf16 %v3381, %v3377
        %v3390 = vpack.c.bf16 %v3382, %v3378
        %v3391 = vpack.c.bf16 %v3383, %v3379
        %v3392 = vpack.c.bf16 %v3384, %v3380
        %v3393 = vld [vmem:[%s681] sm:$0xff]
        %v3394 = vld [vmem:[%s681 + $0x8] sm:$0xff]
        %v3395 = vld [vmem:[%s681 + $0x10] sm:$0xff]
        %v3396 = vld [vmem:[%s681 + $0x18] sm:$0xff]
        %v3397 = vld [vmem:[%s681 + $0x20] sm:$0xff]
        %v3398 = vld [vmem:[%s681 + $0x28] sm:$0xff]
        %v3399 = vld [vmem:[%s681 + $0x30] sm:$0xff]
        %v3400 = vld [vmem:[%s681 + $0x38] sm:$0xff]
        %v3401 = vld [vmem:[%s681 + $0x40] sm:$0xff]
        %v3402 = vld [vmem:[%s681 + $0x48] sm:$0xff]
        %v3403 = vld [vmem:[%s681 + $0x50] sm:$0xff]
        %v3404 = vld [vmem:[%s681 + $0x58] sm:$0xff]
        %v3405 = vld [vmem:[%s681 + $0x60] sm:$0xff]
        %v3406 = vld [vmem:[%s681 + $0x68] sm:$0xff]
        %v3407 = vld [vmem:[%s681 + $0x70] sm:$0xff]
        %v3408 = vld [vmem:[%s681 + $0x78] sm:$0xff]
        %v3409 = vld [vmem:[%s681 + $0x80] sm:$0xff]
        %v3410 = vld [vmem:[%s681 + $0x88] sm:$0xff]
        %v3411 = vld [vmem:[%s681 + $0x90] sm:$0xff]
        %v3412 = vld [vmem:[%s681 + $0x98] sm:$0xff]
        %v3413 = vld [vmem:[%s681 + $0xa0] sm:$0xff]
        %v3414 = vld [vmem:[%s681 + $0xa8] sm:$0xff]
        %v3415 = vld [vmem:[%s681 + $0xb0] sm:$0xff]
        %v3416 = vld [vmem:[%s681 + $0xb8] sm:$0xff]
        %v3417 = vld [vmem:[%s681 + $0xc0] sm:$0xff]
        %v3418 = vld [vmem:[%s681 + $0xc8] sm:$0xff]
        %v3419 = vld [vmem:[%s681 + $0xd0] sm:$0xff]
        %v3420 = vld [vmem:[%s681 + $0xd8] sm:$0xff]
        %v3421 = vld [vmem:[%s681 + $0xe0] sm:$0xff]
        %v3422 = vld [vmem:[%s681 + $0xe8] sm:$0xff]
        %v3423 = vld [vmem:[%s681 + $0xf0] sm:$0xff]
        %v3424 = vld [vmem:[%s681 + $0xf8] sm:$0xff]
        %v3425 = vld [vmem:[%s681 + $0x100] sm:$0xff]
        %v3426 = vld [vmem:[%s681 + $0x108] sm:$0xff]
        %v3427 = vld [vmem:[%s681 + $0x110] sm:$0xff]
        %v3428 = vld [vmem:[%s681 + $0x118] sm:$0xff]
        %v3429 = vld [vmem:[%s681 + $0x120] sm:$0xff]
        %v3430 = vld [vmem:[%s681 + $0x128] sm:$0xff]
        %v3431 = vld [vmem:[%s681 + $0x130] sm:$0xff]
        %v3432 = vld [vmem:[%s681 + $0x138] sm:$0xff]
        %v3433 = vld [vmem:[%s681 + $0x140] sm:$0xff]
        %v3434 = vld [vmem:[%s681 + $0x148] sm:$0xff]
        %v3435 = vld [vmem:[%s681 + $0x150] sm:$0xff]
        %v3436 = vld [vmem:[%s681 + $0x158] sm:$0xff]
        %v3437 = vld [vmem:[%s681 + $0x160] sm:$0xff]
        %v3438 = vld [vmem:[%s681 + $0x168] sm:$0xff]
        %v3439 = vld [vmem:[%s681 + $0x170] sm:$0xff]
        %v3440 = vld [vmem:[%s681 + $0x178] sm:$0xff]
        %v3441 = vld [vmem:[%s681 + $0x180] sm:$0xff]
        %v3442 = vld [vmem:[%s681 + $0x188] sm:$0xff]
        %v3443 = vld [vmem:[%s681 + $0x190] sm:$0xff]
        %v3444 = vld [vmem:[%s681 + $0x198] sm:$0xff]
        %v3445 = vld [vmem:[%s681 + $0x1a0] sm:$0xff]
        %v3446 = vld [vmem:[%s681 + $0x1a8] sm:$0xff]
        %v3447 = vld [vmem:[%s681 + $0x1b0] sm:$0xff]
        %v3448 = vld [vmem:[%s681 + $0x1b8] sm:$0xff]
        %v3449 = vld [vmem:[%s681 + $0x1c0] sm:$0xff]
        %v3450 = vld [vmem:[%s681 + $0x1c8] sm:$0xff]
        %v3451 = vld [vmem:[%s681 + $0x1d0] sm:$0xff]
        %v3452 = vld [vmem:[%s681 + $0x1d8] sm:$0xff]
        %v3453 = vld [vmem:[%s681 + $0x1e0] sm:$0xff]
        %v3454 = vld [vmem:[%s681 + $0x1e8] sm:$0xff]
        %v3455 = vld [vmem:[%s681 + $0x1f0] sm:$0xff]
        %v3456 = vld [vmem:[%s681 + $0x1f8] sm:$0xff]
        %v3457 = vld [vmem:[%s781] sm:$0x3]
        %v3459 = vlaneseq
        %v3460 = vshrl.u32 %v3459, 7
        %v3461 = vsub.s32 0, %v3460
        %v3462 = vrot.slane %v3457, %v3461
        %v3463 = vlaneseq
        %v3464 = vshrl.u32 %v3463, 7
        %v3465 = vsub.s32 1, %v3464
        %v3466 = vrot.slane %v3457, %v3465
        %v3533 = vunpack.c.l.b16 %v3393
        %v3534 = vunpack.c.h.b16 %v3393
        %v3535 = vunpack.c.l.b16 %v3394
        %v3536 = vunpack.c.h.b16 %v3394
        %v3537 = vunpack.c.l.b16 %v3395
        %v3538 = vunpack.c.h.b16 %v3395
        %v3539 = vunpack.c.l.b16 %v3396
        %v3540 = vunpack.c.h.b16 %v3396
        %v3541 = vunpack.c.l.b16 %v3397
        %v3542 = vunpack.c.h.b16 %v3397
        %v3543 = vunpack.c.l.b16 %v3398
        %v3544 = vunpack.c.h.b16 %v3398
        %v3545 = vunpack.c.l.b16 %v3399
        %v3546 = vunpack.c.h.b16 %v3399
        %v3547 = vunpack.c.l.b16 %v3400
        %v3548 = vunpack.c.h.b16 %v3400
        %v3549 = vunpack.c.l.b16 %v3401
        %v3550 = vunpack.c.h.b16 %v3401
        %v3551 = vunpack.c.l.b16 %v3402
        %v3552 = vunpack.c.h.b16 %v3402
        %v3553 = vunpack.c.l.b16 %v3403
        %v3554 = vunpack.c.h.b16 %v3403
        %v3555 = vunpack.c.l.b16 %v3404
        %v3556 = vunpack.c.h.b16 %v3404
        %v3557 = vunpack.c.l.b16 %v3405
        %v3558 = vunpack.c.h.b16 %v3405
        %v3559 = vunpack.c.l.b16 %v3406
        %v3560 = vunpack.c.h.b16 %v3406
        %v3561 = vunpack.c.l.b16 %v3407
        %v3562 = vunpack.c.h.b16 %v3407
        %v3563 = vunpack.c.l.b16 %v3408
        %v3564 = vunpack.c.h.b16 %v3408
        %v3565 = vunpack.c.l.b16 %v3409
        %v3566 = vunpack.c.h.b16 %v3409
        %v3567 = vunpack.c.l.b16 %v3410
        %v3568 = vunpack.c.h.b16 %v3410
        %v3569 = vunpack.c.l.b16 %v3411
        %v3570 = vunpack.c.h.b16 %v3411
        %v3571 = vunpack.c.l.b16 %v3412
        %v3572 = vunpack.c.h.b16 %v3412
        %v3573 = vunpack.c.l.b16 %v3413
        %v3574 = vunpack.c.h.b16 %v3413
        %v3575 = vunpack.c.l.b16 %v3414
        %v3576 = vunpack.c.h.b16 %v3414
        %v3577 = vunpack.c.l.b16 %v3415
        %v3578 = vunpack.c.h.b16 %v3415
        %v3579 = vunpack.c.l.b16 %v3416
        %v3580 = vunpack.c.h.b16 %v3416
        %v3581 = vunpack.c.l.b16 %v3417
        %v3582 = vunpack.c.h.b16 %v3417
        %v3583 = vunpack.c.l.b16 %v3418
        %v3584 = vunpack.c.h.b16 %v3418
        %v3585 = vunpack.c.l.b16 %v3419
        %v3586 = vunpack.c.h.b16 %v3419
        %v3587 = vunpack.c.l.b16 %v3420
        %v3588 = vunpack.c.h.b16 %v3420
        %v3589 = vunpack.c.l.b16 %v3421
        %v3590 = vunpack.c.h.b16 %v3421
        %v3591 = vunpack.c.l.b16 %v3422
        %v3592 = vunpack.c.h.b16 %v3422
        %v3593 = vunpack.c.l.b16 %v3423
        %v3594 = vunpack.c.h.b16 %v3423
        %v3595 = vunpack.c.l.b16 %v3424
        %v3596 = vunpack.c.h.b16 %v3424
        %v3597 = vunpack.c.l.b16 %v3425
        %v3598 = vunpack.c.h.b16 %v3425
        %v3599 = vunpack.c.l.b16 %v3426
        %v3600 = vunpack.c.h.b16 %v3426
        %v3601 = vunpack.c.l.b16 %v3427
        %v3602 = vunpack.c.h.b16 %v3427
        %v3603 = vunpack.c.l.b16 %v3428
        %v3604 = vunpack.c.h.b16 %v3428
        %v3605 = vunpack.c.l.b16 %v3429
        %v3606 = vunpack.c.h.b16 %v3429
        %v3607 = vunpack.c.l.b16 %v3430
        %v3608 = vunpack.c.h.b16 %v3430
        %v3609 = vunpack.c.l.b16 %v3431
        %v3610 = vunpack.c.h.b16 %v3431
        %v3611 = vunpack.c.l.b16 %v3432
        %v3612 = vunpack.c.h.b16 %v3432
        %v3613 = vunpack.c.l.b16 %v3433
        %v3614 = vunpack.c.h.b16 %v3433
        %v3615 = vunpack.c.l.b16 %v3434
        %v3616 = vunpack.c.h.b16 %v3434
        %v3617 = vunpack.c.l.b16 %v3435
        %v3618 = vunpack.c.h.b16 %v3435
        %v3619 = vunpack.c.l.b16 %v3436
        %v3620 = vunpack.c.h.b16 %v3436
        %v3621 = vunpack.c.l.b16 %v3437
        %v3622 = vunpack.c.h.b16 %v3437
        %v3623 = vunpack.c.l.b16 %v3438
        %v3624 = vunpack.c.h.b16 %v3438
        %v3625 = vunpack.c.l.b16 %v3439
        %v3626 = vunpack.c.h.b16 %v3439
        %v3627 = vunpack.c.l.b16 %v3440
        %v3628 = vunpack.c.h.b16 %v3440
        %v3629 = vunpack.c.l.b16 %v3441
        %v3630 = vunpack.c.h.b16 %v3441
        %v3631 = vunpack.c.l.b16 %v3442
        %v3632 = vunpack.c.h.b16 %v3442
        %v3633 = vunpack.c.l.b16 %v3443
        %v3634 = vunpack.c.h.b16 %v3443
        %v3635 = vunpack.c.l.b16 %v3444
        %v3636 = vunpack.c.h.b16 %v3444
        %v3637 = vunpack.c.l.b16 %v3445
        %v3638 = vunpack.c.h.b16 %v3445
        %v3639 = vunpack.c.l.b16 %v3446
        %v3640 = vunpack.c.h.b16 %v3446
        %v3641 = vunpack.c.l.b16 %v3447
        %v3642 = vunpack.c.h.b16 %v3447
        %v3643 = vunpack.c.l.b16 %v3448
        %v3644 = vunpack.c.h.b16 %v3448
        %v3645 = vunpack.c.l.b16 %v3449
        %v3646 = vunpack.c.h.b16 %v3449
        %v3647 = vunpack.c.l.b16 %v3450
        %v3648 = vunpack.c.h.b16 %v3450
        %v3649 = vunpack.c.l.b16 %v3451
        %v3650 = vunpack.c.h.b16 %v3451
        %v3651 = vunpack.c.l.b16 %v3452
        %v3652 = vunpack.c.h.b16 %v3452
        %v3653 = vunpack.c.l.b16 %v3453
        %v3654 = vunpack.c.h.b16 %v3453
        %v3655 = vunpack.c.l.b16 %v3454
        %v3656 = vunpack.c.h.b16 %v3454
        %v3657 = vunpack.c.l.b16 %v3455
        %v3658 = vunpack.c.h.b16 %v3455
        %v3659 = vunpack.c.l.b16 %v3456
        %v3660 = vunpack.c.h.b16 %v3456
        %v3661 = vpack.c.b16 %v3535, %v3533
        %v3662 = vpack.c.b16 %v3536, %v3534
        %v3663 = vpack.c.b16 %v3539, %v3537
        %v3664 = vpack.c.b16 %v3540, %v3538
        %v3665 = vpack.c.b16 %v3543, %v3541
        %v3666 = vpack.c.b16 %v3544, %v3542
        %v3667 = vpack.c.b16 %v3547, %v3545
        %v3668 = vpack.c.b16 %v3548, %v3546
        %v3669 = vpack.c.b16 %v3551, %v3549
        %v3670 = vpack.c.b16 %v3552, %v3550
        %v3671 = vpack.c.b16 %v3555, %v3553
        %v3672 = vpack.c.b16 %v3556, %v3554
        %v3673 = vpack.c.b16 %v3559, %v3557
        %v3674 = vpack.c.b16 %v3560, %v3558
        %v3675 = vpack.c.b16 %v3563, %v3561
        %v3676 = vpack.c.b16 %v3564, %v3562
        %v3677 = vpack.c.b16 %v3567, %v3565
        %v3678 = vpack.c.b16 %v3568, %v3566
        %v3679 = vpack.c.b16 %v3571, %v3569
        %v3680 = vpack.c.b16 %v3572, %v3570
        %v3681 = vpack.c.b16 %v3575, %v3573
        %v3682 = vpack.c.b16 %v3576, %v3574
        %v3683 = vpack.c.b16 %v3579, %v3577
        %v3684 = vpack.c.b16 %v3580, %v3578
        %v3685 = vpack.c.b16 %v3583, %v3581
        %v3686 = vpack.c.b16 %v3584, %v3582
        %v3687 = vpack.c.b16 %v3587, %v3585
        %v3688 = vpack.c.b16 %v3588, %v3586
        %v3689 = vpack.c.b16 %v3591, %v3589
        %v3690 = vpack.c.b16 %v3592, %v3590
        %v3691 = vpack.c.b16 %v3595, %v3593
        %v3692 = vpack.c.b16 %v3596, %v3594
        %v3693 = vpack.c.b16 %v3599, %v3597
        %v3694 = vpack.c.b16 %v3600, %v3598
        %v3695 = vpack.c.b16 %v3603, %v3601
        %v3696 = vpack.c.b16 %v3604, %v3602
        %v3697 = vpack.c.b16 %v3607, %v3605
        %v3698 = vpack.c.b16 %v3608, %v3606
        %v3699 = vpack.c.b16 %v3611, %v3609
        %v3700 = vpack.c.b16 %v3612, %v3610
        %v3701 = vpack.c.b16 %v3615, %v3613
        %v3702 = vpack.c.b16 %v3616, %v3614
        %v3703 = vpack.c.b16 %v3619, %v3617
        %v3704 = vpack.c.b16 %v3620, %v3618
        %v3705 = vpack.c.b16 %v3623, %v3621
        %v3706 = vpack.c.b16 %v3624, %v3622
        %v3707 = vpack.c.b16 %v3627, %v3625
        %v3708 = vpack.c.b16 %v3628, %v3626
        %v3709 = vpack.c.b16 %v3631, %v3629
        %v3710 = vpack.c.b16 %v3632, %v3630
        %v3711 = vpack.c.b16 %v3635, %v3633
        %v3712 = vpack.c.b16 %v3636, %v3634
        %v3713 = vpack.c.b16 %v3639, %v3637
        %v3714 = vpack.c.b16 %v3640, %v3638
        %v3715 = vpack.c.b16 %v3643, %v3641
        %v3716 = vpack.c.b16 %v3644, %v3642
        %v3717 = vpack.c.b16 %v3647, %v3645
        %v3718 = vpack.c.b16 %v3648, %v3646
        %v3719 = vpack.c.b16 %v3651, %v3649
        %v3720 = vpack.c.b16 %v3652, %v3650
        %v3721 = vpack.c.b16 %v3655, %v3653
        %v3722 = vpack.c.b16 %v3656, %v3654
        %v3723 = vpack.c.b16 %v3659, %v3657
        %v3724 = vpack.c.b16 %v3660, %v3658
        %3789 = vmatprep.subr.bf16.mxu0 %v3662
        %3790 = vmatpush1.bf16.msra.mxu0 %v3661
        %3791 = vmatprep.subr.bf16.mxu0 %v3664
        %3792 = vmatpush1.bf16.msra.mxu0 %v3663
        %3793 = vmatprep.subr.bf16.mxu0 %v3666
        %3794 = vmatpush1.bf16.msra.mxu0 %v3665
        %3795 = vmatprep.subr.bf16.mxu0 %v3668
        %3796 = vmatpush1.bf16.msra.mxu0 %v3667
        %3797 = vmatprep.subr.bf16.mxu0 %v3670
        %3798 = vmatpush1.bf16.msra.mxu0 %v3669
        %3799 = vmatprep.subr.bf16.mxu0 %v3672
        %3800 = vmatpush1.bf16.msra.mxu0 %v3671
        %3801 = vmatprep.subr.bf16.mxu0 %v3674
        %3802 = vmatpush1.bf16.msra.mxu0 %v3673
        %3803 = vmatprep.subr.bf16.mxu0 %v3676
        %3804 = vmatpush1.bf16.msra.mxu0 %v3675
        %3805 = vmatprep.subr.bf16.mxu0 %v3678
        %3806 = vmatpush1.bf16.msra.mxu0 %v3677
        %3807 = vmatprep.subr.bf16.mxu0 %v3680
        %3808 = vmatpush1.bf16.msra.mxu0 %v3679
        %3809 = vmatprep.subr.bf16.mxu0 %v3682
        %3810 = vmatpush1.bf16.msra.mxu0 %v3681
        %3811 = vmatprep.subr.bf16.mxu0 %v3684
        %3812 = vmatpush1.bf16.msra.mxu0 %v3683
        %3813 = vmatprep.subr.bf16.mxu0 %v3686
        %3814 = vmatpush1.bf16.msra.mxu0 %v3685
        %3815 = vmatprep.subr.bf16.mxu0 %v3688
        %3816 = vmatpush1.bf16.msra.mxu0 %v3687
        %3817 = vmatprep.subr.bf16.mxu0 %v3690
        %3818 = vmatpush1.bf16.msra.mxu0 %v3689
        %3819 = vmatprep.subr.bf16.mxu0 %v3692
        %3820 = vmatpush1.bf16.msra.mxu0 %v3691
        %3821 = vmatprep.mubr.bf16.mxu0 %v3386
        %3822 = vmatmul.mubr.bf16.gmra.mrb[0].mxu0 %v3385
        %v3823 = vpop.f32.mrb[0].mxu0
        %v3824 = vadd.f32 %v3462, %v3823
        %v3825 = vpop.f32.mrb[0].mxu0
        %v3826 = vadd.f32 %v3466, %v3825
        %v3827 = vpop.f32.mrb[0].mxu0
        %v3828 = vadd.f32 %v3462, %v3827
        %v3829 = vpop.f32.mrb[0].mxu0
        %v3830 = vadd.f32 %v3466, %v3829
        %3831 = vmatprep.mubr.bf16.mxu0 %v3390
        %3832 = vmatmul.mubr.bf16.gmra.mrb[0].mxu0 %v3389
        %v3833 = vpop.f32.mrb[0].mxu0
        %v3834 = vadd.f32 %v3462, %v3833
        %v3835 = vpop.f32.mrb[0].mxu0
        %v3836 = vadd.f32 %v3466, %v3835
        %v3837 = vpop.f32.mrb[0].mxu0
        %v3838 = vadd.f32 %v3462, %v3837
        %v3839 = vpop.f32.mrb[0].mxu0
        %v3840 = vadd.f32 %v3466, %v3839
        %3841 = vdwg.mxu0
        %3842 = vmatprep.subr.bf16.mxu0 %v3694
        %3843 = vmatpush1.bf16.msra.mxu0 %v3693
        %3844 = vmatprep.subr.bf16.mxu0 %v3696
        %3845 = vmatpush1.bf16.msra.mxu0 %v3695
        %3846 = vmatprep.subr.bf16.mxu0 %v3698
        %3847 = vmatpush1.bf16.msra.mxu0 %v3697
        %3848 = vmatprep.subr.bf16.mxu0 %v3700
        %3849 = vmatpush1.bf16.msra.mxu0 %v3699
        %3850 = vmatprep.subr.bf16.mxu0 %v3702
        %3851 = vmatpush1.bf16.msra.mxu0 %v3701
        %3852 = vmatprep.subr.bf16.mxu0 %v3704
        %3853 = vmatpush1.bf16.msra.mxu0 %v3703
        %3854 = vmatprep.subr.bf16.mxu0 %v3706
        %3855 = vmatpush1.bf16.msra.mxu0 %v3705
        %3856 = vmatprep.subr.bf16.mxu0 %v3708
        %3857 = vmatpush1.bf16.msra.mxu0 %v3707
        %3858 = vmatprep.subr.bf16.mxu0 %v3710
        %3859 = vmatpush1.bf16.msra.mxu0 %v3709
        %3860 = vmatprep.subr.bf16.mxu0 %v3712
        %3861 = vmatpush1.bf16.msra.mxu0 %v3711
        %3862 = vmatprep.subr.bf16.mxu0 %v3714
        %3863 = vmatpush1.bf16.msra.mxu0 %v3713
        %3864 = vmatprep.subr.bf16.mxu0 %v3716
        %3865 = vmatpush1.bf16.msra.mxu0 %v3715
        %3866 = vmatprep.subr.bf16.mxu0 %v3718
        %3867 = vmatpush1.bf16.msra.mxu0 %v3717
        %3868 = vmatprep.subr.bf16.mxu0 %v3720
        %3869 = vmatpush1.bf16.msra.mxu0 %v3719
        %3870 = vmatprep.subr.bf16.mxu0 %v3722
        %3871 = vmatpush1.bf16.msra.mxu0 %v3721
        %3872 = vmatprep.subr.bf16.mxu0 %v3724
        %3873 = vmatpush1.bf16.msra.mxu0 %v3723
        %3874 = vmatprep.mubr.bf16.mxu0 %v3388
        %3875 = vmatmul.mubr.bf16.gmra.mrb[0].mxu0 %v3387
        %v3876 = vpop.f32.mrb[0].mxu0
        %v3877 = vadd.f32 %v3824, %v3876
        %v3878 = vpop.f32.mrb[0].mxu0
        %v3879 = vadd.f32 %v3826, %v3878
        %v3880 = vpop.f32.mrb[0].mxu0
        %v3881 = vadd.f32 %v3828, %v3880
        %v3882 = vpop.f32.mrb[0].mxu0
        %v3883 = vadd.f32 %v3830, %v3882
        %3884 = vmatprep.mubr.bf16.mxu0 %v3392
        %3885 = vmatmul.mubr.bf16.gmra.mrb[0].mxu0 %v3391
        %v3886 = vpop.f32.mrb[0].mxu0
        %v3887 = vadd.f32 %v3834, %v3886
        %v3888 = vpop.f32.mrb[0].mxu0
        %v3889 = vadd.f32 %v3836, %v3888
        %v3890 = vpop.f32.mrb[0].mxu0
        %v3891 = vadd.f32 %v3838, %v3890
        %v3892 = vpop.f32.mrb[0].mxu0
        %v3893 = vadd.f32 %v3840, %v3892
        %3894 = vdwg.mxu0
        %v3895 = vadd.f32 %v2845, %v3877
        %v3896 = vadd.f32 %v2846, %v3879
        %v3897 = vadd.f32 %v2847, %v3881
        %v3898 = vadd.f32 %v2848, %v3883
        %v3899 = vadd.f32 %v2849, %v3887
        %v3900 = vadd.f32 %v2850, %v3889
        %v3901 = vadd.f32 %v2851, %v3891
        %v3902 = vadd.f32 %v2852, %v3893
        %v3903 = vld [vmem:[%s793] sm:$0x3]
        %v3904 = vld [vmem:[%s797] sm:$0x3]
        %v3905 = vadd.f32 %v3895, %v3896
        %3906 = vadd.xlane.f32.xlu0 %v3905
        %v3907 = vpop.xlane.xlu0 %3906
        %v3908 = vadd.f32 %v3897, %v3898
        %3909 = vadd.xlane.f32.xlu0 %v3908
        %v3910 = vpop.xlane.xlu0 %3909
        %v3911 = vadd.f32 %v3899, %v3900
        %3912 = vadd.xlane.f32.xlu0 %v3911
        %v3913 = vpop.xlane.xlu0 %3912
        %v3914 = vadd.f32 %v3901, %v3902
        %3915 = vadd.xlane.f32.xlu0 %v3914
        %v3916 = vpop.xlane.xlu0 %3915
        %v3917 = vmul.f32 %v3907, %v2762
        %v3918 = vmul.f32 %v3910, %v2762
        %v3919 = vmul.f32 %v3913, %v2762
        %v3920 = vmul.f32 %v3916, %v2762
        %v3921 = vsub.f32 %v3895, %v3917
        %v3922 = vsub.f32 %v3896, %v3917
        %v3923 = vsub.f32 %v3897, %v3918
        %v3924 = vsub.f32 %v3898, %v3918
        %v3925 = vsub.f32 %v3899, %v3919
        %v3926 = vsub.f32 %v3900, %v3919
        %v3927 = vsub.f32 %v3901, %v3920
        %v3928 = vsub.f32 %v3902, %v3920
        %v3929 = vmul.f32 %v3921, %v3921
        %v3930 = vmul.f32 %v3922, %v3922
        %v3931 = vmul.f32 %v3923, %v3923
        %v3932 = vmul.f32 %v3924, %v3924
        %v3933 = vmul.f32 %v3925, %v3925
        %v3934 = vmul.f32 %v3926, %v3926
        %v3935 = vmul.f32 %v3927, %v3927
        %v3936 = vmul.f32 %v3928, %v3928
        %v3937 = vadd.f32 %v3929, %v3930
        %3938 = vadd.xlane.f32.xlu0 %v3937
        %v3939 = vpop.xlane.xlu0 %3938
        %v3940 = vadd.f32 %v3931, %v3932
        %3941 = vadd.xlane.f32.xlu0 %v3940
        %v3942 = vpop.xlane.xlu0 %3941
        %v3943 = vadd.f32 %v3933, %v3934
        %3944 = vadd.xlane.f32.xlu0 %v3943
        %v3945 = vpop.xlane.xlu0 %3944
        %v3946 = vadd.f32 %v3935, %v3936
        %3947 = vadd.xlane.f32.xlu0 %v3946
        %v3948 = vpop.xlane.xlu0 %3947
        %v3949 = vmul.f32 %v3939, %v2762
        %v3950 = vmul.f32 %v3942, %v2762
        %v3951 = vmul.f32 %v3945, %v2762
        %v3952 = vmul.f32 %v3948, %v2762
        %v3953 = vadd.f32 %v3949, 1e-05
        %v3954 = vadd.f32 %v3950, 1e-05
        %v3955 = vadd.f32 %v3951, 1e-05
        %v3956 = vadd.f32 %v3952, 1e-05
        %v3957 = vrsqrt.pop %v3953
        %v3958 = vrsqrt.pop %v3954
        %v3959 = vrsqrt.pop %v3955
        %v3960 = vrsqrt.pop %v3956
        %v3961 = vmul.f32 %v3921, %v3957
        %v3962 = vmul.f32 %v3922, %v3957
        %v3963 = vmul.f32 %v3923, %v3958
        %v3964 = vmul.f32 %v3924, %v3958
        %v3965 = vmul.f32 %v3925, %v3959
        %v3966 = vmul.f32 %v3926, %v3959
        %v3967 = vmul.f32 %v3927, %v3960
        %v3968 = vmul.f32 %v3928, %v3960
        %v3970 = vlaneseq
        %v3971 = vshrl.u32 %v3970, 7
        %v3972 = vsub.s32 0, %v3971
        %v3973 = vrot.slane %v3903, %v3972
        %v3974 = vlaneseq
        %v3975 = vshrl.u32 %v3974, 7
        %v3976 = vsub.s32 1, %v3975
        %v3977 = vrot.slane %v3903, %v3976
        %v3980 = vmul.f32 %v3961, %v3973
        %v3981 = vmul.f32 %v3962, %v3977
        %v3982 = vmul.f32 %v3963, %v3973
        %v3983 = vmul.f32 %v3964, %v3977
        %v3984 = vmul.f32 %v3965, %v3973
        %v3985 = vmul.f32 %v3966, %v3977
        %v3986 = vmul.f32 %v3967, %v3973
        %v3987 = vmul.f32 %v3968, %v3977
        %v3989 = vlaneseq
        %v3990 = vshrl.u32 %v3989, 7
        %v3991 = vsub.s32 0, %v3990
        %v3992 = vrot.slane %v3904, %v3991
        %v3993 = vlaneseq
        %v3994 = vshrl.u32 %v3993, 7
        %v3995 = vsub.s32 1, %v3994
        %v3996 = vrot.slane %v3904, %v3995
        %v3999 = vadd.f32 %v3980, %v3992
        %v4000 = vadd.f32 %v3981, %v3996
        %v4001 = vadd.f32 %v3982, %v3992
        %v4002 = vadd.f32 %v3983, %v3996
        %v4003 = vadd.f32 %v3984, %v3992
        %v4004 = vadd.f32 %v3985, %v3996
        %v4005 = vadd.f32 %v3986, %v3992
        %v4006 = vadd.f32 %v3987, %v3996
        %p4007 = scmp.ne.s32.totalorder %s33, 1
        // Predicated region
        $region109: #{tpu_custom_call.1} parent=75 // pred_check
          %p4008 = pneg %p4007
        $region110: #{tpu_custom_call.1} parent=75 // pred_check_branch
          %4010 = sbr.rel (%p4008) target = $region112
        $region111: #{tpu_custom_call.1} parent=75 // pred_region
          %4011 = vst [vmem:[#allocation2] sm:$0xff] %v3999
          %4012 = vst [vmem:[#allocation2 + $0x8] sm:$0xff] %v4000
          %4013 = vst [vmem:[#allocation2 + $0x10] sm:$0xff] %v4001
          %4014 = vst [vmem:[#allocation2 + $0x18] sm:$0xff] %v4002
          %4015 = vst [vmem:[#allocation2 + $0x20] sm:$0xff] %v4003
          %4016 = vst [vmem:[#allocation2 + $0x28] sm:$0xff] %v4004
          %4017 = vst [vmem:[#allocation2 + $0x30] sm:$0xff] %v4005
          %4018 = vst [vmem:[#allocation2 + $0x38] sm:$0xff] %v4006
        $region112: #{tpu_custom_call.1} parent=75 // pred_fallthru
          _
        %p4019 = scmp.eq.s32.totalorder %s33, 1
        // Predicated region
        $region113: #{tpu_custom_call.1} parent=75 // pred_check
          %p4020 = pneg %p4019
        $region114: #{tpu_custom_call.1} parent=75 // pred_check_branch
          %4022 = sbr.rel (%p4020) target = $region116
        $region115: #{tpu_custom_call.1} parent=75 // pred_region
          %4023 = vst [vmem:[#allocation14] sm:$0xff] %v3999
          %4024 = vst [vmem:[#allocation14 + $0x8] sm:$0xff] %v4000
          %4025 = vst [vmem:[#allocation14 + $0x10] sm:$0xff] %v4001
          %4026 = vst [vmem:[#allocation14 + $0x18] sm:$0xff] %v4002
          %4027 = vst [vmem:[#allocation14 + $0x20] sm:$0xff] %v4003
          %4028 = vst [vmem:[#allocation14 + $0x28] sm:$0xff] %v4004
          %4029 = vst [vmem:[#allocation14 + $0x30] sm:$0xff] %v4005
          %4030 = vst [vmem:[#allocation14 + $0x38] sm:$0xff] %v4006
        $region116: #{tpu_custom_call.1} parent=75 // pred_fallthru
          _
        // Predicated region
        $region117: #{tpu_custom_call.1} parent=75 // pred_check
          %p4031 = pneg %p422
        $region118: #{tpu_custom_call.1} parent=75 // pred_check_branch
          %4033 = sbr.rel (%p4031) target = $region120
        $region119: #{tpu_custom_call.1} parent=75 // pred_region
          %s4034 = smul.u32 4, %s32
          %s4036 = ssub.s32 1024, 1024
          %4037 = vsyncadd [#allocation6], %s4036
          %s4038 = smul.addr %s4034, 2
          %s4039 = smul.addr %s4038, 128
          %s4040 = scalar_lea.hbm %s14, %s4039
          %s4041 = sshll.u32 [#allocation14], 4
          %s4042 = int_to_ptr.vmem [resolvable:$true] %s4041
          %4047 = dma.vmem_to_hbm [thread:$0]  %s4042, 1024, %s4040, [#allocation6], 256, 256, 16
        $region120: #{tpu_custom_call.1} parent=75 // pred_fallthru
          _
        // Predicated region
        $region121: #{tpu_custom_call.1} parent=75 // pred_check
          %p4048 = pneg %p422
        $region122: #{tpu_custom_call.1} parent=75 // pred_check_branch
          %4050 = sbr.rel (%p4048) target = $region124
        $region123: #{tpu_custom_call.1} parent=75 // pred_region
          %4051 = dma.done [#allocation6], 1024
        $region124: #{tpu_custom_call.1} parent=75 // pred_fallthru
          _
      $region76: #{tpu_custom_call.1} parent=5 // pred_fallthru
        _
      %p4052 = scmp.le.s32.totalorder 2, %s23
      // Predicated region
      $region125: #{tpu_custom_call.1} parent=5 // pred_check
        %p4053 = pneg %p4052
      $region126: #{tpu_custom_call.1} parent=5 // pred_check_branch
        %4055 = sbr.rel (%p4053) target = $region128
      $region127: #{tpu_custom_call.1} parent=5 // pred_region
        %s4056 = ssub.s32 %s23, 2
      $region128: #{tpu_custom_call.1} parent=5 // pred_fallthru
        _
    $region6: #{tpu_custom_call.1} parent=1 // loop_footer
      %s27 = sadd.s32 1, %s23
    $region7: #{tpu_custom_call.1} parent=1 // loop_footer_branch
      %22 = sbr.rel target = $region3
    $region8: #{tpu_custom_call.1} parent=1 // loop_exit
      _
    %4057 = vsyncpa [#allocation5], 1
    %s4058 = scalar_lea.sflag [#allocation5], 1
    %4059 = vsyncpa %s4058, 1
    %4060 = vsyncpa [#allocation8], 1
    %4061 = vsyncpa [#allocation6], 1
    %s4062 = scalar_lea.sflag [#allocation6], 1
    %4063 = vsyncpa %s4062, 1

</llo_original>
